<compile_context>
chip_gen: v5e
topology: v5e:2x2
jax: 0.10.0
libtpu: 0.0.40
codegen_flags: <defaults>
</compile_context>

<pallas_src>
import functools

import jax
import jax.numpy as jnp
import numpy as np
from jax.experimental import pallas as pl
from jax.experimental.pallas import tpu as pltpu


def _round_up(x, m):
    return (x + m - 1) // m * m


# ------------------------- fused 2-layer GRU kernel --------------------------
def fused_gru2_kernel(x_ref, wih1_ref, whh1_ref, bi1_ref, bhn1_ref,
                      wih2_ref, whh2_ref, bi2_ref, bhn2_ref, h0_ref,
                      hN_ref, h1_sc, h2_sc, y1_sc, *, t_total, t_blk):
    """Grid axis 0 = time blocks (sequential, 'arbitrary').

    x_ref   : (t_blk*Bp, Ep) bf16   embedded inputs for this time block (row = t*Bp + b)
    wih*    : (Din_p, 3*Hp) bf16    pre-transposed, gate-major column blocks of width Hp
    whh*    : (Hp, 3*Hp)    bf16
    bi*     : (1, 3*Hp)     f32     [b_ir+b_hr | b_iz+b_hz | b_in]
    bhn*    : (1, Hp)       f32     b_hn (must stay inside r*(...))
    h0_ref  : (2, Bp, Hp)   f32     initial hidden
    hN_ref  : (2, Bp, Hp)   f32     final hidden (written only on last grid step)
    h1_sc/h2_sc : (Bp, Hp)  f32 VMEM   carried hidden states
    y1_sc   : (t_blk*Bp, Hp) bf16 VMEM layer-1 outputs for this block (layer-2 input)
    """
    tb = pl.program_id(0)
    Bp, Hp = h1_sc.shape

    @pl.when(tb == 0)
    def _():
        h1_sc[...] = h0_ref[0]
        h2_sc[...] = h0_ref[1]

    def gru_block(gi, whh_ref, bhn_ref, h_sc, y_sc):
        # gi: (t_blk*Bp, 3*Hp) f32, input projection for the whole block (precomputed).
        h = h_sc[...]
        for t in range(t_blk):                       # short, static inner loop
            gi_t = gi[t * Bp:(t + 1) * Bp, :]        # static, gate-aligned slices
            gh = jnp.dot(h.astype(jnp.bfloat16), whh_ref[...],
                         preferred_element_type=jnp.float32)
            r = jax.nn.sigmoid(gi_t[:, 0:Hp] + gh[:, 0:Hp])
            z = jax.nn.sigmoid(gi_t[:, Hp:2 * Hp] + gh[:, Hp:2 * Hp])
            n = jnp.tanh(gi_t[:, 2 * Hp:] + r * (gh[:, 2 * Hp:] + bhn_ref[...]))
            h_new = (1.0 - z) * n + z * h
            valid = (tb * t_blk + t) < t_total       # mask padded timesteps
            h = jnp.where(valid, h_new, h)
            if y_sc is not None:
                y_sc[pl.ds(t * Bp, Bp), :] = h.astype(jnp.bfloat16)
        h_sc[...] = h

    # Layer 1: one MXU matmul for the whole time block's input projection.
    gi1 = jnp.dot(x_ref[...], wih1_ref[...],
                  preferred_element_type=jnp.float32) + bi1_ref[...]
    gru_block(gi1, whh1_ref, bhn1_ref, h1_sc, y1_sc)

    # Layer 2: batched input projection from layer-1 outputs (VMEM only, no HBM trip).
    gi2 = jnp.dot(y1_sc[...], wih2_ref[...],
                  preferred_element_type=jnp.float32) + bi2_ref[...]
    gru_block(gi2, whh2_ref, bhn2_ref, h2_sc, None)

    @pl.when(tb == pl.num_programs(0) - 1)
    def _():
        hN_ref[0] = h1_sc[...]
        hN_ref[1] = h2_sc[...]


def _prep_gru_layer(p, H, Din, Hp, Dinp):
    """PyTorch-layout GRU weights -> padded, gate-aligned, bf16 kernel operands."""
    w_ih = jnp.asarray(p["w_ih"], jnp.float32).reshape(3, H, Din)
    w_hh = jnp.asarray(p["w_hh"], jnp.float32).reshape(3, H, H)
    b_ih = jnp.asarray(p["b_ih"], jnp.float32).reshape(3, H)
    b_hh = jnp.asarray(p["b_hh"], jnp.float32).reshape(3, H)

    wih_p = jnp.zeros((3, Hp, Dinp), jnp.float32).at[:, :H, :Din].set(w_ih)
    whh_p = jnp.zeros((3, Hp, Hp), jnp.float32).at[:, :H, :H].set(w_hh)
    wih_t = jnp.transpose(wih_p, (2, 0, 1)).reshape(Dinp, 3 * Hp).astype(jnp.bfloat16)
    whh_t = jnp.transpose(whh_p, (2, 0, 1)).reshape(Hp, 3 * Hp).astype(jnp.bfloat16)

    # Pre-sum r/z biases; the n gate keeps only b_in here (b_hn stays inside r*(...)).
    bi = jnp.zeros((3, Hp), jnp.float32).at[:, :H].set(
        jnp.stack([b_ih[0] + b_hh[0], b_ih[1] + b_hh[1], b_ih[2]], axis=0))
    bi = bi.reshape(1, 3 * Hp)
    bhn = jnp.zeros((1, Hp), jnp.float32).at[0, :H].set(b_hh[2])
    return wih_t, whh_t, bi, bhn


def fused_gru2(x_tbe, params, h0, *, t_blk=8):
    """x_tbe: (T, B, E) f32 time-major; h0: (2, B, H). Returns padded hidden (2, Bp, Hp)."""
    assert len(params["gru"]) == 2, "fused kernel is specialized for 2 GRU layers"
    T, B, E = x_tbe.shape
    H = params["gru"][0]["w_hh"].shape[-1]
    Bp = _round_up(B, 8)
    Hp = _round_up(H, 128)
    Ep = _round_up(E, 128)
    t_blk = min(t_blk, T)
    Tp = _round_up(T, t_blk)
    n_blocks = Tp // t_blk

    x_p = jnp.zeros((Tp, Bp, Ep), jnp.float32).at[:T, :B, :E].set(x_tbe)
    x2d = x_p.reshape(Tp * Bp, Ep).astype(jnp.bfloat16)       # row = t*Bp + b
    h0_p = jnp.zeros((2, Bp, Hp), jnp.float32).at[:, :B, :H].set(h0)

    wih1, whh1, bi1, bhn1 = _prep_gru_layer(params["gru"][0], H, E, Hp, Ep)
    wih2, whh2, bi2, bhn2 = _prep_gru_layer(params["gru"][1], H, H, Hp, Hp)

    kernel = functools.partial(fused_gru2_kernel, t_total=T, t_blk=t_blk)

    hN = pl.pallas_call(
        kernel,
        out_shape=jax.ShapeDtypeStruct((2, Bp, Hp), jnp.float32),
        grid_spec=pltpu.PrefetchScalarGridSpec(
            num_scalar_prefetch=0,
            grid=(n_blocks,),
            in_specs=[
                pl.BlockSpec((t_blk * Bp, Ep), lambda tb: (tb, 0)),   # x block
                pl.BlockSpec((Ep, 3 * Hp), lambda tb: (0, 0)),        # W_ih layer 1
                pl.BlockSpec((Hp, 3 * Hp), lambda tb: (0, 0)),        # W_hh layer 1
                pl.BlockSpec((1, 3 * Hp), lambda tb: (0, 0)),         # bias layer 1
                pl.BlockSpec((1, Hp), lambda tb: (0, 0)),             # b_hn layer 1
                pl.BlockSpec((Hp, 3 * Hp), lambda tb: (0, 0)),        # W_ih layer 2
                pl.BlockSpec((Hp, 3 * Hp), lambda tb: (0, 0)),        # W_hh layer 2
                pl.BlockSpec((1, 3 * Hp), lambda tb: (0, 0)),         # bias layer 2
                pl.BlockSpec((1, Hp), lambda tb: (0, 0)),             # b_hn layer 2
                pl.BlockSpec((2, Bp, Hp), lambda tb: (0, 0, 0)),      # h0
            ],
            out_specs=pl.BlockSpec((2, Bp, Hp), lambda tb: (0, 0, 0)),
            scratch_shapes=[
                pltpu.VMEM((Bp, Hp), jnp.float32),            # layer-1 hidden carry
                pltpu.VMEM((Bp, Hp), jnp.float32),            # layer-2 hidden carry
                pltpu.VMEM((t_blk * Bp, Hp), jnp.bfloat16),   # layer-1 block outputs
            ],
        ),
        compiler_params=pltpu.CompilerParams(
            dimension_semantics=("arbitrary",)),
    )(x2d, wih1, whh1, bi1, bhn1, wih2, whh2, bi2, bhn2, h0_p)
    return hN


# ------------------------------ Linear kernel -------------------------------
def fc_kernel(x_ref, w_ref, b_ref, o_ref):
    o_ref[...] = (jnp.dot(x_ref[...], w_ref[...],
                          preferred_element_type=jnp.float32) + b_ref[...])


def fc(x_bh, w, b):
    """x_bh: (Bp, Hp) f32 padded features; w: (V, H) PyTorch layout; b: (V,).
    Returns (Bp, Vp) f32; tiled over the (padded) vocab dimension."""
    Bp, Hp = x_bh.shape
    V, H = w.shape
    Vp = _round_up(V, 128)
    vt = 512 if Vp % 512 == 0 else (256 if Vp % 256 == 0 else 128)

    w_p = jnp.zeros((Hp, Vp), jnp.float32).at[:H, :V].set(
        jnp.asarray(w, jnp.float32).T).astype(jnp.bfloat16)
    b_p = jnp.zeros((1, Vp), jnp.float32).at[0, :V].set(jnp.asarray(b, jnp.float32))

    return pl.pallas_call(
        fc_kernel,
        out_shape=jax.ShapeDtypeStruct((Bp, Vp), jnp.float32),
        grid_spec=pltpu.PrefetchScalarGridSpec(
            num_scalar_prefetch=0,
            grid=(Vp // vt,),
            in_specs=[pl.BlockSpec((Bp, Hp), lambda j: (0, 0)),
                      pl.BlockSpec((Hp, vt), lambda j: (0, j)),
                      pl.BlockSpec((1, vt), lambda j: (0, j))],
            out_specs=pl.BlockSpec((Bp, vt), lambda j: (0, j)),
        ),
        compiler_params=pltpu.CompilerParams(
            dimension_semantics=("parallel",)),
    )(x_bh.astype(jnp.bfloat16), w_p, b_p)


# ------------------------------ Full model ----------------------------------
def init_params(key, vocab_size, embed_dim, hidden_size, num_layers):
    params = {}
    k_emb, k_gru, k_fc = jax.random.split(key, 3)
    params["embedding"] = jax.random.normal(k_emb, (vocab_size, embed_dim), jnp.float32)
    bound = 1.0 / np.sqrt(hidden_size)
    gru = []
    k = k_gru
    for l in range(num_layers):
        din = embed_dim if l == 0 else hidden_size
        k, k1, k2, k3, k4 = jax.random.split(k, 5)
        gru.append({
            "w_ih": jax.random.uniform(k1, (3 * hidden_size, din), jnp.float32, -bound, bound),
            "w_hh": jax.random.uniform(k2, (3 * hidden_size, hidden_size), jnp.float32, -bound, bound),
            "b_ih": jax.random.uniform(k3, (3 * hidden_size,), jnp.float32, -bound, bound),
            "b_hh": jax.random.uniform(k4, (3 * hidden_size,), jnp.float32, -bound, bound),
        })
    params["gru"] = gru
    kf1, kf2 = jax.random.split(k_fc)
    fbound = 1.0 / np.sqrt(hidden_size)
    params["fc_w"] = jax.random.uniform(kf1, (vocab_size, hidden_size), jnp.float32, -fbound, fbound)
    params["fc_b"] = jax.random.uniform(kf2, (vocab_size,), jnp.float32, -fbound, fbound)
    return params


@jax.jit
def deep_gru_forward(params, tokens, hidden=None):
    """tokens: (B, T) int32.  Returns (logits (B, V), hidden (L, B, H))."""
    B, T = tokens.shape
    L = len(params["gru"])
    H = params["gru"][0]["w_hh"].shape[-1]
    V = params["fc_w"].shape[0]

    # Embedding lookup (glue, plain JAX gather).
    x = jnp.take(params["embedding"], tokens, axis=0)          # (B, T, E)
    x = jnp.transpose(x, (1, 0, 2)).astype(jnp.float32)        # (T, B, E) time-major

    if hidden is None:
        hidden = jnp.zeros((L, B, H), jnp.float32)

    hN_p = fused_gru2(x, params, hidden)                       # (2, Bp, Hp)
    h_last = hN_p[L - 1]                                       # (Bp, Hp) == out[:, -1, :] padded
    logits_p = fc(h_last, params["fc_w"], params["fc_b"])      # (Bp, Vp)

    return logits_p[:B, :V], hN_p[:, :B, :H]


# ------------------------------ Reference (pure JAX, f32) --------------------
def _ref_forward(params, tokens):
    x = jnp.take(params["embedding"], tokens, axis=0)          # (B, T, E)
    B, T, _ = x.shape
    num_layers = len(params["gru"])
    H = params["gru"][0]["w_hh"].shape[-1]
    layer_in = x
    h_finals = []
    for l in range(num_layers):
        p = params["gru"][l]
        h = jnp.zeros((B, H), jnp.float32)
        outs = []
        for t in range(T):
            xt = layer_in[:, t, :]
            gi = xt @ p["w_ih"].T + p["b_ih"]
            gh = h @ p["w_hh"].T + p["b_hh"]
            r = jax.nn.sigmoid(gi[:, :H] + gh[:, :H])
            z = jax.nn.sigmoid(gi[:, H:2 * H] + gh[:, H:2 * H])
            n = jnp.tanh(gi[:, 2 * H:] + r * gh[:, 2 * H:])
            h = (1 - z) * n + z * h
            outs.append(h)
        layer_in = jnp.stack(outs, axis=1)
        h_finals.append(h)
    logits = layer_in[:, -1, :] @ params["fc_w"].T + params["fc_b"]
    return logits, jnp.stack(h_finals, axis=0)


if __name__ == "__main__":
    VOCAB, EMBED, HIDDEN, LAYERS = 32, 64, 128, 2
    B, T = 2, 16

    key = jax.random.PRNGKey(0)
    k_params, k_tok = jax.random.split(key)
    params = init_params(k_params, VOCAB, EMBED, HIDDEN, LAYERS)
    tokens = jax.random.randint(k_tok, (B, T), 0, VOCAB, dtype=jnp.int32)

    logits, hidden = deep_gru_forward(params, tokens)
    logits, hidden = jax.block_until_ready((logits, hidden))

    ref_logits, ref_hidden = _ref_forward(params, tokens)
    # bf16 matmuls with f32 accumulation vs pure-f32 reference -> modest tolerance.
    np.testing.assert_allclose(np.asarray(logits), np.asarray(ref_logits),
                               rtol=4e-2, atol=4e-2)
    np.testing.assert_allclose(np.asarray(hidden), np.asarray(ref_hidden),
                               rtol=4e-2, atol=4e-2)

    assert logits.shape == (B, VOCAB) and hidden.shape == (LAYERS, B, HIDDEN)
    print("KERNEL_OK")
</pallas_src>

<mosaic_0001>
module attributes {stable_mosaic.version = 11 : i64} {
  func.func @fused_gru2_kernel(%arg0: i32, %arg1: memref<64x128xbf16, #tpu.memory_space<vmem>>, %arg2: memref<128x384xbf16, #tpu.memory_space<vmem>>, %arg3: memref<128x384xbf16, #tpu.memory_space<vmem>>, %arg4: memref<1x384xf32, #tpu.memory_space<vmem>>, %arg5: memref<1x128xf32, #tpu.memory_space<vmem>>, %arg6: memref<128x384xbf16, #tpu.memory_space<vmem>>, %arg7: memref<128x384xbf16, #tpu.memory_space<vmem>>, %arg8: memref<1x384xf32, #tpu.memory_space<vmem>>, %arg9: memref<1x128xf32, #tpu.memory_space<vmem>>, %arg10: memref<2x8x128xf32, #tpu.memory_space<vmem>>, %arg11: memref<2x8x128xf32, #tpu.memory_space<vmem>>, %arg12: memref<8x128xf32, #tpu.memory_space<vmem>>, %arg13: memref<8x128xf32, #tpu.memory_space<vmem>>, %arg14: memref<64x128xbf16, #tpu.memory_space<vmem>>) attributes {dimension_semantics = [#tpu.dimension_semantics<arbitrary>], iteration_bounds = array<i64: 2>, scalar_prefetch = 0 : i64, scratch_operands = 3 : i64, tpu.core_type = #tpu.core_type<tc>, window_params = [{transform_indices = @transform_0, window_bounds = array<i64: 64, 128>}, {pipeline_mode = #tpu.pipeline_mode<synchronous>, transform_indices = @transform_1, window_bounds = array<i64: 128, 384>}, {pipeline_mode = #tpu.pipeline_mode<synchronous>, transform_indices = @transform_2, window_bounds = array<i64: 128, 384>}, {pipeline_mode = #tpu.pipeline_mode<synchronous>, transform_indices = @transform_3, window_bounds = array<i64: 1, 384>}, {pipeline_mode = #tpu.pipeline_mode<synchronous>, transform_indices = @transform_4, window_bounds = array<i64: 1, 128>}, {pipeline_mode = #tpu.pipeline_mode<synchronous>, transform_indices = @transform_5, window_bounds = array<i64: 128, 384>}, {pipeline_mode = #tpu.pipeline_mode<synchronous>, transform_indices = @transform_6, window_bounds = array<i64: 128, 384>}, {pipeline_mode = #tpu.pipeline_mode<synchronous>, transform_indices = @transform_7, window_bounds = array<i64: 1, 384>}, {pipeline_mode = #tpu.pipeline_mode<synchronous>, transform_indices = @transform_8, window_bounds = array<i64: 1, 128>}, {pipeline_mode = #tpu.pipeline_mode<synchronous>, transform_indices = @transform_9, window_bounds = array<i64: 2, 8, 128>}, {pipeline_mode = #tpu.pipeline_mode<synchronous>, transform_indices = @transform_10, window_bounds = array<i64: 2, 8, 128>}]} {
    %c0_i32 = arith.constant 0 : i32
    %0 = arith.cmpi eq, %arg0, %c0_i32 : i32
    %1 = arith.extui %0 : i1 to i32
    %c0_i32_0 = arith.constant 0 : i32
    %2 = arith.cmpi ne, %1, %c0_i32_0 : i32
    scf.if %2 {
      %c0_199 = arith.constant 0 : index
      %c0_200 = arith.constant 0 : index
      %c0_201 = arith.constant 0 : index
      %630 = vector.load %arg10[%c0_199, %c0_200, %c0_201] : memref<2x8x128xf32, #tpu.memory_space<vmem>>, vector<1x8x128xf32>
      %631 = vector.shape_cast %630 : vector<1x8x128xf32> to vector<8x128xf32>
      %c0_202 = arith.constant 0 : index
      %c0_203 = arith.constant 0 : index
      %632 = vector.load %arg12[%c0_202, %c0_203] : memref<8x128xf32, #tpu.memory_space<vmem>>, vector<8x128xf32>
      tpu.vector_store %arg12[%c0_202, %c0_203], %631 {strides = array<i32>} : memref<8x128xf32, #tpu.memory_space<vmem>>, vector<8x128xf32>,
      %c1 = arith.constant 1 : index
      %c0_204 = arith.constant 0 : index
      %c0_205 = arith.constant 0 : index
      %633 = vector.load %arg10[%c1, %c0_204, %c0_205] : memref<2x8x128xf32, #tpu.memory_space<vmem>>, vector<1x8x128xf32>
      %634 = vector.shape_cast %633 : vector<1x8x128xf32> to vector<8x128xf32>
      %c0_206 = arith.constant 0 : index
      %c0_207 = arith.constant 0 : index
      %635 = vector.load %arg13[%c0_206, %c0_207] : memref<8x128xf32, #tpu.memory_space<vmem>>, vector<8x128xf32>
      tpu.vector_store %arg13[%c0_206, %c0_207], %634 {strides = array<i32>} : memref<8x128xf32, #tpu.memory_space<vmem>>, vector<8x128xf32>,
    } else {
    }
    %c0 = arith.constant 0 : index
    %c0_1 = arith.constant 0 : index
    %3 = vector.load %arg1[%c0, %c0_1] : memref<64x128xbf16, #tpu.memory_space<vmem>>, vector<64x128xbf16>
    %c0_2 = arith.constant 0 : index
    %c0_3 = arith.constant 0 : index
    %4 = vector.load %arg2[%c0_2, %c0_3] : memref<128x384xbf16, #tpu.memory_space<vmem>>, vector<128x384xbf16>
    %cst = arith.constant dense<0.000000e+00> : vector<64x384xf32>
    %5 = tpu.matmul %3, %4, %cst {dimension_numbers = #tpu.dot_dimension_numbers<[1], [0], [0], [1], [0, 0, 1, 1], [], []>} : vector<64x128xbf16>, vector<128x384xbf16>, vector<64x384xf32> -> vector<64x384xf32>
    %c0_4 = arith.constant 0 : index
    %c0_5 = arith.constant 0 : index
    %6 = vector.load %arg4[%c0_4, %c0_5] : memref<1x384xf32, #tpu.memory_space<vmem>>, vector<1x384xf32>
    %7 = vector.broadcast %6 : vector<1x384xf32> to vector<64x384xf32>
    %8 = arith.addf %5, %7 : vector<64x384xf32>
    %c0_6 = arith.constant 0 : index
    %c0_7 = arith.constant 0 : index
    %9 = vector.load %arg12[%c0_6, %c0_7] : memref<8x128xf32, #tpu.memory_space<vmem>>, vector<8x128xf32>
    %10 = vector.extract_strided_slice %8 {offsets = [0, 0], sizes = [8, 384], strides = [1, 1]} : vector<64x384xf32> to vector<8x384xf32>
    %11 = arith.truncf %9 : vector<8x128xf32> to vector<8x128xbf16>
    %c0_8 = arith.constant 0 : index
    %c0_9 = arith.constant 0 : index
    %12 = vector.load %arg3[%c0_8, %c0_9] : memref<128x384xbf16, #tpu.memory_space<vmem>>, vector<128x384xbf16>
    %cst_10 = arith.constant dense<0.000000e+00> : vector<8x384xf32>
    %13 = tpu.matmul %11, %12, %cst_10 {dimension_numbers = #tpu.dot_dimension_numbers<[1], [0], [0], [1], [0, 0, 1, 1], [], []>} : vector<8x128xbf16>, vector<128x384xbf16>, vector<8x384xf32> -> vector<8x384xf32>
    %14 = vector.extract_strided_slice %10 {offsets = [0, 0], sizes = [8, 128], strides = [1, 1]} : vector<8x384xf32> to vector<8x128xf32>
    %15 = vector.extract_strided_slice %13 {offsets = [0, 0], sizes = [8, 128], strides = [1, 1]} : vector<8x384xf32> to vector<8x128xf32>
    %16 = arith.addf %14, %15 : vector<8x128xf32>
    %17 = arith.negf %16 : vector<8x128xf32>
    %18 = math.exp %17 : vector<8x128xf32>
    %cst_11 = arith.constant 1.000000e+00 : f32
    %19 = vector.broadcast %cst_11 : f32 to vector<8x128xf32>
    %20 = arith.addf %19, %18 : vector<8x128xf32>
    %21 = arith.divf %19, %20 : vector<8x128xf32>
    %22 = vector.extract_strided_slice %10 {offsets = [0, 128], sizes = [8, 128], strides = [1, 1]} : vector<8x384xf32> to vector<8x128xf32>
    %23 = vector.extract_strided_slice %13 {offsets = [0, 128], sizes = [8, 128], strides = [1, 1]} : vector<8x384xf32> to vector<8x128xf32>
    %24 = arith.addf %22, %23 : vector<8x128xf32>
    %25 = arith.negf %24 : vector<8x128xf32>
    %26 = math.exp %25 : vector<8x128xf32>
    %cst_12 = arith.constant 1.000000e+00 : f32
    %27 = vector.broadcast %cst_12 : f32 to vector<8x128xf32>
    %28 = arith.addf %27, %26 : vector<8x128xf32>
    %29 = arith.divf %27, %28 : vector<8x128xf32>
    %30 = vector.extract_strided_slice %10 {offsets = [0, 256], sizes = [8, 128], strides = [1, 1]} : vector<8x384xf32> to vector<8x128xf32>
    %31 = vector.extract_strided_slice %13 {offsets = [0, 256], sizes = [8, 128], strides = [1, 1]} : vector<8x384xf32> to vector<8x128xf32>
    %c0_13 = arith.constant 0 : index
    %c0_14 = arith.constant 0 : index
    %32 = vector.load %arg5[%c0_13, %c0_14] : memref<1x128xf32, #tpu.memory_space<vmem>>, vector<1x128xf32>
    %33 = vector.broadcast %32 : vector<1x128xf32> to vector<8x128xf32>
    %34 = arith.addf %31, %33 : vector<8x128xf32>
    %35 = arith.mulf %21, %34 : vector<8x128xf32>
    %36 = arith.addf %30, %35 : vector<8x128xf32>
    %37 = math.tanh %36 : vector<8x128xf32>
    %cst_15 = arith.constant 1.000000e+00 : f32
    %38 = vector.broadcast %cst_15 : f32 to vector<8x128xf32>
    %39 = arith.subf %38, %29 : vector<8x128xf32>
    %40 = arith.mulf %39, %37 : vector<8x128xf32>
    %41 = arith.mulf %29, %9 : vector<8x128xf32>
    %42 = arith.addf %40, %41 : vector<8x128xf32>
    %c8_i32 = arith.constant 8 : i32
    %43 = arith.muli %arg0, %c8_i32 : i32
    %c0_i32_16 = arith.constant 0 : i32
    %44 = arith.addi %43, %c0_i32_16 : i32
    %c16_i32 = arith.constant 16 : i32
    %45 = arith.cmpi slt, %44, %c16_i32 : i32
    %46 = arith.select %45, %42, %9 : vector<8x128xf32>
    %47 = arith.truncf %46 : vector<8x128xf32> to vector<8x128xbf16>
    %c0_17 = arith.constant 0 : index
    %c0_18 = arith.constant 0 : index
    %48 = vector.load %arg14[%c0_17, %c0_18] : memref<64x128xbf16, #tpu.memory_space<vmem>>, vector<8x128xbf16>
    tpu.vector_store %arg14[%c0_17, %c0_18], %47 {strides = array<i32>} : memref<64x128xbf16, #tpu.memory_space<vmem>>, vector<8x128xbf16>,
    %49 = vector.extract_strided_slice %8 {offsets = [8, 0], sizes = [8, 384], strides = [1, 1]} : vector<64x384xf32> to vector<8x384xf32>
    %50 = arith.truncf %46 : vector<8x128xf32> to vector<8x128xbf16>
    %c0_19 = arith.constant 0 : index
    %c0_20 = arith.constant 0 : index
    %51 = vector.load %arg3[%c0_19, %c0_20] : memref<128x384xbf16, #tpu.memory_space<vmem>>, vector<128x384xbf16>
    %cst_21 = arith.constant dense<0.000000e+00> : vector<8x384xf32>
    %52 = tpu.matmul %50, %51, %cst_21 {dimension_numbers = #tpu.dot_dimension_numbers<[1], [0], [0], [1], [0, 0, 1, 1], [], []>} : vector<8x128xbf16>, vector<128x384xbf16>, vector<8x384xf32> -> vector<8x384xf32>
    %53 = vector.extract_strided_slice %49 {offsets = [0, 0], sizes = [8, 128], strides = [1, 1]} : vector<8x384xf32> to vector<8x128xf32>
    %54 = vector.extract_strided_slice %52 {offsets = [0, 0], sizes = [8, 128], strides = [1, 1]} : vector<8x384xf32> to vector<8x128xf32>
    %55 = arith.addf %53, %54 : vector<8x128xf32>
    %56 = arith.negf %55 : vector<8x128xf32>
    %57 = math.exp %56 : vector<8x128xf32>
    %cst_22 = arith.constant 1.000000e+00 : f32
    %58 = vector.broadcast %cst_22 : f32 to vector<8x128xf32>
    %59 = arith.addf %58, %57 : vector<8x128xf32>
    %60 = arith.divf %58, %59 : vector<8x128xf32>
    %61 = vector.extract_strided_slice %49 {offsets = [0, 128], sizes = [8, 128], strides = [1, 1]} : vector<8x384xf32> to vector<8x128xf32>
    %62 = vector.extract_strided_slice %52 {offsets = [0, 128], sizes = [8, 128], strides = [1, 1]} : vector<8x384xf32> to vector<8x128xf32>
    %63 = arith.addf %61, %62 : vector<8x128xf32>
    %64 = arith.negf %63 : vector<8x128xf32>
    %65 = math.exp %64 : vector<8x128xf32>
    %cst_23 = arith.constant 1.000000e+00 : f32
    %66 = vector.broadcast %cst_23 : f32 to vector<8x128xf32>
    %67 = arith.addf %66, %65 : vector<8x128xf32>
    %68 = arith.divf %66, %67 : vector<8x128xf32>
    %69 = vector.extract_strided_slice %49 {offsets = [0, 256], sizes = [8, 128], strides = [1, 1]} : vector<8x384xf32> to vector<8x128xf32>
    %70 = vector.extract_strided_slice %52 {offsets = [0, 256], sizes = [8, 128], strides = [1, 1]} : vector<8x384xf32> to vector<8x128xf32>
    %c0_24 = arith.constant 0 : index
    %c0_25 = arith.constant 0 : index
    %71 = vector.load %arg5[%c0_24, %c0_25] : memref<1x128xf32, #tpu.memory_space<vmem>>, vector<1x128xf32>
    %72 = vector.broadcast %71 : vector<1x128xf32> to vector<8x128xf32>
    %73 = arith.addf %70, %72 : vector<8x128xf32>
    %74 = arith.mulf %60, %73 : vector<8x128xf32>
    %75 = arith.addf %69, %74 : vector<8x128xf32>
    %76 = math.tanh %75 : vector<8x128xf32>
    %cst_26 = arith.constant 1.000000e+00 : f32
    %77 = vector.broadcast %cst_26 : f32 to vector<8x128xf32>
    %78 = arith.subf %77, %68 : vector<8x128xf32>
    %79 = arith.mulf %78, %76 : vector<8x128xf32>
    %80 = arith.mulf %68, %46 : vector<8x128xf32>
    %81 = arith.addf %79, %80 : vector<8x128xf32>
    %c8_i32_27 = arith.constant 8 : i32
    %82 = arith.muli %arg0, %c8_i32_27 : i32
    %c1_i32 = arith.constant 1 : i32
    %83 = arith.addi %82, %c1_i32 : i32
    %c16_i32_28 = arith.constant 16 : i32
    %84 = arith.cmpi slt, %83, %c16_i32_28 : i32
    %85 = arith.select %84, %81, %46 : vector<8x128xf32>
    %86 = arith.truncf %85 : vector<8x128xf32> to vector<8x128xbf16>
    %c8 = arith.constant 8 : index
    %c0_29 = arith.constant 0 : index
    %87 = vector.load %arg14[%c8, %c0_29] : memref<64x128xbf16, #tpu.memory_space<vmem>>, vector<8x128xbf16>
    tpu.vector_store %arg14[%c8, %c0_29], %86 {strides = array<i32>} : memref<64x128xbf16, #tpu.memory_space<vmem>>, vector<8x128xbf16>,
    %88 = vector.extract_strided_slice %8 {offsets = [16, 0], sizes = [8, 384], strides = [1, 1]} : vector<64x384xf32> to vector<8x384xf32>
    %89 = arith.truncf %85 : vector<8x128xf32> to vector<8x128xbf16>
    %c0_30 = arith.constant 0 : index
    %c0_31 = arith.constant 0 : index
    %90 = vector.load %arg3[%c0_30, %c0_31] : memref<128x384xbf16, #tpu.memory_space<vmem>>, vector<128x384xbf16>
    %cst_32 = arith.constant dense<0.000000e+00> : vector<8x384xf32>
    %91 = tpu.matmul %89, %90, %cst_32 {dimension_numbers = #tpu.dot_dimension_numbers<[1], [0], [0], [1], [0, 0, 1, 1], [], []>} : vector<8x128xbf16>, vector<128x384xbf16>, vector<8x384xf32> -> vector<8x384xf32>
    %92 = vector.extract_strided_slice %88 {offsets = [0, 0], sizes = [8, 128], strides = [1, 1]} : vector<8x384xf32> to vector<8x128xf32>
    %93 = vector.extract_strided_slice %91 {offsets = [0, 0], sizes = [8, 128], strides = [1, 1]} : vector<8x384xf32> to vector<8x128xf32>
    %94 = arith.addf %92, %93 : vector<8x128xf32>
    %95 = arith.negf %94 : vector<8x128xf32>
    %96 = math.exp %95 : vector<8x128xf32>
    %cst_33 = arith.constant 1.000000e+00 : f32
    %97 = vector.broadcast %cst_33 : f32 to vector<8x128xf32>
    %98 = arith.addf %97, %96 : vector<8x128xf32>
    %99 = arith.divf %97, %98 : vector<8x128xf32>
    %100 = vector.extract_strided_slice %88 {offsets = [0, 128], sizes = [8, 128], strides = [1, 1]} : vector<8x384xf32> to vector<8x128xf32>
    %101 = vector.extract_strided_slice %91 {offsets = [0, 128], sizes = [8, 128], strides = [1, 1]} : vector<8x384xf32> to vector<8x128xf32>
    %102 = arith.addf %100, %101 : vector<8x128xf32>
    %103 = arith.negf %102 : vector<8x128xf32>
    %104 = math.exp %103 : vector<8x128xf32>
    %cst_34 = arith.constant 1.000000e+00 : f32
    %105 = vector.broadcast %cst_34 : f32 to vector<8x128xf32>
    %106 = arith.addf %105, %104 : vector<8x128xf32>
    %107 = arith.divf %105, %106 : vector<8x128xf32>
    %108 = vector.extract_strided_slice %88 {offsets = [0, 256], sizes = [8, 128], strides = [1, 1]} : vector<8x384xf32> to vector<8x128xf32>
    %109 = vector.extract_strided_slice %91 {offsets = [0, 256], sizes = [8, 128], strides = [1, 1]} : vector<8x384xf32> to vector<8x128xf32>
    %c0_35 = arith.constant 0 : index
    %c0_36 = arith.constant 0 : index
    %110 = vector.load %arg5[%c0_35, %c0_36] : memref<1x128xf32, #tpu.memory_space<vmem>>, vector<1x128xf32>
    %111 = vector.broadcast %110 : vector<1x128xf32> to vector<8x128xf32>
    %112 = arith.addf %109, %111 : vector<8x128xf32>
    %113 = arith.mulf %99, %112 : vector<8x128xf32>
    %114 = arith.addf %108, %113 : vector<8x128xf32>
    %115 = math.tanh %114 : vector<8x128xf32>
    %cst_37 = arith.constant 1.000000e+00 : f32
    %116 = vector.broadcast %cst_37 : f32 to vector<8x128xf32>
    %117 = arith.subf %116, %107 : vector<8x128xf32>
    %118 = arith.mulf %117, %115 : vector<8x128xf32>
    %119 = arith.mulf %107, %85 : vector<8x128xf32>
    %120 = arith.addf %118, %119 : vector<8x128xf32>
    %c8_i32_38 = arith.constant 8 : i32
    %121 = arith.muli %arg0, %c8_i32_38 : i32
    %c2_i32 = arith.constant 2 : i32
    %122 = arith.addi %121, %c2_i32 : i32
    %c16_i32_39 = arith.constant 16 : i32
    %123 = arith.cmpi slt, %122, %c16_i32_39 : i32
    %124 = arith.select %123, %120, %85 : vector<8x128xf32>
    %125 = arith.truncf %124 : vector<8x128xf32> to vector<8x128xbf16>
    %c16 = arith.constant 16 : index
    %c0_40 = arith.constant 0 : index
    %126 = vector.load %arg14[%c16, %c0_40] : memref<64x128xbf16, #tpu.memory_space<vmem>>, vector<8x128xbf16>
    tpu.vector_store %arg14[%c16, %c0_40], %125 {strides = array<i32>} : memref<64x128xbf16, #tpu.memory_space<vmem>>, vector<8x128xbf16>,
    %127 = vector.extract_strided_slice %8 {offsets = [24, 0], sizes = [8, 384], strides = [1, 1]} : vector<64x384xf32> to vector<8x384xf32>
    %128 = arith.truncf %124 : vector<8x128xf32> to vector<8x128xbf16>
    %c0_41 = arith.constant 0 : index
    %c0_42 = arith.constant 0 : index
    %129 = vector.load %arg3[%c0_41, %c0_42] : memref<128x384xbf16, #tpu.memory_space<vmem>>, vector<128x384xbf16>
    %cst_43 = arith.constant dense<0.000000e+00> : vector<8x384xf32>
    %130 = tpu.matmul %128, %129, %cst_43 {dimension_numbers = #tpu.dot_dimension_numbers<[1], [0], [0], [1], [0, 0, 1, 1], [], []>} : vector<8x128xbf16>, vector<128x384xbf16>, vector<8x384xf32> -> vector<8x384xf32>
    %131 = vector.extract_strided_slice %127 {offsets = [0, 0], sizes = [8, 128], strides = [1, 1]} : vector<8x384xf32> to vector<8x128xf32>
    %132 = vector.extract_strided_slice %130 {offsets = [0, 0], sizes = [8, 128], strides = [1, 1]} : vector<8x384xf32> to vector<8x128xf32>
    %133 = arith.addf %131, %132 : vector<8x128xf32>
    %134 = arith.negf %133 : vector<8x128xf32>
    %135 = math.exp %134 : vector<8x128xf32>
    %cst_44 = arith.constant 1.000000e+00 : f32
    %136 = vector.broadcast %cst_44 : f32 to vector<8x128xf32>
    %137 = arith.addf %136, %135 : vector<8x128xf32>
    %138 = arith.divf %136, %137 : vector<8x128xf32>
    %139 = vector.extract_strided_slice %127 {offsets = [0, 128], sizes = [8, 128], strides = [1, 1]} : vector<8x384xf32> to vector<8x128xf32>
    %140 = vector.extract_strided_slice %130 {offsets = [0, 128], sizes = [8, 128], strides = [1, 1]} : vector<8x384xf32> to vector<8x128xf32>
    %141 = arith.addf %139, %140 : vector<8x128xf32>
    %142 = arith.negf %141 : vector<8x128xf32>
    %143 = math.exp %142 : vector<8x128xf32>
    %cst_45 = arith.constant 1.000000e+00 : f32
    %144 = vector.broadcast %cst_45 : f32 to vector<8x128xf32>
    %145 = arith.addf %144, %143 : vector<8x128xf32>
    %146 = arith.divf %144, %145 : vector<8x128xf32>
    %147 = vector.extract_strided_slice %127 {offsets = [0, 256], sizes = [8, 128], strides = [1, 1]} : vector<8x384xf32> to vector<8x128xf32>
    %148 = vector.extract_strided_slice %130 {offsets = [0, 256], sizes = [8, 128], strides = [1, 1]} : vector<8x384xf32> to vector<8x128xf32>
    %c0_46 = arith.constant 0 : index
    %c0_47 = arith.constant 0 : index
    %149 = vector.load %arg5[%c0_46, %c0_47] : memref<1x128xf32, #tpu.memory_space<vmem>>, vector<1x128xf32>
    %150 = vector.broadcast %149 : vector<1x128xf32> to vector<8x128xf32>
    %151 = arith.addf %148, %150 : vector<8x128xf32>
    %152 = arith.mulf %138, %151 : vector<8x128xf32>
    %153 = arith.addf %147, %152 : vector<8x128xf32>
    %154 = math.tanh %153 : vector<8x128xf32>
    %cst_48 = arith.constant 1.000000e+00 : f32
    %155 = vector.broadcast %cst_48 : f32 to vector<8x128xf32>
    %156 = arith.subf %155, %146 : vector<8x128xf32>
    %157 = arith.mulf %156, %154 : vector<8x128xf32>
    %158 = arith.mulf %146, %124 : vector<8x128xf32>
    %159 = arith.addf %157, %158 : vector<8x128xf32>
    %c8_i32_49 = arith.constant 8 : i32
    %160 = arith.muli %arg0, %c8_i32_49 : i32
    %c3_i32 = arith.constant 3 : i32
    %161 = arith.addi %160, %c3_i32 : i32
    %c16_i32_50 = arith.constant 16 : i32
    %162 = arith.cmpi slt, %161, %c16_i32_50 : i32
    %163 = arith.select %162, %159, %124 : vector<8x128xf32>
    %164 = arith.truncf %163 : vector<8x128xf32> to vector<8x128xbf16>
    %c24 = arith.constant 24 : index
    %c0_51 = arith.constant 0 : index
    %165 = vector.load %arg14[%c24, %c0_51] : memref<64x128xbf16, #tpu.memory_space<vmem>>, vector<8x128xbf16>
    tpu.vector_store %arg14[%c24, %c0_51], %164 {strides = array<i32>} : memref<64x128xbf16, #tpu.memory_space<vmem>>, vector<8x128xbf16>,
    %166 = vector.extract_strided_slice %8 {offsets = [32, 0], sizes = [8, 384], strides = [1, 1]} : vector<64x384xf32> to vector<8x384xf32>
    %167 = arith.truncf %163 : vector<8x128xf32> to vector<8x128xbf16>
    %c0_52 = arith.constant 0 : index
    %c0_53 = arith.constant 0 : index
    %168 = vector.load %arg3[%c0_52, %c0_53] : memref<128x384xbf16, #tpu.memory_space<vmem>>, vector<128x384xbf16>
    %cst_54 = arith.constant dense<0.000000e+00> : vector<8x384xf32>
    %169 = tpu.matmul %167, %168, %cst_54 {dimension_numbers = #tpu.dot_dimension_numbers<[1], [0], [0], [1], [0, 0, 1, 1], [], []>} : vector<8x128xbf16>, vector<128x384xbf16>, vector<8x384xf32> -> vector<8x384xf32>
    %170 = vector.extract_strided_slice %166 {offsets = [0, 0], sizes = [8, 128], strides = [1, 1]} : vector<8x384xf32> to vector<8x128xf32>
    %171 = vector.extract_strided_slice %169 {offsets = [0, 0], sizes = [8, 128], strides = [1, 1]} : vector<8x384xf32> to vector<8x128xf32>
    %172 = arith.addf %170, %171 : vector<8x128xf32>
    %173 = arith.negf %172 : vector<8x128xf32>
    %174 = math.exp %173 : vector<8x128xf32>
    %cst_55 = arith.constant 1.000000e+00 : f32
    %175 = vector.broadcast %cst_55 : f32 to vector<8x128xf32>
    %176 = arith.addf %175, %174 : vector<8x128xf32>
    %177 = arith.divf %175, %176 : vector<8x128xf32>
    %178 = vector.extract_strided_slice %166 {offsets = [0, 128], sizes = [8, 128], strides = [1, 1]} : vector<8x384xf32> to vector<8x128xf32>
    %179 = vector.extract_strided_slice %169 {offsets = [0, 128], sizes = [8, 128], strides = [1, 1]} : vector<8x384xf32> to vector<8x128xf32>
    %180 = arith.addf %178, %179 : vector<8x128xf32>
    %181 = arith.negf %180 : vector<8x128xf32>
    %182 = math.exp %181 : vector<8x128xf32>
    %cst_56 = arith.constant 1.000000e+00 : f32
    %183 = vector.broadcast %cst_56 : f32 to vector<8x128xf32>
    %184 = arith.addf %183, %182 : vector<8x128xf32>
    %185 = arith.divf %183, %184 : vector<8x128xf32>
    %186 = vector.extract_strided_slice %166 {offsets = [0, 256], sizes = [8, 128], strides = [1, 1]} : vector<8x384xf32> to vector<8x128xf32>
    %187 = vector.extract_strided_slice %169 {offsets = [0, 256], sizes = [8, 128], strides = [1, 1]} : vector<8x384xf32> to vector<8x128xf32>
    %c0_57 = arith.constant 0 : index
    %c0_58 = arith.constant 0 : index
    %188 = vector.load %arg5[%c0_57, %c0_58] : memref<1x128xf32, #tpu.memory_space<vmem>>, vector<1x128xf32>
    %189 = vector.broadcast %188 : vector<1x128xf32> to vector<8x128xf32>
    %190 = arith.addf %187, %189 : vector<8x128xf32>
    %191 = arith.mulf %177, %190 : vector<8x128xf32>
    %192 = arith.addf %186, %191 : vector<8x128xf32>
    %193 = math.tanh %192 : vector<8x128xf32>
    %cst_59 = arith.constant 1.000000e+00 : f32
    %194 = vector.broadcast %cst_59 : f32 to vector<8x128xf32>
    %195 = arith.subf %194, %185 : vector<8x128xf32>
    %196 = arith.mulf %195, %193 : vector<8x128xf32>
    %197 = arith.mulf %185, %163 : vector<8x128xf32>
    %198 = arith.addf %196, %197 : vector<8x128xf32>
    %c8_i32_60 = arith.constant 8 : i32
    %199 = arith.muli %arg0, %c8_i32_60 : i32
    %c4_i32 = arith.constant 4 : i32
    %200 = arith.addi %199, %c4_i32 : i32
    %c16_i32_61 = arith.constant 16 : i32
    %201 = arith.cmpi slt, %200, %c16_i32_61 : i32
    %202 = arith.select %201, %198, %163 : vector<8x128xf32>
    %203 = arith.truncf %202 : vector<8x128xf32> to vector<8x128xbf16>
    %c32 = arith.constant 32 : index
    %c0_62 = arith.constant 0 : index
    %204 = vector.load %arg14[%c32, %c0_62] : memref<64x128xbf16, #tpu.memory_space<vmem>>, vector<8x128xbf16>
    tpu.vector_store %arg14[%c32, %c0_62], %203 {strides = array<i32>} : memref<64x128xbf16, #tpu.memory_space<vmem>>, vector<8x128xbf16>,
    %205 = vector.extract_strided_slice %8 {offsets = [40, 0], sizes = [8, 384], strides = [1, 1]} : vector<64x384xf32> to vector<8x384xf32>
    %206 = arith.truncf %202 : vector<8x128xf32> to vector<8x128xbf16>
    %c0_63 = arith.constant 0 : index
    %c0_64 = arith.constant 0 : index
    %207 = vector.load %arg3[%c0_63, %c0_64] : memref<128x384xbf16, #tpu.memory_space<vmem>>, vector<128x384xbf16>
    %cst_65 = arith.constant dense<0.000000e+00> : vector<8x384xf32>
    %208 = tpu.matmul %206, %207, %cst_65 {dimension_numbers = #tpu.dot_dimension_numbers<[1], [0], [0], [1], [0, 0, 1, 1], [], []>} : vector<8x128xbf16>, vector<128x384xbf16>, vector<8x384xf32> -> vector<8x384xf32>
    %209 = vector.extract_strided_slice %205 {offsets = [0, 0], sizes = [8, 128], strides = [1, 1]} : vector<8x384xf32> to vector<8x128xf32>
    %210 = vector.extract_strided_slice %208 {offsets = [0, 0], sizes = [8, 128], strides = [1, 1]} : vector<8x384xf32> to vector<8x128xf32>
    %211 = arith.addf %209, %210 : vector<8x128xf32>
    %212 = arith.negf %211 : vector<8x128xf32>
    %213 = math.exp %212 : vector<8x128xf32>
    %cst_66 = arith.constant 1.000000e+00 : f32
    %214 = vector.broadcast %cst_66 : f32 to vector<8x128xf32>
    %215 = arith.addf %214, %213 : vector<8x128xf32>
    %216 = arith.divf %214, %215 : vector<8x128xf32>
    %217 = vector.extract_strided_slice %205 {offsets = [0, 128], sizes = [8, 128], strides = [1, 1]} : vector<8x384xf32> to vector<8x128xf32>
    %218 = vector.extract_strided_slice %208 {offsets = [0, 128], sizes = [8, 128], strides = [1, 1]} : vector<8x384xf32> to vector<8x128xf32>
    %219 = arith.addf %217, %218 : vector<8x128xf32>
    %220 = arith.negf %219 : vector<8x128xf32>
    %221 = math.exp %220 : vector<8x128xf32>
    %cst_67 = arith.constant 1.000000e+00 : f32
    %222 = vector.broadcast %cst_67 : f32 to vector<8x128xf32>
    %223 = arith.addf %222, %221 : vector<8x128xf32>
    %224 = arith.divf %222, %223 : vector<8x128xf32>
    %225 = vector.extract_strided_slice %205 {offsets = [0, 256], sizes = [8, 128], strides = [1, 1]} : vector<8x384xf32> to vector<8x128xf32>
    %226 = vector.extract_strided_slice %208 {offsets = [0, 256], sizes = [8, 128], strides = [1, 1]} : vector<8x384xf32> to vector<8x128xf32>
    %c0_68 = arith.constant 0 : index
    %c0_69 = arith.constant 0 : index
    %227 = vector.load %arg5[%c0_68, %c0_69] : memref<1x128xf32, #tpu.memory_space<vmem>>, vector<1x128xf32>
    %228 = vector.broadcast %227 : vector<1x128xf32> to vector<8x128xf32>
    %229 = arith.addf %226, %228 : vector<8x128xf32>
    %230 = arith.mulf %216, %229 : vector<8x128xf32>
    %231 = arith.addf %225, %230 : vector<8x128xf32>
    %232 = math.tanh %231 : vector<8x128xf32>
    %cst_70 = arith.constant 1.000000e+00 : f32
    %233 = vector.broadcast %cst_70 : f32 to vector<8x128xf32>
    %234 = arith.subf %233, %224 : vector<8x128xf32>
    %235 = arith.mulf %234, %232 : vector<8x128xf32>
    %236 = arith.mulf %224, %202 : vector<8x128xf32>
    %237 = arith.addf %235, %236 : vector<8x128xf32>
    %c8_i32_71 = arith.constant 8 : i32
    %238 = arith.muli %arg0, %c8_i32_71 : i32
    %c5_i32 = arith.constant 5 : i32
    %239 = arith.addi %238, %c5_i32 : i32
    %c16_i32_72 = arith.constant 16 : i32
    %240 = arith.cmpi slt, %239, %c16_i32_72 : i32
    %241 = arith.select %240, %237, %202 : vector<8x128xf32>
    %242 = arith.truncf %241 : vector<8x128xf32> to vector<8x128xbf16>
    %c40 = arith.constant 40 : index
    %c0_73 = arith.constant 0 : index
    %243 = vector.load %arg14[%c40, %c0_73] : memref<64x128xbf16, #tpu.memory_space<vmem>>, vector<8x128xbf16>
    tpu.vector_store %arg14[%c40, %c0_73], %242 {strides = array<i32>} : memref<64x128xbf16, #tpu.memory_space<vmem>>, vector<8x128xbf16>,
    %244 = vector.extract_strided_slice %8 {offsets = [48, 0], sizes = [8, 384], strides = [1, 1]} : vector<64x384xf32> to vector<8x384xf32>
    %245 = arith.truncf %241 : vector<8x128xf32> to vector<8x128xbf16>
    %c0_74 = arith.constant 0 : index
    %c0_75 = arith.constant 0 : index
    %246 = vector.load %arg3[%c0_74, %c0_75] : memref<128x384xbf16, #tpu.memory_space<vmem>>, vector<128x384xbf16>
    %cst_76 = arith.constant dense<0.000000e+00> : vector<8x384xf32>
    %247 = tpu.matmul %245, %246, %cst_76 {dimension_numbers = #tpu.dot_dimension_numbers<[1], [0], [0], [1], [0, 0, 1, 1], [], []>} : vector<8x128xbf16>, vector<128x384xbf16>, vector<8x384xf32> -> vector<8x384xf32>
    %248 = vector.extract_strided_slice %244 {offsets = [0, 0], sizes = [8, 128], strides = [1, 1]} : vector<8x384xf32> to vector<8x128xf32>
    %249 = vector.extract_strided_slice %247 {offsets = [0, 0], sizes = [8, 128], strides = [1, 1]} : vector<8x384xf32> to vector<8x128xf32>
    %250 = arith.addf %248, %249 : vector<8x128xf32>
    %251 = arith.negf %250 : vector<8x128xf32>
    %252 = math.exp %251 : vector<8x128xf32>
    %cst_77 = arith.constant 1.000000e+00 : f32
    %253 = vector.broadcast %cst_77 : f32 to vector<8x128xf32>
    %254 = arith.addf %253, %252 : vector<8x128xf32>
    %255 = arith.divf %253, %254 : vector<8x128xf32>
    %256 = vector.extract_strided_slice %244 {offsets = [0, 128], sizes = [8, 128], strides = [1, 1]} : vector<8x384xf32> to vector<8x128xf32>
    %257 = vector.extract_strided_slice %247 {offsets = [0, 128], sizes = [8, 128], strides = [1, 1]} : vector<8x384xf32> to vector<8x128xf32>
    %258 = arith.addf %256, %257 : vector<8x128xf32>
    %259 = arith.negf %258 : vector<8x128xf32>
    %260 = math.exp %259 : vector<8x128xf32>
    %cst_78 = arith.constant 1.000000e+00 : f32
    %261 = vector.broadcast %cst_78 : f32 to vector<8x128xf32>
    %262 = arith.addf %261, %260 : vector<8x128xf32>
    %263 = arith.divf %261, %262 : vector<8x128xf32>
    %264 = vector.extract_strided_slice %244 {offsets = [0, 256], sizes = [8, 128], strides = [1, 1]} : vector<8x384xf32> to vector<8x128xf32>
    %265 = vector.extract_strided_slice %247 {offsets = [0, 256], sizes = [8, 128], strides = [1, 1]} : vector<8x384xf32> to vector<8x128xf32>
    %c0_79 = arith.constant 0 : index
    %c0_80 = arith.constant 0 : index
    %266 = vector.load %arg5[%c0_79, %c0_80] : memref<1x128xf32, #tpu.memory_space<vmem>>, vector<1x128xf32>
    %267 = vector.broadcast %266 : vector<1x128xf32> to vector<8x128xf32>
    %268 = arith.addf %265, %267 : vector<8x128xf32>
    %269 = arith.mulf %255, %268 : vector<8x128xf32>
    %270 = arith.addf %264, %269 : vector<8x128xf32>
    %271 = math.tanh %270 : vector<8x128xf32>
    %cst_81 = arith.constant 1.000000e+00 : f32
    %272 = vector.broadcast %cst_81 : f32 to vector<8x128xf32>
    %273 = arith.subf %272, %263 : vector<8x128xf32>
    %274 = arith.mulf %273, %271 : vector<8x128xf32>
    %275 = arith.mulf %263, %241 : vector<8x128xf32>
    %276 = arith.addf %274, %275 : vector<8x128xf32>
    %c8_i32_82 = arith.constant 8 : i32
    %277 = arith.muli %arg0, %c8_i32_82 : i32
    %c6_i32 = arith.constant 6 : i32
    %278 = arith.addi %277, %c6_i32 : i32
    %c16_i32_83 = arith.constant 16 : i32
    %279 = arith.cmpi slt, %278, %c16_i32_83 : i32
    %280 = arith.select %279, %276, %241 : vector<8x128xf32>
    %281 = arith.truncf %280 : vector<8x128xf32> to vector<8x128xbf16>
    %c48 = arith.constant 48 : index
    %c0_84 = arith.constant 0 : index
    %282 = vector.load %arg14[%c48, %c0_84] : memref<64x128xbf16, #tpu.memory_space<vmem>>, vector<8x128xbf16>
    tpu.vector_store %arg14[%c48, %c0_84], %281 {strides = array<i32>} : memref<64x128xbf16, #tpu.memory_space<vmem>>, vector<8x128xbf16>,
    %283 = vector.extract_strided_slice %8 {offsets = [56, 0], sizes = [8, 384], strides = [1, 1]} : vector<64x384xf32> to vector<8x384xf32>
    %284 = arith.truncf %280 : vector<8x128xf32> to vector<8x128xbf16>
    %c0_85 = arith.constant 0 : index
    %c0_86 = arith.constant 0 : index
    %285 = vector.load %arg3[%c0_85, %c0_86] : memref<128x384xbf16, #tpu.memory_space<vmem>>, vector<128x384xbf16>
    %cst_87 = arith.constant dense<0.000000e+00> : vector<8x384xf32>
    %286 = tpu.matmul %284, %285, %cst_87 {dimension_numbers = #tpu.dot_dimension_numbers<[1], [0], [0], [1], [0, 0, 1, 1], [], []>} : vector<8x128xbf16>, vector<128x384xbf16>, vector<8x384xf32> -> vector<8x384xf32>
    %287 = vector.extract_strided_slice %283 {offsets = [0, 0], sizes = [8, 128], strides = [1, 1]} : vector<8x384xf32> to vector<8x128xf32>
    %288 = vector.extract_strided_slice %286 {offsets = [0, 0], sizes = [8, 128], strides = [1, 1]} : vector<8x384xf32> to vector<8x128xf32>
    %289 = arith.addf %287, %288 : vector<8x128xf32>
    %290 = arith.negf %289 : vector<8x128xf32>
    %291 = math.exp %290 : vector<8x128xf32>
    %cst_88 = arith.constant 1.000000e+00 : f32
    %292 = vector.broadcast %cst_88 : f32 to vector<8x128xf32>
    %293 = arith.addf %292, %291 : vector<8x128xf32>
    %294 = arith.divf %292, %293 : vector<8x128xf32>
    %295 = vector.extract_strided_slice %283 {offsets = [0, 128], sizes = [8, 128], strides = [1, 1]} : vector<8x384xf32> to vector<8x128xf32>
    %296 = vector.extract_strided_slice %286 {offsets = [0, 128], sizes = [8, 128], strides = [1, 1]} : vector<8x384xf32> to vector<8x128xf32>
    %297 = arith.addf %295, %296 : vector<8x128xf32>
    %298 = arith.negf %297 : vector<8x128xf32>
    %299 = math.exp %298 : vector<8x128xf32>
    %cst_89 = arith.constant 1.000000e+00 : f32
    %300 = vector.broadcast %cst_89 : f32 to vector<8x128xf32>
    %301 = arith.addf %300, %299 : vector<8x128xf32>
    %302 = arith.divf %300, %301 : vector<8x128xf32>
    %303 = vector.extract_strided_slice %283 {offsets = [0, 256], sizes = [8, 128], strides = [1, 1]} : vector<8x384xf32> to vector<8x128xf32>
    %304 = vector.extract_strided_slice %286 {offsets = [0, 256], sizes = [8, 128], strides = [1, 1]} : vector<8x384xf32> to vector<8x128xf32>
    %c0_90 = arith.constant 0 : index
    %c0_91 = arith.constant 0 : index
    %305 = vector.load %arg5[%c0_90, %c0_91] : memref<1x128xf32, #tpu.memory_space<vmem>>, vector<1x128xf32>
    %306 = vector.broadcast %305 : vector<1x128xf32> to vector<8x128xf32>
    %307 = arith.addf %304, %306 : vector<8x128xf32>
    %308 = arith.mulf %294, %307 : vector<8x128xf32>
    %309 = arith.addf %303, %308 : vector<8x128xf32>
    %310 = math.tanh %309 : vector<8x128xf32>
    %cst_92 = arith.constant 1.000000e+00 : f32
    %311 = vector.broadcast %cst_92 : f32 to vector<8x128xf32>
    %312 = arith.subf %311, %302 : vector<8x128xf32>
    %313 = arith.mulf %312, %310 : vector<8x128xf32>
    %314 = arith.mulf %302, %280 : vector<8x128xf32>
    %315 = arith.addf %313, %314 : vector<8x128xf32>
    %c8_i32_93 = arith.constant 8 : i32
    %316 = arith.muli %arg0, %c8_i32_93 : i32
    %c7_i32 = arith.constant 7 : i32
    %317 = arith.addi %316, %c7_i32 : i32
    %c16_i32_94 = arith.constant 16 : i32
    %318 = arith.cmpi slt, %317, %c16_i32_94 : i32
    %319 = arith.select %318, %315, %280 : vector<8x128xf32>
    %320 = arith.truncf %319 : vector<8x128xf32> to vector<8x128xbf16>
    %c56 = arith.constant 56 : index
    %c0_95 = arith.constant 0 : index
    %321 = vector.load %arg14[%c56, %c0_95] : memref<64x128xbf16, #tpu.memory_space<vmem>>, vector<8x128xbf16>
    tpu.vector_store %arg14[%c56, %c0_95], %320 {strides = array<i32>} : memref<64x128xbf16, #tpu.memory_space<vmem>>, vector<8x128xbf16>,
    %c0_96 = arith.constant 0 : index
    %c0_97 = arith.constant 0 : index
    %322 = vector.load %arg12[%c0_96, %c0_97] : memref<8x128xf32, #tpu.memory_space<vmem>>, vector<8x128xf32>
    tpu.vector_store %arg12[%c0_96, %c0_97], %319 {strides = array<i32>} : memref<8x128xf32, #tpu.memory_space<vmem>>, vector<8x128xf32>,
    %c0_98 = arith.constant 0 : index
    %c0_99 = arith.constant 0 : index
    %323 = vector.load %arg14[%c0_98, %c0_99] : memref<64x128xbf16, #tpu.memory_space<vmem>>, vector<64x128xbf16>
    %c0_100 = arith.constant 0 : index
    %c0_101 = arith.constant 0 : index
    %324 = vector.load %arg6[%c0_100, %c0_101] : memref<128x384xbf16, #tpu.memory_space<vmem>>, vector<128x384xbf16>
    %cst_102 = arith.constant dense<0.000000e+00> : vector<64x384xf32>
    %325 = tpu.matmul %323, %324, %cst_102 {dimension_numbers = #tpu.dot_dimension_numbers<[1], [0], [0], [1], [0, 0, 1, 1], [], []>} : vector<64x128xbf16>, vector<128x384xbf16>, vector<64x384xf32> -> vector<64x384xf32>
    %c0_103 = arith.constant 0 : index
    %c0_104 = arith.constant 0 : index
    %326 = vector.load %arg8[%c0_103, %c0_104] : memref<1x384xf32, #tpu.memory_space<vmem>>, vector<1x384xf32>
    %327 = vector.broadcast %326 : vector<1x384xf32> to vector<64x384xf32>
    %328 = arith.addf %325, %327 : vector<64x384xf32>
    %c0_105 = arith.constant 0 : index
    %c0_106 = arith.constant 0 : index
    %329 = vector.load %arg13[%c0_105, %c0_106] : memref<8x128xf32, #tpu.memory_space<vmem>>, vector<8x128xf32>
    %330 = vector.extract_strided_slice %328 {offsets = [0, 0], sizes = [8, 384], strides = [1, 1]} : vector<64x384xf32> to vector<8x384xf32>
    %331 = arith.truncf %329 : vector<8x128xf32> to vector<8x128xbf16>
    %c0_107 = arith.constant 0 : index
    %c0_108 = arith.constant 0 : index
    %332 = vector.load %arg7[%c0_107, %c0_108] : memref<128x384xbf16, #tpu.memory_space<vmem>>, vector<128x384xbf16>
    %cst_109 = arith.constant dense<0.000000e+00> : vector<8x384xf32>
    %333 = tpu.matmul %331, %332, %cst_109 {dimension_numbers = #tpu.dot_dimension_numbers<[1], [0], [0], [1], [0, 0, 1, 1], [], []>} : vector<8x128xbf16>, vector<128x384xbf16>, vector<8x384xf32> -> vector<8x384xf32>
    %334 = vector.extract_strided_slice %330 {offsets = [0, 0], sizes = [8, 128], strides = [1, 1]} : vector<8x384xf32> to vector<8x128xf32>
    %335 = vector.extract_strided_slice %333 {offsets = [0, 0], sizes = [8, 128], strides = [1, 1]} : vector<8x384xf32> to vector<8x128xf32>
    %336 = arith.addf %334, %335 : vector<8x128xf32>
    %337 = arith.negf %336 : vector<8x128xf32>
    %338 = math.exp %337 : vector<8x128xf32>
    %cst_110 = arith.constant 1.000000e+00 : f32
    %339 = vector.broadcast %cst_110 : f32 to vector<8x128xf32>
    %340 = arith.addf %339, %338 : vector<8x128xf32>
    %341 = arith.divf %339, %340 : vector<8x128xf32>
    %342 = vector.extract_strided_slice %330 {offsets = [0, 128], sizes = [8, 128], strides = [1, 1]} : vector<8x384xf32> to vector<8x128xf32>
    %343 = vector.extract_strided_slice %333 {offsets = [0, 128], sizes = [8, 128], strides = [1, 1]} : vector<8x384xf32> to vector<8x128xf32>
    %344 = arith.addf %342, %343 : vector<8x128xf32>
    %345 = arith.negf %344 : vector<8x128xf32>
    %346 = math.exp %345 : vector<8x128xf32>
    %cst_111 = arith.constant 1.000000e+00 : f32
    %347 = vector.broadcast %cst_111 : f32 to vector<8x128xf32>
    %348 = arith.addf %347, %346 : vector<8x128xf32>
    %349 = arith.divf %347, %348 : vector<8x128xf32>
    %350 = vector.extract_strided_slice %330 {offsets = [0, 256], sizes = [8, 128], strides = [1, 1]} : vector<8x384xf32> to vector<8x128xf32>
    %351 = vector.extract_strided_slice %333 {offsets = [0, 256], sizes = [8, 128], strides = [1, 1]} : vector<8x384xf32> to vector<8x128xf32>
    %c0_112 = arith.constant 0 : index
    %c0_113 = arith.constant 0 : index
    %352 = vector.load %arg9[%c0_112, %c0_113] : memref<1x128xf32, #tpu.memory_space<vmem>>, vector<1x128xf32>
    %353 = vector.broadcast %352 : vector<1x128xf32> to vector<8x128xf32>
    %354 = arith.addf %351, %353 : vector<8x128xf32>
    %355 = arith.mulf %341, %354 : vector<8x128xf32>
    %356 = arith.addf %350, %355 : vector<8x128xf32>
    %357 = math.tanh %356 : vector<8x128xf32>
    %cst_114 = arith.constant 1.000000e+00 : f32
    %358 = vector.broadcast %cst_114 : f32 to vector<8x128xf32>
    %359 = arith.subf %358, %349 : vector<8x128xf32>
    %360 = arith.mulf %359, %357 : vector<8x128xf32>
    %361 = arith.mulf %349, %329 : vector<8x128xf32>
    %362 = arith.addf %360, %361 : vector<8x128xf32>
    %c8_i32_115 = arith.constant 8 : i32
    %363 = arith.muli %arg0, %c8_i32_115 : i32
    %c0_i32_116 = arith.constant 0 : i32
    %364 = arith.addi %363, %c0_i32_116 : i32
    %c16_i32_117 = arith.constant 16 : i32
    %365 = arith.cmpi slt, %364, %c16_i32_117 : i32
    %366 = arith.select %365, %362, %329 : vector<8x128xf32>
    %367 = vector.extract_strided_slice %328 {offsets = [8, 0], sizes = [8, 384], strides = [1, 1]} : vector<64x384xf32> to vector<8x384xf32>
    %368 = arith.truncf %366 : vector<8x128xf32> to vector<8x128xbf16>
    %c0_118 = arith.constant 0 : index
    %c0_119 = arith.constant 0 : index
    %369 = vector.load %arg7[%c0_118, %c0_119] : memref<128x384xbf16, #tpu.memory_space<vmem>>, vector<128x384xbf16>
    %cst_120 = arith.constant dense<0.000000e+00> : vector<8x384xf32>
    %370 = tpu.matmul %368, %369, %cst_120 {dimension_numbers = #tpu.dot_dimension_numbers<[1], [0], [0], [1], [0, 0, 1, 1], [], []>} : vector<8x128xbf16>, vector<128x384xbf16>, vector<8x384xf32> -> vector<8x384xf32>
    %371 = vector.extract_strided_slice %367 {offsets = [0, 0], sizes = [8, 128], strides = [1, 1]} : vector<8x384xf32> to vector<8x128xf32>
    %372 = vector.extract_strided_slice %370 {offsets = [0, 0], sizes = [8, 128], strides = [1, 1]} : vector<8x384xf32> to vector<8x128xf32>
    %373 = arith.addf %371, %372 : vector<8x128xf32>
    %374 = arith.negf %373 : vector<8x128xf32>
    %375 = math.exp %374 : vector<8x128xf32>
    %cst_121 = arith.constant 1.000000e+00 : f32
    %376 = vector.broadcast %cst_121 : f32 to vector<8x128xf32>
    %377 = arith.addf %376, %375 : vector<8x128xf32>
    %378 = arith.divf %376, %377 : vector<8x128xf32>
    %379 = vector.extract_strided_slice %367 {offsets = [0, 128], sizes = [8, 128], strides = [1, 1]} : vector<8x384xf32> to vector<8x128xf32>
    %380 = vector.extract_strided_slice %370 {offsets = [0, 128], sizes = [8, 128], strides = [1, 1]} : vector<8x384xf32> to vector<8x128xf32>
    %381 = arith.addf %379, %380 : vector<8x128xf32>
    %382 = arith.negf %381 : vector<8x128xf32>
    %383 = math.exp %382 : vector<8x128xf32>
    %cst_122 = arith.constant 1.000000e+00 : f32
    %384 = vector.broadcast %cst_122 : f32 to vector<8x128xf32>
    %385 = arith.addf %384, %383 : vector<8x128xf32>
    %386 = arith.divf %384, %385 : vector<8x128xf32>
    %387 = vector.extract_strided_slice %367 {offsets = [0, 256], sizes = [8, 128], strides = [1, 1]} : vector<8x384xf32> to vector<8x128xf32>
    %388 = vector.extract_strided_slice %370 {offsets = [0, 256], sizes = [8, 128], strides = [1, 1]} : vector<8x384xf32> to vector<8x128xf32>
    %c0_123 = arith.constant 0 : index
    %c0_124 = arith.constant 0 : index
    %389 = vector.load %arg9[%c0_123, %c0_124] : memref<1x128xf32, #tpu.memory_space<vmem>>, vector<1x128xf32>
    %390 = vector.broadcast %389 : vector<1x128xf32> to vector<8x128xf32>
    %391 = arith.addf %388, %390 : vector<8x128xf32>
    %392 = arith.mulf %378, %391 : vector<8x128xf32>
    %393 = arith.addf %387, %392 : vector<8x128xf32>
    %394 = math.tanh %393 : vector<8x128xf32>
    %cst_125 = arith.constant 1.000000e+00 : f32
    %395 = vector.broadcast %cst_125 : f32 to vector<8x128xf32>
    %396 = arith.subf %395, %386 : vector<8x128xf32>
    %397 = arith.mulf %396, %394 : vector<8x128xf32>
    %398 = arith.mulf %386, %366 : vector<8x128xf32>
    %399 = arith.addf %397, %398 : vector<8x128xf32>
    %c8_i32_126 = arith.constant 8 : i32
    %400 = arith.muli %arg0, %c8_i32_126 : i32
    %c1_i32_127 = arith.constant 1 : i32
    %401 = arith.addi %400, %c1_i32_127 : i32
    %c16_i32_128 = arith.constant 16 : i32
    %402 = arith.cmpi slt, %401, %c16_i32_128 : i32
    %403 = arith.select %402, %399, %366 : vector<8x128xf32>
    %404 = vector.extract_strided_slice %328 {offsets = [16, 0], sizes = [8, 384], strides = [1, 1]} : vector<64x384xf32> to vector<8x384xf32>
    %405 = arith.truncf %403 : vector<8x128xf32> to vector<8x128xbf16>
    %c0_129 = arith.constant 0 : index
    %c0_130 = arith.constant 0 : index
    %406 = vector.load %arg7[%c0_129, %c0_130] : memref<128x384xbf16, #tpu.memory_space<vmem>>, vector<128x384xbf16>
    %cst_131 = arith.constant dense<0.000000e+00> : vector<8x384xf32>
    %407 = tpu.matmul %405, %406, %cst_131 {dimension_numbers = #tpu.dot_dimension_numbers<[1], [0], [0], [1], [0, 0, 1, 1], [], []>} : vector<8x128xbf16>, vector<128x384xbf16>, vector<8x384xf32> -> vector<8x384xf32>
    %408 = vector.extract_strided_slice %404 {offsets = [0, 0], sizes = [8, 128], strides = [1, 1]} : vector<8x384xf32> to vector<8x128xf32>
    %409 = vector.extract_strided_slice %407 {offsets = [0, 0], sizes = [8, 128], strides = [1, 1]} : vector<8x384xf32> to vector<8x128xf32>
    %410 = arith.addf %408, %409 : vector<8x128xf32>
    %411 = arith.negf %410 : vector<8x128xf32>
    %412 = math.exp %411 : vector<8x128xf32>
    %cst_132 = arith.constant 1.000000e+00 : f32
    %413 = vector.broadcast %cst_132 : f32 to vector<8x128xf32>
    %414 = arith.addf %413, %412 : vector<8x128xf32>
    %415 = arith.divf %413, %414 : vector<8x128xf32>
    %416 = vector.extract_strided_slice %404 {offsets = [0, 128], sizes = [8, 128], strides = [1, 1]} : vector<8x384xf32> to vector<8x128xf32>
    %417 = vector.extract_strided_slice %407 {offsets = [0, 128], sizes = [8, 128], strides = [1, 1]} : vector<8x384xf32> to vector<8x128xf32>
    %418 = arith.addf %416, %417 : vector<8x128xf32>
    %419 = arith.negf %418 : vector<8x128xf32>
    %420 = math.exp %419 : vector<8x128xf32>
    %cst_133 = arith.constant 1.000000e+00 : f32
    %421 = vector.broadcast %cst_133 : f32 to vector<8x128xf32>
    %422 = arith.addf %421, %420 : vector<8x128xf32>
    %423 = arith.divf %421, %422 : vector<8x128xf32>
    %424 = vector.extract_strided_slice %404 {offsets = [0, 256], sizes = [8, 128], strides = [1, 1]} : vector<8x384xf32> to vector<8x128xf32>
    %425 = vector.extract_strided_slice %407 {offsets = [0, 256], sizes = [8, 128], strides = [1, 1]} : vector<8x384xf32> to vector<8x128xf32>
    %c0_134 = arith.constant 0 : index
    %c0_135 = arith.constant 0 : index
    %426 = vector.load %arg9[%c0_134, %c0_135] : memref<1x128xf32, #tpu.memory_space<vmem>>, vector<1x128xf32>
    %427 = vector.broadcast %426 : vector<1x128xf32> to vector<8x128xf32>
    %428 = arith.addf %425, %427 : vector<8x128xf32>
    %429 = arith.mulf %415, %428 : vector<8x128xf32>
    %430 = arith.addf %424, %429 : vector<8x128xf32>
    %431 = math.tanh %430 : vector<8x128xf32>
    %cst_136 = arith.constant 1.000000e+00 : f32
    %432 = vector.broadcast %cst_136 : f32 to vector<8x128xf32>
    %433 = arith.subf %432, %423 : vector<8x128xf32>
    %434 = arith.mulf %433, %431 : vector<8x128xf32>
    %435 = arith.mulf %423, %403 : vector<8x128xf32>
    %436 = arith.addf %434, %435 : vector<8x128xf32>
    %c8_i32_137 = arith.constant 8 : i32
    %437 = arith.muli %arg0, %c8_i32_137 : i32
    %c2_i32_138 = arith.constant 2 : i32
    %438 = arith.addi %437, %c2_i32_138 : i32
    %c16_i32_139 = arith.constant 16 : i32
    %439 = arith.cmpi slt, %438, %c16_i32_139 : i32
    %440 = arith.select %439, %436, %403 : vector<8x128xf32>
    %441 = vector.extract_strided_slice %328 {offsets = [24, 0], sizes = [8, 384], strides = [1, 1]} : vector<64x384xf32> to vector<8x384xf32>
    %442 = arith.truncf %440 : vector<8x128xf32> to vector<8x128xbf16>
    %c0_140 = arith.constant 0 : index
    %c0_141 = arith.constant 0 : index
    %443 = vector.load %arg7[%c0_140, %c0_141] : memref<128x384xbf16, #tpu.memory_space<vmem>>, vector<128x384xbf16>
    %cst_142 = arith.constant dense<0.000000e+00> : vector<8x384xf32>
    %444 = tpu.matmul %442, %443, %cst_142 {dimension_numbers = #tpu.dot_dimension_numbers<[1], [0], [0], [1], [0, 0, 1, 1], [], []>} : vector<8x128xbf16>, vector<128x384xbf16>, vector<8x384xf32> -> vector<8x384xf32>
    %445 = vector.extract_strided_slice %441 {offsets = [0, 0], sizes = [8, 128], strides = [1, 1]} : vector<8x384xf32> to vector<8x128xf32>
    %446 = vector.extract_strided_slice %444 {offsets = [0, 0], sizes = [8, 128], strides = [1, 1]} : vector<8x384xf32> to vector<8x128xf32>
    %447 = arith.addf %445, %446 : vector<8x128xf32>
    %448 = arith.negf %447 : vector<8x128xf32>
    %449 = math.exp %448 : vector<8x128xf32>
    %cst_143 = arith.constant 1.000000e+00 : f32
    %450 = vector.broadcast %cst_143 : f32 to vector<8x128xf32>
    %451 = arith.addf %450, %449 : vector<8x128xf32>
    %452 = arith.divf %450, %451 : vector<8x128xf32>
    %453 = vector.extract_strided_slice %441 {offsets = [0, 128], sizes = [8, 128], strides = [1, 1]} : vector<8x384xf32> to vector<8x128xf32>
    %454 = vector.extract_strided_slice %444 {offsets = [0, 128], sizes = [8, 128], strides = [1, 1]} : vector<8x384xf32> to vector<8x128xf32>
    %455 = arith.addf %453, %454 : vector<8x128xf32>
    %456 = arith.negf %455 : vector<8x128xf32>
    %457 = math.exp %456 : vector<8x128xf32>
    %cst_144 = arith.constant 1.000000e+00 : f32
    %458 = vector.broadcast %cst_144 : f32 to vector<8x128xf32>
    %459 = arith.addf %458, %457 : vector<8x128xf32>
    %460 = arith.divf %458, %459 : vector<8x128xf32>
    %461 = vector.extract_strided_slice %441 {offsets = [0, 256], sizes = [8, 128], strides = [1, 1]} : vector<8x384xf32> to vector<8x128xf32>
    %462 = vector.extract_strided_slice %444 {offsets = [0, 256], sizes = [8, 128], strides = [1, 1]} : vector<8x384xf32> to vector<8x128xf32>
    %c0_145 = arith.constant 0 : index
    %c0_146 = arith.constant 0 : index
    %463 = vector.load %arg9[%c0_145, %c0_146] : memref<1x128xf32, #tpu.memory_space<vmem>>, vector<1x128xf32>
    %464 = vector.broadcast %463 : vector<1x128xf32> to vector<8x128xf32>
    %465 = arith.addf %462, %464 : vector<8x128xf32>
    %466 = arith.mulf %452, %465 : vector<8x128xf32>
    %467 = arith.addf %461, %466 : vector<8x128xf32>
    %468 = math.tanh %467 : vector<8x128xf32>
    %cst_147 = arith.constant 1.000000e+00 : f32
    %469 = vector.broadcast %cst_147 : f32 to vector<8x128xf32>
    %470 = arith.subf %469, %460 : vector<8x128xf32>
    %471 = arith.mulf %470, %468 : vector<8x128xf32>
    %472 = arith.mulf %460, %440 : vector<8x128xf32>
    %473 = arith.addf %471, %472 : vector<8x128xf32>
    %c8_i32_148 = arith.constant 8 : i32
    %474 = arith.muli %arg0, %c8_i32_148 : i32
    %c3_i32_149 = arith.constant 3 : i32
    %475 = arith.addi %474, %c3_i32_149 : i32
    %c16_i32_150 = arith.constant 16 : i32
    %476 = arith.cmpi slt, %475, %c16_i32_150 : i32
    %477 = arith.select %476, %473, %440 : vector<8x128xf32>
    %478 = vector.extract_strided_slice %328 {offsets = [32, 0], sizes = [8, 384], strides = [1, 1]} : vector<64x384xf32> to vector<8x384xf32>
    %479 = arith.truncf %477 : vector<8x128xf32> to vector<8x128xbf16>
    %c0_151 = arith.constant 0 : index
    %c0_152 = arith.constant 0 : index
    %480 = vector.load %arg7[%c0_151, %c0_152] : memref<128x384xbf16, #tpu.memory_space<vmem>>, vector<128x384xbf16>
    %cst_153 = arith.constant dense<0.000000e+00> : vector<8x384xf32>
    %481 = tpu.matmul %479, %480, %cst_153 {dimension_numbers = #tpu.dot_dimension_numbers<[1], [0], [0], [1], [0, 0, 1, 1], [], []>} : vector<8x128xbf16>, vector<128x384xbf16>, vector<8x384xf32> -> vector<8x384xf32>
    %482 = vector.extract_strided_slice %478 {offsets = [0, 0], sizes = [8, 128], strides = [1, 1]} : vector<8x384xf32> to vector<8x128xf32>
    %483 = vector.extract_strided_slice %481 {offsets = [0, 0], sizes = [8, 128], strides = [1, 1]} : vector<8x384xf32> to vector<8x128xf32>
    %484 = arith.addf %482, %483 : vector<8x128xf32>
    %485 = arith.negf %484 : vector<8x128xf32>
    %486 = math.exp %485 : vector<8x128xf32>
    %cst_154 = arith.constant 1.000000e+00 : f32
    %487 = vector.broadcast %cst_154 : f32 to vector<8x128xf32>
    %488 = arith.addf %487, %486 : vector<8x128xf32>
    %489 = arith.divf %487, %488 : vector<8x128xf32>
    %490 = vector.extract_strided_slice %478 {offsets = [0, 128], sizes = [8, 128], strides = [1, 1]} : vector<8x384xf32> to vector<8x128xf32>
    %491 = vector.extract_strided_slice %481 {offsets = [0, 128], sizes = [8, 128], strides = [1, 1]} : vector<8x384xf32> to vector<8x128xf32>
    %492 = arith.addf %490, %491 : vector<8x128xf32>
    %493 = arith.negf %492 : vector<8x128xf32>
    %494 = math.exp %493 : vector<8x128xf32>
    %cst_155 = arith.constant 1.000000e+00 : f32
    %495 = vector.broadcast %cst_155 : f32 to vector<8x128xf32>
    %496 = arith.addf %495, %494 : vector<8x128xf32>
    %497 = arith.divf %495, %496 : vector<8x128xf32>
    %498 = vector.extract_strided_slice %478 {offsets = [0, 256], sizes = [8, 128], strides = [1, 1]} : vector<8x384xf32> to vector<8x128xf32>
    %499 = vector.extract_strided_slice %481 {offsets = [0, 256], sizes = [8, 128], strides = [1, 1]} : vector<8x384xf32> to vector<8x128xf32>
    %c0_156 = arith.constant 0 : index
    %c0_157 = arith.constant 0 : index
    %500 = vector.load %arg9[%c0_156, %c0_157] : memref<1x128xf32, #tpu.memory_space<vmem>>, vector<1x128xf32>
    %501 = vector.broadcast %500 : vector<1x128xf32> to vector<8x128xf32>
    %502 = arith.addf %499, %501 : vector<8x128xf32>
    %503 = arith.mulf %489, %502 : vector<8x128xf32>
    %504 = arith.addf %498, %503 : vector<8x128xf32>
    %505 = math.tanh %504 : vector<8x128xf32>
    %cst_158 = arith.constant 1.000000e+00 : f32
    %506 = vector.broadcast %cst_158 : f32 to vector<8x128xf32>
    %507 = arith.subf %506, %497 : vector<8x128xf32>
    %508 = arith.mulf %507, %505 : vector<8x128xf32>
    %509 = arith.mulf %497, %477 : vector<8x128xf32>
    %510 = arith.addf %508, %509 : vector<8x128xf32>
    %c8_i32_159 = arith.constant 8 : i32
    %511 = arith.muli %arg0, %c8_i32_159 : i32
    %c4_i32_160 = arith.constant 4 : i32
    %512 = arith.addi %511, %c4_i32_160 : i32
    %c16_i32_161 = arith.constant 16 : i32
    %513 = arith.cmpi slt, %512, %c16_i32_161 : i32
    %514 = arith.select %513, %510, %477 : vector<8x128xf32>
    %515 = vector.extract_strided_slice %328 {offsets = [40, 0], sizes = [8, 384], strides = [1, 1]} : vector<64x384xf32> to vector<8x384xf32>
    %516 = arith.truncf %514 : vector<8x128xf32> to vector<8x128xbf16>
    %c0_162 = arith.constant 0 : index
    %c0_163 = arith.constant 0 : index
    %517 = vector.load %arg7[%c0_162, %c0_163] : memref<128x384xbf16, #tpu.memory_space<vmem>>, vector<128x384xbf16>
    %cst_164 = arith.constant dense<0.000000e+00> : vector<8x384xf32>
    %518 = tpu.matmul %516, %517, %cst_164 {dimension_numbers = #tpu.dot_dimension_numbers<[1], [0], [0], [1], [0, 0, 1, 1], [], []>} : vector<8x128xbf16>, vector<128x384xbf16>, vector<8x384xf32> -> vector<8x384xf32>
    %519 = vector.extract_strided_slice %515 {offsets = [0, 0], sizes = [8, 128], strides = [1, 1]} : vector<8x384xf32> to vector<8x128xf32>
    %520 = vector.extract_strided_slice %518 {offsets = [0, 0], sizes = [8, 128], strides = [1, 1]} : vector<8x384xf32> to vector<8x128xf32>
    %521 = arith.addf %519, %520 : vector<8x128xf32>
    %522 = arith.negf %521 : vector<8x128xf32>
    %523 = math.exp %522 : vector<8x128xf32>
    %cst_165 = arith.constant 1.000000e+00 : f32
    %524 = vector.broadcast %cst_165 : f32 to vector<8x128xf32>
    %525 = arith.addf %524, %523 : vector<8x128xf32>
    %526 = arith.divf %524, %525 : vector<8x128xf32>
    %527 = vector.extract_strided_slice %515 {offsets = [0, 128], sizes = [8, 128], strides = [1, 1]} : vector<8x384xf32> to vector<8x128xf32>
    %528 = vector.extract_strided_slice %518 {offsets = [0, 128], sizes = [8, 128], strides = [1, 1]} : vector<8x384xf32> to vector<8x128xf32>
    %529 = arith.addf %527, %528 : vector<8x128xf32>
    %530 = arith.negf %529 : vector<8x128xf32>
    %531 = math.exp %530 : vector<8x128xf32>
    %cst_166 = arith.constant 1.000000e+00 : f32
    %532 = vector.broadcast %cst_166 : f32 to vector<8x128xf32>
    %533 = arith.addf %532, %531 : vector<8x128xf32>
    %534 = arith.divf %532, %533 : vector<8x128xf32>
    %535 = vector.extract_strided_slice %515 {offsets = [0, 256], sizes = [8, 128], strides = [1, 1]} : vector<8x384xf32> to vector<8x128xf32>
    %536 = vector.extract_strided_slice %518 {offsets = [0, 256], sizes = [8, 128], strides = [1, 1]} : vector<8x384xf32> to vector<8x128xf32>
    %c0_167 = arith.constant 0 : index
    %c0_168 = arith.constant 0 : index
    %537 = vector.load %arg9[%c0_167, %c0_168] : memref<1x128xf32, #tpu.memory_space<vmem>>, vector<1x128xf32>
    %538 = vector.broadcast %537 : vector<1x128xf32> to vector<8x128xf32>
    %539 = arith.addf %536, %538 : vector<8x128xf32>
    %540 = arith.mulf %526, %539 : vector<8x128xf32>
    %541 = arith.addf %535, %540 : vector<8x128xf32>
    %542 = math.tanh %541 : vector<8x128xf32>
    %cst_169 = arith.constant 1.000000e+00 : f32
    %543 = vector.broadcast %cst_169 : f32 to vector<8x128xf32>
    %544 = arith.subf %543, %534 : vector<8x128xf32>
    %545 = arith.mulf %544, %542 : vector<8x128xf32>
    %546 = arith.mulf %534, %514 : vector<8x128xf32>
    %547 = arith.addf %545, %546 : vector<8x128xf32>
    %c8_i32_170 = arith.constant 8 : i32
    %548 = arith.muli %arg0, %c8_i32_170 : i32
    %c5_i32_171 = arith.constant 5 : i32
    %549 = arith.addi %548, %c5_i32_171 : i32
    %c16_i32_172 = arith.constant 16 : i32
    %550 = arith.cmpi slt, %549, %c16_i32_172 : i32
    %551 = arith.select %550, %547, %514 : vector<8x128xf32>
    %552 = vector.extract_strided_slice %328 {offsets = [48, 0], sizes = [8, 384], strides = [1, 1]} : vector<64x384xf32> to vector<8x384xf32>
    %553 = arith.truncf %551 : vector<8x128xf32> to vector<8x128xbf16>
    %c0_173 = arith.constant 0 : index
    %c0_174 = arith.constant 0 : index
    %554 = vector.load %arg7[%c0_173, %c0_174] : memref<128x384xbf16, #tpu.memory_space<vmem>>, vector<128x384xbf16>
    %cst_175 = arith.constant dense<0.000000e+00> : vector<8x384xf32>
    %555 = tpu.matmul %553, %554, %cst_175 {dimension_numbers = #tpu.dot_dimension_numbers<[1], [0], [0], [1], [0, 0, 1, 1], [], []>} : vector<8x128xbf16>, vector<128x384xbf16>, vector<8x384xf32> -> vector<8x384xf32>
    %556 = vector.extract_strided_slice %552 {offsets = [0, 0], sizes = [8, 128], strides = [1, 1]} : vector<8x384xf32> to vector<8x128xf32>
    %557 = vector.extract_strided_slice %555 {offsets = [0, 0], sizes = [8, 128], strides = [1, 1]} : vector<8x384xf32> to vector<8x128xf32>
    %558 = arith.addf %556, %557 : vector<8x128xf32>
    %559 = arith.negf %558 : vector<8x128xf32>
    %560 = math.exp %559 : vector<8x128xf32>
    %cst_176 = arith.constant 1.000000e+00 : f32
    %561 = vector.broadcast %cst_176 : f32 to vector<8x128xf32>
    %562 = arith.addf %561, %560 : vector<8x128xf32>
    %563 = arith.divf %561, %562 : vector<8x128xf32>
    %564 = vector.extract_strided_slice %552 {offsets = [0, 128], sizes = [8, 128], strides = [1, 1]} : vector<8x384xf32> to vector<8x128xf32>
    %565 = vector.extract_strided_slice %555 {offsets = [0, 128], sizes = [8, 128], strides = [1, 1]} : vector<8x384xf32> to vector<8x128xf32>
    %566 = arith.addf %564, %565 : vector<8x128xf32>
    %567 = arith.negf %566 : vector<8x128xf32>
    %568 = math.exp %567 : vector<8x128xf32>
    %cst_177 = arith.constant 1.000000e+00 : f32
    %569 = vector.broadcast %cst_177 : f32 to vector<8x128xf32>
    %570 = arith.addf %569, %568 : vector<8x128xf32>
    %571 = arith.divf %569, %570 : vector<8x128xf32>
    %572 = vector.extract_strided_slice %552 {offsets = [0, 256], sizes = [8, 128], strides = [1, 1]} : vector<8x384xf32> to vector<8x128xf32>
    %573 = vector.extract_strided_slice %555 {offsets = [0, 256], sizes = [8, 128], strides = [1, 1]} : vector<8x384xf32> to vector<8x128xf32>
    %c0_178 = arith.constant 0 : index
    %c0_179 = arith.constant 0 : index
    %574 = vector.load %arg9[%c0_178, %c0_179] : memref<1x128xf32, #tpu.memory_space<vmem>>, vector<1x128xf32>
    %575 = vector.broadcast %574 : vector<1x128xf32> to vector<8x128xf32>
    %576 = arith.addf %573, %575 : vector<8x128xf32>
    %577 = arith.mulf %563, %576 : vector<8x128xf32>
    %578 = arith.addf %572, %577 : vector<8x128xf32>
    %579 = math.tanh %578 : vector<8x128xf32>
    %cst_180 = arith.constant 1.000000e+00 : f32
    %580 = vector.broadcast %cst_180 : f32 to vector<8x128xf32>
    %581 = arith.subf %580, %571 : vector<8x128xf32>
    %582 = arith.mulf %581, %579 : vector<8x128xf32>
    %583 = arith.mulf %571, %551 : vector<8x128xf32>
    %584 = arith.addf %582, %583 : vector<8x128xf32>
    %c8_i32_181 = arith.constant 8 : i32
    %585 = arith.muli %arg0, %c8_i32_181 : i32
    %c6_i32_182 = arith.constant 6 : i32
    %586 = arith.addi %585, %c6_i32_182 : i32
    %c16_i32_183 = arith.constant 16 : i32
    %587 = arith.cmpi slt, %586, %c16_i32_183 : i32
    %588 = arith.select %587, %584, %551 : vector<8x128xf32>
    %589 = vector.extract_strided_slice %328 {offsets = [56, 0], sizes = [8, 384], strides = [1, 1]} : vector<64x384xf32> to vector<8x384xf32>
    %590 = arith.truncf %588 : vector<8x128xf32> to vector<8x128xbf16>
    %c0_184 = arith.constant 0 : index
    %c0_185 = arith.constant 0 : index
    %591 = vector.load %arg7[%c0_184, %c0_185] : memref<128x384xbf16, #tpu.memory_space<vmem>>, vector<128x384xbf16>
    %cst_186 = arith.constant dense<0.000000e+00> : vector<8x384xf32>
    %592 = tpu.matmul %590, %591, %cst_186 {dimension_numbers = #tpu.dot_dimension_numbers<[1], [0], [0], [1], [0, 0, 1, 1], [], []>} : vector<8x128xbf16>, vector<128x384xbf16>, vector<8x384xf32> -> vector<8x384xf32>
    %593 = vector.extract_strided_slice %589 {offsets = [0, 0], sizes = [8, 128], strides = [1, 1]} : vector<8x384xf32> to vector<8x128xf32>
    %594 = vector.extract_strided_slice %592 {offsets = [0, 0], sizes = [8, 128], strides = [1, 1]} : vector<8x384xf32> to vector<8x128xf32>
    %595 = arith.addf %593, %594 : vector<8x128xf32>
    %596 = arith.negf %595 : vector<8x128xf32>
    %597 = math.exp %596 : vector<8x128xf32>
    %cst_187 = arith.constant 1.000000e+00 : f32
    %598 = vector.broadcast %cst_187 : f32 to vector<8x128xf32>
    %599 = arith.addf %598, %597 : vector<8x128xf32>
    %600 = arith.divf %598, %599 : vector<8x128xf32>
    %601 = vector.extract_strided_slice %589 {offsets = [0, 128], sizes = [8, 128], strides = [1, 1]} : vector<8x384xf32> to vector<8x128xf32>
    %602 = vector.extract_strided_slice %592 {offsets = [0, 128], sizes = [8, 128], strides = [1, 1]} : vector<8x384xf32> to vector<8x128xf32>
    %603 = arith.addf %601, %602 : vector<8x128xf32>
    %604 = arith.negf %603 : vector<8x128xf32>
    %605 = math.exp %604 : vector<8x128xf32>
    %cst_188 = arith.constant 1.000000e+00 : f32
    %606 = vector.broadcast %cst_188 : f32 to vector<8x128xf32>
    %607 = arith.addf %606, %605 : vector<8x128xf32>
    %608 = arith.divf %606, %607 : vector<8x128xf32>
    %609 = vector.extract_strided_slice %589 {offsets = [0, 256], sizes = [8, 128], strides = [1, 1]} : vector<8x384xf32> to vector<8x128xf32>
    %610 = vector.extract_strided_slice %592 {offsets = [0, 256], sizes = [8, 128], strides = [1, 1]} : vector<8x384xf32> to vector<8x128xf32>
    %c0_189 = arith.constant 0 : index
    %c0_190 = arith.constant 0 : index
    %611 = vector.load %arg9[%c0_189, %c0_190] : memref<1x128xf32, #tpu.memory_space<vmem>>, vector<1x128xf32>
    %612 = vector.broadcast %611 : vector<1x128xf32> to vector<8x128xf32>
    %613 = arith.addf %610, %612 : vector<8x128xf32>
    %614 = arith.mulf %600, %613 : vector<8x128xf32>
    %615 = arith.addf %609, %614 : vector<8x128xf32>
    %616 = math.tanh %615 : vector<8x128xf32>
    %cst_191 = arith.constant 1.000000e+00 : f32
    %617 = vector.broadcast %cst_191 : f32 to vector<8x128xf32>
    %618 = arith.subf %617, %608 : vector<8x128xf32>
    %619 = arith.mulf %618, %616 : vector<8x128xf32>
    %620 = arith.mulf %608, %588 : vector<8x128xf32>
    %621 = arith.addf %619, %620 : vector<8x128xf32>
    %c8_i32_192 = arith.constant 8 : i32
    %622 = arith.muli %arg0, %c8_i32_192 : i32
    %c7_i32_193 = arith.constant 7 : i32
    %623 = arith.addi %622, %c7_i32_193 : i32
    %c16_i32_194 = arith.constant 16 : i32
    %624 = arith.cmpi slt, %623, %c16_i32_194 : i32
    %625 = arith.select %624, %621, %588 : vector<8x128xf32>
    %c0_195 = arith.constant 0 : index
    %c0_196 = arith.constant 0 : index
    %626 = vector.load %arg13[%c0_195, %c0_196] : memref<8x128xf32, #tpu.memory_space<vmem>>, vector<8x128xf32>
    tpu.vector_store %arg13[%c0_195, %c0_196], %625 {strides = array<i32>} : memref<8x128xf32, #tpu.memory_space<vmem>>, vector<8x128xf32>,
    %c1_i32_197 = arith.constant 1 : i32
    %627 = arith.cmpi eq, %arg0, %c1_i32_197 : i32
    %628 = arith.extui %627 : i1 to i32
    %c0_i32_198 = arith.constant 0 : i32
    %629 = arith.cmpi ne, %628, %c0_i32_198 : i32
    scf.if %629 {
      %c0_199 = arith.constant 0 : index
      %c0_200 = arith.constant 0 : index
      %630 = vector.load %arg12[%c0_199, %c0_200] : memref<8x128xf32, #tpu.memory_space<vmem>>, vector<8x128xf32>
      %c0_201 = arith.constant 0 : index
      %c0_202 = arith.constant 0 : index
      %c0_203 = arith.constant 0 : index
      %631 = vector.load %arg11[%c0_201, %c0_202, %c0_203] : memref<2x8x128xf32, #tpu.memory_space<vmem>>, vector<1x8x128xf32>
      %632 = vector.shape_cast %631 : vector<1x8x128xf32> to vector<8x128xf32>
      %633 = vector.shape_cast %630 : vector<8x128xf32> to vector<1x8x128xf32>
      tpu.vector_store %arg11[%c0_201, %c0_202, %c0_203], %633 {strides = array<i32>} : memref<2x8x128xf32, #tpu.memory_space<vmem>>, vector<1x8x128xf32>,
      %c0_204 = arith.constant 0 : index
      %c0_205 = arith.constant 0 : index
      %634 = vector.load %arg13[%c0_204, %c0_205] : memref<8x128xf32, #tpu.memory_space<vmem>>, vector<8x128xf32>
      %c1 = arith.constant 1 : index
      %c0_206 = arith.constant 0 : index
      %c0_207 = arith.constant 0 : index
      %635 = vector.load %arg11[%c1, %c0_206, %c0_207] : memref<2x8x128xf32, #tpu.memory_space<vmem>>, vector<1x8x128xf32>
      %636 = vector.shape_cast %635 : vector<1x8x128xf32> to vector<8x128xf32>
      %637 = vector.shape_cast %634 : vector<8x128xf32> to vector<1x8x128xf32>
      tpu.vector_store %arg11[%c1, %c0_206, %c0_207], %637 {strides = array<i32>} : memref<2x8x128xf32, #tpu.memory_space<vmem>>, vector<1x8x128xf32>,
    } else {
    }
    return
  }
  func.func @transform_0(%arg0: i32) -> (i32, i32) {
    %c0_i32 = arith.constant 0 : i32
    %c0_i32_0 = arith.constant 0 : i32
    return %arg0, %c0_i32 : i32, i32
  }
  func.func @transform_1(%arg0: i32) -> (i32, i32) {
    %c0_i32 = arith.constant 0 : i32
    %c0_i32_0 = arith.constant 0 : i32
    %c0_i32_1 = arith.constant 0 : i32
    return %c0_i32, %c0_i32_0 : i32, i32
  }
  func.func @transform_2(%arg0: i32) -> (i32, i32) {
    %c0_i32 = arith.constant 0 : i32
    %c0_i32_0 = arith.constant 0 : i32
    %c0_i32_1 = arith.constant 0 : i32
    return %c0_i32, %c0_i32_0 : i32, i32
  }
  func.func @transform_3(%arg0: i32) -> (i32, i32) {
    %c0_i32 = arith.constant 0 : i32
    %c0_i32_0 = arith.constant 0 : i32
    %c0_i32_1 = arith.constant 0 : i32
    return %c0_i32, %c0_i32_0 : i32, i32
  }
  func.func @transform_4(%arg0: i32) -> (i32, i32) {
    %c0_i32 = arith.constant 0 : i32
    %c0_i32_0 = arith.constant 0 : i32
    %c0_i32_1 = arith.constant 0 : i32
    return %c0_i32, %c0_i32_0 : i32, i32
  }
  func.func @transform_5(%arg0: i32) -> (i32, i32) {
    %c0_i32 = arith.constant 0 : i32
    %c0_i32_0 = arith.constant 0 : i32
    %c0_i32_1 = arith.constant 0 : i32
    return %c0_i32, %c0_i32_0 : i32, i32
  }
  func.func @transform_6(%arg0: i32) -> (i32, i32) {
    %c0_i32 = arith.constant 0 : i32
    %c0_i32_0 = arith.constant 0 : i32
    %c0_i32_1 = arith.constant 0 : i32
    return %c0_i32, %c0_i32_0 : i32, i32
  }
  func.func @transform_7(%arg0: i32) -> (i32, i32) {
    %c0_i32 = arith.constant 0 : i32
    %c0_i32_0 = arith.constant 0 : i32
    %c0_i32_1 = arith.constant 0 : i32
    return %c0_i32, %c0_i32_0 : i32, i32
  }
  func.func @transform_8(%arg0: i32) -> (i32, i32) {
    %c0_i32 = arith.constant 0 : i32
    %c0_i32_0 = arith.constant 0 : i32
    %c0_i32_1 = arith.constant 0 : i32
    return %c0_i32, %c0_i32_0 : i32, i32
  }
  func.func @transform_9(%arg0: i32) -> (i32, i32, i32) {
    %c0_i32 = arith.constant 0 : i32
    %c0_i32_0 = arith.constant 0 : i32
    %c0_i32_1 = arith.constant 0 : i32
    %c0_i32_2 = arith.constant 0 : i32
    return %c0_i32, %c0_i32_0, %c0_i32_1 : i32, i32, i32
  }
  func.func @transform_10(%arg0: i32) -> (i32, i32, i32) {
    %c0_i32 = arith.constant 0 : i32
    %c0_i32_0 = arith.constant 0 : i32
    %c0_i32_1 = arith.constant 0 : i32
    %c0_i32_2 = arith.constant 0 : i32
    return %c0_i32, %c0_i32_0, %c0_i32_1 : i32, i32, i32
  }
}

module attributes {stable_mosaic.version = 11 : i64} {
  func.func @fc_kernel(%arg0: i32, %arg1: memref<8x128xbf16, #tpu.memory_space<vmem>>, %arg2: memref<128x128xbf16, #tpu.memory_space<vmem>>, %arg3: memref<1x128xf32, #tpu.memory_space<vmem>>, %arg4: memref<8x128xf32, #tpu.memory_space<vmem>>) attributes {dimension_semantics = [#tpu.dimension_semantics<parallel>], iteration_bounds = array<i64: 1>, scalar_prefetch = 0 : i64, scratch_operands = 0 : i64, tpu.core_type = #tpu.core_type<tc>, window_params = [{pipeline_mode = #tpu.pipeline_mode<synchronous>, transform_indices = @transform_0, window_bounds = array<i64: 8, 128>}, {transform_indices = @transform_1, window_bounds = array<i64: 128, 128>}, {transform_indices = @transform_2, window_bounds = array<i64: 1, 128>}, {transform_indices = @transform_3, window_bounds = array<i64: 8, 128>}]} {
    %c0 = arith.constant 0 : index
    %c0_0 = arith.constant 0 : index
    %0 = vector.load %arg1[%c0, %c0_0] : memref<8x128xbf16, #tpu.memory_space<vmem>>, vector<8x128xbf16>
    %c0_1 = arith.constant 0 : index
    %c0_2 = arith.constant 0 : index
    %1 = vector.load %arg2[%c0_1, %c0_2] : memref<128x128xbf16, #tpu.memory_space<vmem>>, vector<128x128xbf16>
    %cst = arith.constant dense<0.000000e+00> : vector<8x128xf32>
    %2 = tpu.matmul %0, %1, %cst {dimension_numbers = #tpu.dot_dimension_numbers<[1], [0], [0], [1], [0, 0, 1, 1], [], []>} : vector<8x128xbf16>, vector<128x128xbf16>, vector<8x128xf32> -> vector<8x128xf32>
    %c0_3 = arith.constant 0 : index
    %c0_4 = arith.constant 0 : index
    %3 = vector.load %arg3[%c0_3, %c0_4] : memref<1x128xf32, #tpu.memory_space<vmem>>, vector<1x128xf32>
    %4 = vector.broadcast %3 : vector<1x128xf32> to vector<8x128xf32>
    %5 = arith.addf %2, %4 : vector<8x128xf32>
    %c0_5 = arith.constant 0 : index
    %c0_6 = arith.constant 0 : index
    %6 = vector.load %arg4[%c0_5, %c0_6] : memref<8x128xf32, #tpu.memory_space<vmem>>, vector<8x128xf32>
    tpu.vector_store %arg4[%c0_5, %c0_6], %5 {strides = array<i32>} : memref<8x128xf32, #tpu.memory_space<vmem>>, vector<8x128xf32>,
    return
  }
  func.func @transform_0(%arg0: i32) -> (i32, i32) {
    %c0_i32 = arith.constant 0 : i32
    %c0_i32_0 = arith.constant 0 : i32
    %c0_i32_1 = arith.constant 0 : i32
    return %c0_i32, %c0_i32_0 : i32, i32
  }
  func.func @transform_1(%arg0: i32) -> (i32, i32) {
    %c0_i32 = arith.constant 0 : i32
    %c0_i32_0 = arith.constant 0 : i32
    return %c0_i32, %arg0 : i32, i32
  }
  func.func @transform_2(%arg0: i32) -> (i32, i32) {
    %c0_i32 = arith.constant 0 : i32
    %c0_i32_0 = arith.constant 0 : i32
    return %c0_i32, %arg0 : i32, i32
  }
  func.func @transform_3(%arg0: i32) -> (i32, i32) {
    %c0_i32 = arith.constant 0 : i32
    %c0_i32_0 = arith.constant 0 : i32
    return %c0_i32, %arg0 : i32, i32
  }
}

</mosaic_0001>

<llo_original>
// kernel: deep_gru_forward.3
$region0: #{deep_gru_forward.3}
  #allocation0 [shape = 'u32[]', space=smem, size = 0x4, offset = 0x4, fixed_abs, tag = 'smem constant byte address 0x4 - core index']
  #allocation1 [shape = 'u32[72,128]{1,0:T(1,128)}', space=vmem, size = 0x9000, scoped, tag = 'internal scratch']
  %s0 = inlined_call_operand.vmem [shape: bf16[8,128], index: 0, kind: input, shape index: {}]
  %s1 = inlined_call_operand.vmem [shape: bf16[128,128], index: 1, kind: input, shape index: {}]
  %s2 = inlined_call_operand.vmem [shape: f32[1,128], index: 2, kind: input, shape index: {}]
  %s3 = inlined_call_operand.vmem [shape: f32[8,128], index: 3, kind: output, shape index: {}]
  %s4 = sld [smem:[#allocation0]]
  $region22: #{deep_gru_forward.3} parent=0
    _
  %s6 = ssub.s32 1, %s4
  %s7 = scalar_select 0, %s6, %s4
  // Predicated region
  $region2: #{deep_gru_forward.3} parent=0 // pred_check
    _
  $region3: #{deep_gru_forward.3} parent=0 // pred_check_branch
    %9 = sbr.rel (0) target = $region5
  $region4: #{deep_gru_forward.3} parent=0 // pred_region
    _
  $region5: #{deep_gru_forward.3} parent=0 // pred_fallthru
    _
  // Predicated region
  $region6: #{deep_gru_forward.3} parent=0 // pred_check
    _
  $region7: #{deep_gru_forward.3} parent=0 // pred_check_branch
    %11 = sbr.rel (0) target = $region9
  $region8: #{deep_gru_forward.3} parent=0 // pred_region
    _
  $region9: #{deep_gru_forward.3} parent=0 // pred_fallthru
    _
  // Predicated region
  $region10: #{deep_gru_forward.3} parent=0 // pred_check
    _
  $region11: #{deep_gru_forward.3} parent=0 // pred_check_branch
    %13 = sbr.rel (0) target = $region13
  $region12: #{deep_gru_forward.3} parent=0 // pred_region
    _
  $region13: #{deep_gru_forward.3} parent=0 // pred_fallthru
    _
  %v14 = vld [vmem:[%s0] sm:$0xf]
  %v15 = vld [vmem:[%s1] sm:$0xf]
  %v16 = vld [vmem:[%s1 + $0x4] sm:$0xf]
  %v17 = vld [vmem:[%s1 + $0x8] sm:$0xf]
  %v18 = vld [vmem:[%s1 + $0xc] sm:$0xf]
  %v19 = vld [vmem:[%s1 + $0x10] sm:$0xf]
  %v20 = vld [vmem:[%s1 + $0x14] sm:$0xf]
  %v21 = vld [vmem:[%s1 + $0x18] sm:$0xf]
  %v22 = vld [vmem:[%s1 + $0x1c] sm:$0xf]
  %v23 = vld [vmem:[%s1 + $0x20] sm:$0xf]
  %v24 = vld [vmem:[%s1 + $0x24] sm:$0xf]
  %v25 = vld [vmem:[%s1 + $0x28] sm:$0xf]
  %v26 = vld [vmem:[%s1 + $0x2c] sm:$0xf]
  %v27 = vld [vmem:[%s1 + $0x30] sm:$0xf]
  %v28 = vld [vmem:[%s1 + $0x34] sm:$0xf]
  %v29 = vld [vmem:[%s1 + $0x38] sm:$0xf]
  %v30 = vld [vmem:[%s1 + $0x3c] sm:$0xf]
  %v31 = vld [vmem:[%s2] sm:$0x1]
  %v33 = vperm.slane %v31, 0
  %v51 = vunpack.c.l.b16 %v15
  %v52 = vunpack.c.l.b16 %v16
  %v53 = vunpack.c.l.b16 %v17
  %v54 = vunpack.c.l.b16 %v18
  %v55 = vunpack.c.l.b16 %v19
  %v56 = vunpack.c.l.b16 %v20
  %v57 = vunpack.c.l.b16 %v21
  %v58 = vunpack.c.l.b16 %v22
  %v59 = vunpack.c.l.b16 %v23
  %v60 = vunpack.c.l.b16 %v24
  %v61 = vunpack.c.l.b16 %v25
  %v62 = vunpack.c.l.b16 %v26
  %v63 = vunpack.c.l.b16 %v27
  %v64 = vunpack.c.l.b16 %v28
  %v65 = vunpack.c.l.b16 %v29
  %v66 = vunpack.c.l.b16 %v30
  %v67 = vpack.c.b16 %v52, %v51
  %v68 = vpack.c.b16 %v54, %v53
  %v69 = vpack.c.b16 %v56, %v55
  %v70 = vpack.c.b16 %v58, %v57
  %v71 = vpack.c.b16 %v60, %v59
  %v72 = vpack.c.b16 %v62, %v61
  %v73 = vpack.c.b16 %v64, %v63
  %v74 = vpack.c.b16 %v66, %v65
  %83 = vmatpush.bf16.msra.mxu0 %v74
  %84 = vmatpush.bf16.msra.mxu0 %v73
  %85 = vmatpush.bf16.msra.mxu0 %v72
  %86 = vmatpush.bf16.msra.mxu0 %v71
  %87 = vmatpush.bf16.msra.mxu0 %v70
  %88 = vmatpush.bf16.msra.mxu0 %v69
  %89 = vmatpush.bf16.msra.mxu0 %v68
  %90 = vmatpush.bf16.msra.mxu0 %v67
  %91 = vmatmul.bf16.gmra.mxu0 %v14
  %v92 = vpop.f32.mrf.mxu0
  %v93 = vadd.f32 %v33, %v92
  %v94 = vpop.f32.mrf.mxu0
  %95 = vdwg.mxu0
  %96 = vst [vmem:[%s3] sm:$0xff] %v93
  // Predicated region
  $region14: #{deep_gru_forward.3} parent=0 // pred_check
    _
  $region15: #{deep_gru_forward.3} parent=0 // pred_check_branch
    %98 = sbr.rel (0) target = $region17
  $region16: #{deep_gru_forward.3} parent=0 // pred_region
    _
  $region17: #{deep_gru_forward.3} parent=0 // pred_fallthru
    _
  // Predicated region
  $region18: #{deep_gru_forward.3} parent=0 // pred_check
    _
  $region19: #{deep_gru_forward.3} parent=0 // pred_check_branch
    %100 = sbr.rel (0) target = $region21
  $region20: #{deep_gru_forward.3} parent=0 // pred_region
    _
  $region21: #{deep_gru_forward.3} parent=0 // pred_fallthru
    _

// kernel: deep_gru_forward.2
$region0: #{deep_gru_forward.2}
  #allocation0 [shape = 'u32[]', space=smem, size = 0x4, offset = 0x4, fixed_abs, tag = 'smem constant byte address 0x4 - core index']
  #allocation1 [shape = 'u32[72,128]{1,0:T(1,128)}', space=vmem, size = 0x9000, scoped, tag = 'internal scratch']
  #allocation2 [shape = 'f32[8,128]{1,0:T(8,128)}', space=vmem, size = 0x1000, scoped, tag = 'scratch operand']
  #allocation3 [shape = 'f32[8,128]{1,0:T(8,128)}', space=vmem, size = 0x1000, scoped, tag = 'scratch operand']
  #allocation4 [shape = 'bf16[64,128]{1,0:T(8,128)(2,1)}', space=vmem, size = 0x4000, scoped, tag = 'scratch operand']
  %s0 = inlined_call_operand.vmem [shape: bf16[128,128], index: 0, kind: input, shape index: {}]
  %s1 = inlined_call_operand.vmem [shape: bf16[128,384], index: 1, kind: input, shape index: {}]
  %s2 = inlined_call_operand.vmem [shape: bf16[128,384], index: 2, kind: input, shape index: {}]
  %s3 = inlined_call_operand.vmem [shape: f32[1,384], index: 3, kind: input, shape index: {}]
  %s4 = inlined_call_operand.vmem [shape: f32[1,128], index: 4, kind: input, shape index: {}]
  %s5 = inlined_call_operand.vmem [shape: bf16[128,384], index: 5, kind: input, shape index: {}]
  %s6 = inlined_call_operand.vmem [shape: bf16[128,384], index: 6, kind: input, shape index: {}]
  %s7 = inlined_call_operand.vmem [shape: f32[1,384], index: 7, kind: input, shape index: {}]
  %s8 = inlined_call_operand.vmem [shape: f32[1,128], index: 8, kind: input, shape index: {}]
  %s9 = inlined_call_operand.vmem [shape: f32[2,8,128], index: 9, kind: input, shape index: {}]
  %s10 = inlined_call_operand.vmem [shape: f32[2,8,128], index: 10, kind: output, shape index: {}]
  %s11 = sld [smem:[#allocation0]]
  $region81: #{deep_gru_forward.2} parent=0
    _
  %s13 = ssub.s32 1, %s11
  %s14 = scalar_select 0, %s13, %s11
  loop: start=0, step=1, limit=4
  $region2: #{deep_gru_forward.2} parent=0 // loop_pre_header
    _
  $region3: #{deep_gru_forward.2} parent=0 // loop_header
    %s16 = sphi 0, %s20
    %p17 = scmp.ge.s32.totalorder %s16, 4
    %s26 = sphi 0, %s28
    %s29 = sphi 0, %s26
    %s30 = sphi 0, %s29
    %s46 = sphi 0, %s30
    %s50 = sphi 0, %s50
    %s52 = sphi 0, %s50
    %s53 = sphi 0, %s52
    %s67 = sphi 0, %s53
    %s71 = sphi 0, %s71
    %s73 = sphi 0, %s71
    %s74 = sphi 0, %s73
    %s88 = sphi 0, %s74
    %s92 = sphi 0, %s92
    %s94 = sphi 0, %s92
    %s95 = sphi 0, %s94
    %s109 = sphi 0, %s95
    %s113 = sphi 0, %s113
    %s115 = sphi 0, %s113
    %s116 = sphi 0, %s115
    %s130 = sphi 0, %s116
    %s134 = sphi 0, %s134
    %s136 = sphi 0, %s134
    %s137 = sphi 0, %s136
    %s151 = sphi 0, %s137
    %s155 = sphi 0, %s155
    %s157 = sphi 0, %s155
    %s158 = sphi 0, %s157
    %s172 = sphi 0, %s158
    %s176 = sphi 0, %s176
    %s178 = sphi 0, %s176
    %s179 = sphi 0, %s178
    %s193 = sphi 0, %s179
    %s197 = sphi 0, %s197
    %s199 = sphi 0, %s197
    %s200 = sphi 0, %s199
    %s214 = sphi 0, %s200
    %s218 = sphi 0, %s218
    %s220 = sphi 0, %s218
    %s221 = sphi 0, %s220
    %s235 = sphi 0, %s221
    %s239 = sphi 0, %s239
    %s241 = sphi 0, %s239
    %s242 = sphi 0, %s241
    %s256 = sphi 0, %s242
  $region4: #{deep_gru_forward.2} parent=0 // loop_header_branch
    %19 = sbr.rel (%p17) target = $region8
  $region5: #{deep_gru_forward.2} parent=0 // loop_body
    %s21 = ssub.s32 %s16, 1
    %s22 = ssub.s32 %s16, 2
    %s23 = sadd.s32 %s16, 1
    %s24 = ssub.s32 %s16, %s23
    %p25 = scmp.eq.s32.totalorder %s24, 0
    %s27 = sadd.s32 %s26, 1
    %s28 = scalar_select %p25, %s26, %s27
    %p31 = pneg %p25
    %p32 = scmp.eq.s32.totalorder %s16, 1
    %p33 = por %p31, %p32
    %p34 = scmp.ne.s32.totalorder %s26, %s29
    %p35 = scmp.eq.s32.totalorder %s16, 0
    %p36 = por %p34, %p35
    %p37 = scmp.ne.s32.totalorder %s26, %s29
    %p38 = scmp.eq.s32.totalorder %s21, 1
    %p39 = por %p37, %p38
    %p40 = scmp.ne.s32.totalorder %s29, %s30
    %p41 = scmp.eq.s32.totalorder %s21, 0
    %p42 = por %p40, %p41
    %p43 = scmp.ne.s32.totalorder %s29, %s30
    %p44 = scmp.eq.s32.totalorder %s22, 1
    %p45 = por %p43, %p44
    %p47 = scmp.ne.s32.totalorder %s30, %s46
    %p48 = scmp.eq.s32.totalorder %s22, 0
    %p49 = por %p47, %p48
    %s51 = sadd.s32 %s50, 1
    %p54 = scmp.eq.s32.totalorder %s16, 1
    %p55 = scmp.ne.s32.totalorder %s50, %s52
    %p56 = scmp.eq.s32.totalorder %s16, 0
    %p57 = por %p55, %p56
    %p58 = scmp.ne.s32.totalorder %s50, %s52
    %p59 = scmp.eq.s32.totalorder %s21, 1
    %p60 = por %p58, %p59
    %p61 = scmp.ne.s32.totalorder %s52, %s53
    %p62 = scmp.eq.s32.totalorder %s21, 0
    %p63 = por %p61, %p62
    %p64 = scmp.ne.s32.totalorder %s52, %s53
    %p65 = scmp.eq.s32.totalorder %s22, 1
    %p66 = por %p64, %p65
    %p68 = scmp.ne.s32.totalorder %s53, %s67
    %p69 = scmp.eq.s32.totalorder %s22, 0
    %p70 = por %p68, %p69
    %s72 = sadd.s32 %s71, 1
    %p75 = scmp.eq.s32.totalorder %s16, 1
    %p76 = scmp.ne.s32.totalorder %s71, %s73
    %p77 = scmp.eq.s32.totalorder %s16, 0
    %p78 = por %p76, %p77
    %p79 = scmp.ne.s32.totalorder %s71, %s73
    %p80 = scmp.eq.s32.totalorder %s21, 1
    %p81 = por %p79, %p80
    %p82 = scmp.ne.s32.totalorder %s73, %s74
    %p83 = scmp.eq.s32.totalorder %s21, 0
    %p84 = por %p82, %p83
    %p85 = scmp.ne.s32.totalorder %s73, %s74
    %p86 = scmp.eq.s32.totalorder %s22, 1
    %p87 = por %p85, %p86
    %p89 = scmp.ne.s32.totalorder %s74, %s88
    %p90 = scmp.eq.s32.totalorder %s22, 0
    %p91 = por %p89, %p90
    %s93 = sadd.s32 %s92, 1
    %p96 = scmp.eq.s32.totalorder %s16, 1
    %p97 = scmp.ne.s32.totalorder %s92, %s94
    %p98 = scmp.eq.s32.totalorder %s16, 0
    %p99 = por %p97, %p98
    %p100 = scmp.ne.s32.totalorder %s92, %s94
    %p101 = scmp.eq.s32.totalorder %s21, 1
    %p102 = por %p100, %p101
    %p103 = scmp.ne.s32.totalorder %s94, %s95
    %p104 = scmp.eq.s32.totalorder %s21, 0
    %p105 = por %p103, %p104
    %p106 = scmp.ne.s32.totalorder %s94, %s95
    %p107 = scmp.eq.s32.totalorder %s22, 1
    %p108 = por %p106, %p107
    %p110 = scmp.ne.s32.totalorder %s95, %s109
    %p111 = scmp.eq.s32.totalorder %s22, 0
    %p112 = por %p110, %p111
    %s114 = sadd.s32 %s113, 1
    %p117 = scmp.eq.s32.totalorder %s16, 1
    %p118 = scmp.ne.s32.totalorder %s113, %s115
    %p119 = scmp.eq.s32.totalorder %s16, 0
    %p120 = por %p118, %p119
    %p121 = scmp.ne.s32.totalorder %s113, %s115
    %p122 = scmp.eq.s32.totalorder %s21, 1
    %p123 = por %p121, %p122
    %p124 = scmp.ne.s32.totalorder %s115, %s116
    %p125 = scmp.eq.s32.totalorder %s21, 0
    %p126 = por %p124, %p125
    %p127 = scmp.ne.s32.totalorder %s115, %s116
    %p128 = scmp.eq.s32.totalorder %s22, 1
    %p129 = por %p127, %p128
    %p131 = scmp.ne.s32.totalorder %s116, %s130
    %p132 = scmp.eq.s32.totalorder %s22, 0
    %p133 = por %p131, %p132
    %s135 = sadd.s32 %s134, 1
    %p138 = scmp.eq.s32.totalorder %s16, 1
    %p139 = scmp.ne.s32.totalorder %s134, %s136
    %p140 = scmp.eq.s32.totalorder %s16, 0
    %p141 = por %p139, %p140
    %p142 = scmp.ne.s32.totalorder %s134, %s136
    %p143 = scmp.eq.s32.totalorder %s21, 1
    %p144 = por %p142, %p143
    %p145 = scmp.ne.s32.totalorder %s136, %s137
    %p146 = scmp.eq.s32.totalorder %s21, 0
    %p147 = por %p145, %p146
    %p148 = scmp.ne.s32.totalorder %s136, %s137
    %p149 = scmp.eq.s32.totalorder %s22, 1
    %p150 = por %p148, %p149
    %p152 = scmp.ne.s32.totalorder %s137, %s151
    %p153 = scmp.eq.s32.totalorder %s22, 0
    %p154 = por %p152, %p153
    %s156 = sadd.s32 %s155, 1
    %p159 = scmp.eq.s32.totalorder %s16, 1
    %p160 = scmp.ne.s32.totalorder %s155, %s157
    %p161 = scmp.eq.s32.totalorder %s16, 0
    %p162 = por %p160, %p161
    %p163 = scmp.ne.s32.totalorder %s155, %s157
    %p164 = scmp.eq.s32.totalorder %s21, 1
    %p165 = por %p163, %p164
    %p166 = scmp.ne.s32.totalorder %s157, %s158
    %p167 = scmp.eq.s32.totalorder %s21, 0
    %p168 = por %p166, %p167
    %p169 = scmp.ne.s32.totalorder %s157, %s158
    %p170 = scmp.eq.s32.totalorder %s22, 1
    %p171 = por %p169, %p170
    %p173 = scmp.ne.s32.totalorder %s158, %s172
    %p174 = scmp.eq.s32.totalorder %s22, 0
    %p175 = por %p173, %p174
    %s177 = sadd.s32 %s176, 1
    %p180 = scmp.eq.s32.totalorder %s16, 1
    %p181 = scmp.ne.s32.totalorder %s176, %s178
    %p182 = scmp.eq.s32.totalorder %s16, 0
    %p183 = por %p181, %p182
    %p184 = scmp.ne.s32.totalorder %s176, %s178
    %p185 = scmp.eq.s32.totalorder %s21, 1
    %p186 = por %p184, %p185
    %p187 = scmp.ne.s32.totalorder %s178, %s179
    %p188 = scmp.eq.s32.totalorder %s21, 0
    %p189 = por %p187, %p188
    %p190 = scmp.ne.s32.totalorder %s178, %s179
    %p191 = scmp.eq.s32.totalorder %s22, 1
    %p192 = por %p190, %p191
    %p194 = scmp.ne.s32.totalorder %s179, %s193
    %p195 = scmp.eq.s32.totalorder %s22, 0
    %p196 = por %p194, %p195
    %s198 = sadd.s32 %s197, 1
    %p201 = scmp.eq.s32.totalorder %s16, 1
    %p202 = scmp.ne.s32.totalorder %s197, %s199
    %p203 = scmp.eq.s32.totalorder %s16, 0
    %p204 = por %p202, %p203
    %p205 = scmp.ne.s32.totalorder %s197, %s199
    %p206 = scmp.eq.s32.totalorder %s21, 1
    %p207 = por %p205, %p206
    %p208 = scmp.ne.s32.totalorder %s199, %s200
    %p209 = scmp.eq.s32.totalorder %s21, 0
    %p210 = por %p208, %p209
    %p211 = scmp.ne.s32.totalorder %s199, %s200
    %p212 = scmp.eq.s32.totalorder %s22, 1
    %p213 = por %p211, %p212
    %p215 = scmp.ne.s32.totalorder %s200, %s214
    %p216 = scmp.eq.s32.totalorder %s22, 0
    %p217 = por %p215, %p216
    %s219 = sadd.s32 %s218, 1
    %p222 = scmp.eq.s32.totalorder %s16, 1
    %p223 = scmp.ne.s32.totalorder %s218, %s220
    %p224 = scmp.eq.s32.totalorder %s16, 0
    %p225 = por %p223, %p224
    %p226 = scmp.ne.s32.totalorder %s218, %s220
    %p227 = scmp.eq.s32.totalorder %s21, 1
    %p228 = por %p226, %p227
    %p229 = scmp.ne.s32.totalorder %s220, %s221
    %p230 = scmp.eq.s32.totalorder %s21, 0
    %p231 = por %p229, %p230
    %p232 = scmp.ne.s32.totalorder %s220, %s221
    %p233 = scmp.eq.s32.totalorder %s22, 1
    %p234 = por %p232, %p233
    %p236 = scmp.ne.s32.totalorder %s221, %s235
    %p237 = scmp.eq.s32.totalorder %s22, 0
    %p238 = por %p236, %p237
    %s240 = sadd.s32 %s239, 1
    %p243 = scmp.eq.s32.totalorder %s16, 1
    %p244 = scmp.ne.s32.totalorder %s239, %s241
    %p245 = scmp.eq.s32.totalorder %s16, 0
    %p246 = por %p244, %p245
    %p247 = scmp.ne.s32.totalorder %s239, %s241
    %p248 = scmp.eq.s32.totalorder %s21, 1
    %p249 = por %p247, %p248
    %p250 = scmp.ne.s32.totalorder %s241, %s242
    %p251 = scmp.eq.s32.totalorder %s21, 0
    %p252 = por %p250, %p251
    %p253 = scmp.ne.s32.totalorder %s241, %s242
    %p254 = scmp.eq.s32.totalorder %s22, 1
    %p255 = por %p253, %p254
    %p257 = scmp.ne.s32.totalorder %s242, %s256
    %p258 = scmp.eq.s32.totalorder %s22, 0
    %p259 = por %p257, %p258
    %p260 = scmp.le.s32.totalorder 1, %s16
    %p261 = scmp.lt.s32.totalorder %s16, 3
    %p262 = pnand %p260, %p261
    %p263 = pneg %p262
    // Predicated region
    $region9: #{deep_gru_forward.2} parent=5 // pred_check
      _
    $region10: #{deep_gru_forward.2} parent=5 // pred_check_branch
      %265 = sbr.rel (%p262) target = $region12
    $region11: #{deep_gru_forward.2} parent=5 // pred_region
      %s266 = ssub.s32 %s16, 1
      // Predicated region
      $region13: #{deep_gru_forward.2} parent=11 // pred_check
        %p267 = pneg %p63
      $region14: #{deep_gru_forward.2} parent=11 // pred_check_branch
        %269 = sbr.rel (%p267) target = $region16
      $region15: #{deep_gru_forward.2} parent=11 // pred_region
        _
      $region16: #{deep_gru_forward.2} parent=11 // pred_fallthru
        _
      // Predicated region
      $region17: #{deep_gru_forward.2} parent=11 // pred_check
        %p270 = pneg %p84
      $region18: #{deep_gru_forward.2} parent=11 // pred_check_branch
        %272 = sbr.rel (%p270) target = $region20
      $region19: #{deep_gru_forward.2} parent=11 // pred_region
        _
      $region20: #{deep_gru_forward.2} parent=11 // pred_fallthru
        _
      // Predicated region
      $region21: #{deep_gru_forward.2} parent=11 // pred_check
        %p273 = pneg %p105
      $region22: #{deep_gru_forward.2} parent=11 // pred_check_branch
        %275 = sbr.rel (%p273) target = $region24
      $region23: #{deep_gru_forward.2} parent=11 // pred_region
        _
      $region24: #{deep_gru_forward.2} parent=11 // pred_fallthru
        _
      // Predicated region
      $region25: #{deep_gru_forward.2} parent=11 // pred_check
        %p276 = pneg %p126
      $region26: #{deep_gru_forward.2} parent=11 // pred_check_branch
        %278 = sbr.rel (%p276) target = $region28
      $region27: #{deep_gru_forward.2} parent=11 // pred_region
        _
      $region28: #{deep_gru_forward.2} parent=11 // pred_fallthru
        _
      // Predicated region
      $region29: #{deep_gru_forward.2} parent=11 // pred_check
        %p279 = pneg %p147
      $region30: #{deep_gru_forward.2} parent=11 // pred_check_branch
        %281 = sbr.rel (%p279) target = $region32
      $region31: #{deep_gru_forward.2} parent=11 // pred_region
        _
      $region32: #{deep_gru_forward.2} parent=11 // pred_fallthru
        _
      // Predicated region
      $region33: #{deep_gru_forward.2} parent=11 // pred_check
        %p282 = pneg %p168
      $region34: #{deep_gru_forward.2} parent=11 // pred_check_branch
        %284 = sbr.rel (%p282) target = $region36
      $region35: #{deep_gru_forward.2} parent=11 // pred_region
        _
      $region36: #{deep_gru_forward.2} parent=11 // pred_fallthru
        _
      // Predicated region
      $region37: #{deep_gru_forward.2} parent=11 // pred_check
        %p285 = pneg %p189
      $region38: #{deep_gru_forward.2} parent=11 // pred_check_branch
        %287 = sbr.rel (%p285) target = $region40
      $region39: #{deep_gru_forward.2} parent=11 // pred_region
        _
      $region40: #{deep_gru_forward.2} parent=11 // pred_fallthru
        _
      // Predicated region
      $region41: #{deep_gru_forward.2} parent=11 // pred_check
        %p288 = pneg %p210
      $region42: #{deep_gru_forward.2} parent=11 // pred_check_branch
        %290 = sbr.rel (%p288) target = $region44
      $region43: #{deep_gru_forward.2} parent=11 // pred_region
        _
      $region44: #{deep_gru_forward.2} parent=11 // pred_fallthru
        _
      // Predicated region
      $region45: #{deep_gru_forward.2} parent=11 // pred_check
        %p291 = pneg %p231
      $region46: #{deep_gru_forward.2} parent=11 // pred_check_branch
        %293 = sbr.rel (%p291) target = $region48
      $region47: #{deep_gru_forward.2} parent=11 // pred_region
        _
      $region48: #{deep_gru_forward.2} parent=11 // pred_fallthru
        _
    $region12: #{deep_gru_forward.2} parent=5 // pred_fallthru
      _
    %p294 = scmp.lt.s32.totalorder %s16, 2
    // Predicated region
    $region49: #{deep_gru_forward.2} parent=5 // pred_check
      %p295 = pneg %p294
    $region50: #{deep_gru_forward.2} parent=5 // pred_check_branch
      %297 = sbr.rel (%p295) target = $region52
    $region51: #{deep_gru_forward.2} parent=5 // pred_region
      // Predicated region
      $region53: #{deep_gru_forward.2} parent=51 // pred_check
        %p298 = pneg %p36
      $region54: #{deep_gru_forward.2} parent=51 // pred_check_branch
        %300 = sbr.rel (%p298) target = $region56
      $region55: #{deep_gru_forward.2} parent=51 // pred_region
        %s301 = smul.u32 8, %s16
        %p302 = scmp.lt.s32.totalorder %s301, 15
        %s303 = scalar_select %p302, %s301, 15
        %s304 = smul.addr %s303, 4
        %s305 = scalar_lea.vmem %s0, %s304
        %s306 = smul.u32 8, %s16
      $region56: #{deep_gru_forward.2} parent=51 // pred_fallthru
        _
    $region52: #{deep_gru_forward.2} parent=5 // pred_fallthru
      _
    %p307 = scmp.le.s32.totalorder 1, %s16
    %p308 = scmp.lt.s32.totalorder %s16, 3
    %p309 = pnand %p307, %p308
    %p310 = pneg %p309
    // Predicated region
    $region57: #{deep_gru_forward.2} parent=5 // pred_check
      _
    $region58: #{deep_gru_forward.2} parent=5 // pred_check_branch
      %312 = sbr.rel (%p309) target = $region60
    $region59: #{deep_gru_forward.2} parent=5 // pred_region
      %s313 = ssub.s32 %s16, 1
      %s314 = smul.u32 8, %s21
      %p315 = scmp.lt.s32.totalorder %s314, 15
      %s316 = scalar_select %p315, %s314, 15
      %s317 = smul.addr %s316, 4
      %s318 = scalar_lea.vmem %s0, %s317
      %p319 = pneg %p42
      %p320 = pneg %p39
      %p321 = pneg %p63
      %p322 = pneg %p60
      %p323 = pneg %p84
      %p324 = pneg %p81
      %p325 = pneg %p105
      %p326 = pneg %p102
      %p327 = pneg %p126
      %p328 = pneg %p123
      %p329 = pneg %p147
      %p330 = pneg %p144
      %p331 = pneg %p168
      %p332 = pneg %p165
      %p333 = pneg %p189
      %p334 = pneg %p186
      %p335 = pneg %p210
      %p336 = pneg %p207
      %p337 = pneg %p231
      %p338 = pneg %p228
      %p339 = pneg %p252
      %p340 = pneg %p249
      %s341 = smul.u32 8, %s21
      %p342 = scmp.lt.s32.totalorder %s341, 15
      %s343 = scalar_select %p342, %s341, 15
      %s344 = smul.addr %s343, 4
      %s345 = scalar_lea.vmem %s0, %s344
      %s346 = smul.u32 8, %s21
      %p347 = scmp.eq.s32.totalorder %s21, 0
      // Predicated region
      $region61: #{deep_gru_forward.2} parent=59 // pred_check
        %p348 = pneg %p347
      $region62: #{deep_gru_forward.2} parent=59 // pred_check_branch
        %350 = sbr.rel (%p348) target = $region64
      $region63: #{deep_gru_forward.2} parent=59 // pred_region
        %v351 = vld [vmem:[%s9] sm:$0xff]
        %352 = vst [vmem:[#allocation2] sm:$0xff] %v351
        %s353 = scalar_lea.vmem %s9, 8
        %v354 = vld [vmem:[%s353] sm:$0xff]
        %355 = vst [vmem:[#allocation3] sm:$0xff] %v354
      $region64: #{deep_gru_forward.2} parent=59 // pred_fallthru
        _
      %v356 = vld [vmem:[%s345] sm:$0xf]
      %v357 = vld [vmem:[%s345 + $0x4] sm:$0xf]
      %v358 = vld [vmem:[%s345 + $0x8] sm:$0xf]
      %v359 = vld [vmem:[%s345 + $0xc] sm:$0xf]
      %v360 = vld [vmem:[%s345 + $0x10] sm:$0xf]
      %v361 = vld [vmem:[%s345 + $0x14] sm:$0xf]
      %v362 = vld [vmem:[%s345 + $0x18] sm:$0xf]
      %v363 = vld [vmem:[%s345 + $0x1c] sm:$0xf]
      %v364 = vld [vmem:[%s1] sm:$0xff]
      %v365 = vld [vmem:[%s1 + $0x8] sm:$0xf]
      %v366 = vld [vmem:[%s1 + $0xc] sm:$0xff]
      %v367 = vld [vmem:[%s1 + $0x14] sm:$0xf]
      %v368 = vld [vmem:[%s1 + $0x18] sm:$0xff]
      %v369 = vld [vmem:[%s1 + $0x20] sm:$0xf]
      %v370 = vld [vmem:[%s1 + $0x24] sm:$0xff]
      %v371 = vld [vmem:[%s1 + $0x2c] sm:$0xf]
      %v372 = vld [vmem:[%s1 + $0x30] sm:$0xff]
      %v373 = vld [vmem:[%s1 + $0x38] sm:$0xf]
      %v374 = vld [vmem:[%s1 + $0x3c] sm:$0xff]
      %v375 = vld [vmem:[%s1 + $0x44] sm:$0xf]
      %v376 = vld [vmem:[%s1 + $0x48] sm:$0xff]
      %v377 = vld [vmem:[%s1 + $0x50] sm:$0xf]
      %v378 = vld [vmem:[%s1 + $0x54] sm:$0xff]
      %v379 = vld [vmem:[%s1 + $0x5c] sm:$0xf]
      %v380 = vld [vmem:[%s1 + $0x60] sm:$0xff]
      %v381 = vld [vmem:[%s1 + $0x68] sm:$0xf]
      %v382 = vld [vmem:[%s1 + $0x6c] sm:$0xff]
      %v383 = vld [vmem:[%s1 + $0x74] sm:$0xf]
      %v384 = vld [vmem:[%s1 + $0x78] sm:$0xff]
      %v385 = vld [vmem:[%s1 + $0x80] sm:$0xf]
      %v386 = vld [vmem:[%s1 + $0x84] sm:$0xff]
      %v387 = vld [vmem:[%s1 + $0x8c] sm:$0xf]
      %v388 = vld [vmem:[%s1 + $0x90] sm:$0xff]
      %v389 = vld [vmem:[%s1 + $0x98] sm:$0xf]
      %v390 = vld [vmem:[%s1 + $0x9c] sm:$0xff]
      %v391 = vld [vmem:[%s1 + $0xa4] sm:$0xf]
      %v392 = vld [vmem:[%s1 + $0xa8] sm:$0xff]
      %v393 = vld [vmem:[%s1 + $0xb0] sm:$0xf]
      %v394 = vld [vmem:[%s1 + $0xb4] sm:$0xff]
      %v395 = vld [vmem:[%s1 + $0xbc] sm:$0xf]
      %v396 = vld [vmem:[%s3] sm:$0x7]
      %v398 = vperm.slane %v396, 0
      %v399 = vperm.slane %v396, 1
      %v400 = vperm.slane %v396, 2
      %v412 = vunpack.c.l.b16 %v356
      %v413 = vunpack.c.l.b16 %v357
      %v414 = vunpack.c.l.b16 %v358
      %v415 = vunpack.c.l.b16 %v359
      %v416 = vunpack.c.l.b16 %v360
      %v417 = vunpack.c.l.b16 %v361
      %v418 = vunpack.c.l.b16 %v362
      %v419 = vunpack.c.l.b16 %v363
      %v420 = vpack.c.b16 %v413, %v412
      %v421 = vpack.c.b16 %v415, %v414
      %v422 = vpack.c.b16 %v417, %v416
      %v423 = vpack.c.b16 %v419, %v418
      %v460 = vunpack.c.l.b16 %v364
      %v461 = vunpack.c.h.b16 %v364
      %v462 = vunpack.c.l.b16 %v365
      %v463 = vunpack.c.l.b16 %v366
      %v464 = vunpack.c.h.b16 %v366
      %v465 = vunpack.c.l.b16 %v367
      %v466 = vunpack.c.l.b16 %v368
      %v467 = vunpack.c.h.b16 %v368
      %v468 = vunpack.c.l.b16 %v369
      %v469 = vunpack.c.l.b16 %v370
      %v470 = vunpack.c.h.b16 %v370
      %v471 = vunpack.c.l.b16 %v371
      %v472 = vunpack.c.l.b16 %v372
      %v473 = vunpack.c.h.b16 %v372
      %v474 = vunpack.c.l.b16 %v373
      %v475 = vunpack.c.l.b16 %v374
      %v476 = vunpack.c.h.b16 %v374
      %v477 = vunpack.c.l.b16 %v375
      %v478 = vunpack.c.l.b16 %v376
      %v479 = vunpack.c.h.b16 %v376
      %v480 = vunpack.c.l.b16 %v377
      %v481 = vunpack.c.l.b16 %v378
      %v482 = vunpack.c.h.b16 %v378
      %v483 = vunpack.c.l.b16 %v379
      %v484 = vunpack.c.l.b16 %v380
      %v485 = vunpack.c.h.b16 %v380
      %v486 = vunpack.c.l.b16 %v381
      %v487 = vunpack.c.l.b16 %v382
      %v488 = vunpack.c.h.b16 %v382
      %v489 = vunpack.c.l.b16 %v383
      %v490 = vunpack.c.l.b16 %v384
      %v491 = vunpack.c.h.b16 %v384
      %v492 = vunpack.c.l.b16 %v385
      %v493 = vunpack.c.l.b16 %v386
      %v494 = vunpack.c.h.b16 %v386
      %v495 = vunpack.c.l.b16 %v387
      %v496 = vunpack.c.l.b16 %v388
      %v497 = vunpack.c.h.b16 %v388
      %v498 = vunpack.c.l.b16 %v389
      %v499 = vunpack.c.l.b16 %v390
      %v500 = vunpack.c.h.b16 %v390
      %v501 = vunpack.c.l.b16 %v391
      %v502 = vunpack.c.l.b16 %v392
      %v503 = vunpack.c.h.b16 %v392
      %v504 = vunpack.c.l.b16 %v393
      %v505 = vunpack.c.l.b16 %v394
      %v506 = vunpack.c.h.b16 %v394
      %v507 = vunpack.c.l.b16 %v395
      %v508 = vpack.c.b16 %v463, %v460
      %v509 = vpack.c.b16 %v464, %v461
      %v510 = vpack.c.b16 %v465, %v462
      %v511 = vpack.c.b16 %v469, %v466
      %v512 = vpack.c.b16 %v470, %v467
      %v513 = vpack.c.b16 %v471, %v468
      %v514 = vpack.c.b16 %v475, %v472
      %v515 = vpack.c.b16 %v476, %v473
      %v516 = vpack.c.b16 %v477, %v474
      %v517 = vpack.c.b16 %v481, %v478
      %v518 = vpack.c.b16 %v482, %v479
      %v519 = vpack.c.b16 %v483, %v480
      %v520 = vpack.c.b16 %v487, %v484
      %v521 = vpack.c.b16 %v488, %v485
      %v522 = vpack.c.b16 %v489, %v486
      %v523 = vpack.c.b16 %v493, %v490
      %v524 = vpack.c.b16 %v494, %v491
      %v525 = vpack.c.b16 %v495, %v492
      %v526 = vpack.c.b16 %v499, %v496
      %v527 = vpack.c.b16 %v500, %v497
      %v528 = vpack.c.b16 %v501, %v498
      %v529 = vpack.c.b16 %v505, %v502
      %v530 = vpack.c.b16 %v506, %v503
      %v531 = vpack.c.b16 %v507, %v504
      %556 = vmatpush.bf16.msra.mxu0 %v529
      %557 = vmatpush.bf16.msra.mxu0 %v526
      %558 = vmatpush.bf16.msra.mxu0 %v523
      %559 = vmatpush.bf16.msra.mxu0 %v520
      %560 = vmatpush.bf16.msra.mxu0 %v517
      %561 = vmatpush.bf16.msra.mxu0 %v514
      %562 = vmatpush.bf16.msra.mxu0 %v511
      %563 = vmatpush.bf16.msra.mxu0 %v508
      %564 = vmatmul.bf16.gmra.mxu0 %v420
      %v565 = vpop.f32.mrf.mxu0
      %v566 = vadd.f32 %v398, %v565
      %v567 = vpop.f32.mrf.mxu0
      %v568 = vadd.f32 %v398, %v567
      %569 = vmatmul.bf16.gmra.mxu0 %v421
      %v570 = vpop.f32.mrf.mxu0
      %v571 = vadd.f32 %v398, %v570
      %v572 = vpop.f32.mrf.mxu0
      %v573 = vadd.f32 %v398, %v572
      %574 = vmatmul.bf16.gmra.mxu0 %v422
      %v575 = vpop.f32.mrf.mxu0
      %v576 = vadd.f32 %v398, %v575
      %v577 = vpop.f32.mrf.mxu0
      %v578 = vadd.f32 %v398, %v577
      %579 = vmatmul.bf16.gmra.mxu0 %v423
      %v580 = vpop.f32.mrf.mxu0
      %v581 = vadd.f32 %v398, %v580
      %v582 = vpop.f32.mrf.mxu0
      %v583 = vadd.f32 %v398, %v582
      %584 = vdwg.mxu0
      %585 = vmatpush.bf16.msra.mxu0 %v530
      %586 = vmatpush.bf16.msra.mxu0 %v527
      %587 = vmatpush.bf16.msra.mxu0 %v524
      %588 = vmatpush.bf16.msra.mxu0 %v521
      %589 = vmatpush.bf16.msra.mxu0 %v518
      %590 = vmatpush.bf16.msra.mxu0 %v515
      %591 = vmatpush.bf16.msra.mxu0 %v512
      %592 = vmatpush.bf16.msra.mxu0 %v509
      %593 = vmatmul.bf16.gmra.mxu0 %v420
      %v594 = vpop.f32.mrf.mxu0
      %v595 = vadd.f32 %v399, %v594
      %v596 = vpop.f32.mrf.mxu0
      %v597 = vadd.f32 %v399, %v596
      %598 = vmatmul.bf16.gmra.mxu0 %v421
      %v599 = vpop.f32.mrf.mxu0
      %v600 = vadd.f32 %v399, %v599
      %v601 = vpop.f32.mrf.mxu0
      %v602 = vadd.f32 %v399, %v601
      %603 = vmatmul.bf16.gmra.mxu0 %v422
      %v604 = vpop.f32.mrf.mxu0
      %v605 = vadd.f32 %v399, %v604
      %v606 = vpop.f32.mrf.mxu0
      %v607 = vadd.f32 %v399, %v606
      %608 = vmatmul.bf16.gmra.mxu0 %v423
      %v609 = vpop.f32.mrf.mxu0
      %v610 = vadd.f32 %v399, %v609
      %v611 = vpop.f32.mrf.mxu0
      %v612 = vadd.f32 %v399, %v611
      %613 = vdwg.mxu0
      %614 = vmatpush.bf16.msra.mxu0 %v531
      %615 = vmatpush.bf16.msra.mxu0 %v528
      %616 = vmatpush.bf16.msra.mxu0 %v525
      %617 = vmatpush.bf16.msra.mxu0 %v522
      %618 = vmatpush.bf16.msra.mxu0 %v519
      %619 = vmatpush.bf16.msra.mxu0 %v516
      %620 = vmatpush.bf16.msra.mxu0 %v513
      %621 = vmatpush.bf16.msra.mxu0 %v510
      %622 = vmatmul.bf16.gmra.mxu0 %v420
      %v623 = vpop.f32.mrf.mxu0
      %v624 = vadd.f32 %v400, %v623
      %v625 = vpop.f32.mrf.mxu0
      %v626 = vadd.f32 %v400, %v625
      %627 = vmatmul.bf16.gmra.mxu0 %v421
      %v628 = vpop.f32.mrf.mxu0
      %v629 = vadd.f32 %v400, %v628
      %v630 = vpop.f32.mrf.mxu0
      %v631 = vadd.f32 %v400, %v630
      %632 = vmatmul.bf16.gmra.mxu0 %v422
      %v633 = vpop.f32.mrf.mxu0
      %v634 = vadd.f32 %v400, %v633
      %v635 = vpop.f32.mrf.mxu0
      %v636 = vadd.f32 %v400, %v635
      %637 = vmatmul.bf16.gmra.mxu0 %v423
      %v638 = vpop.f32.mrf.mxu0
      %v639 = vadd.f32 %v400, %v638
      %v640 = vpop.f32.mrf.mxu0
      %v641 = vadd.f32 %v400, %v640
      %642 = vdwg.mxu0
      %v643 = vld [vmem:[#allocation2] sm:$0xff]
      %v644 = vpack.c.bf16 %v643, %v643
      %v645 = vld [vmem:[%s2] sm:$0xff]
      %v646 = vld [vmem:[%s2 + $0x8] sm:$0xf]
      %v647 = vld [vmem:[%s2 + $0xc] sm:$0xff]
      %v648 = vld [vmem:[%s2 + $0x14] sm:$0xf]
      %v649 = vld [vmem:[%s2 + $0x18] sm:$0xff]
      %v650 = vld [vmem:[%s2 + $0x20] sm:$0xf]
      %v651 = vld [vmem:[%s2 + $0x24] sm:$0xff]
      %v652 = vld [vmem:[%s2 + $0x2c] sm:$0xf]
      %v653 = vld [vmem:[%s2 + $0x30] sm:$0xff]
      %v654 = vld [vmem:[%s2 + $0x38] sm:$0xf]
      %v655 = vld [vmem:[%s2 + $0x3c] sm:$0xff]
      %v656 = vld [vmem:[%s2 + $0x44] sm:$0xf]
      %v657 = vld [vmem:[%s2 + $0x48] sm:$0xff]
      %v658 = vld [vmem:[%s2 + $0x50] sm:$0xf]
      %v659 = vld [vmem:[%s2 + $0x54] sm:$0xff]
      %v660 = vld [vmem:[%s2 + $0x5c] sm:$0xf]
      %v661 = vld [vmem:[%s2 + $0x60] sm:$0xff]
      %v662 = vld [vmem:[%s2 + $0x68] sm:$0xf]
      %v663 = vld [vmem:[%s2 + $0x6c] sm:$0xff]
      %v664 = vld [vmem:[%s2 + $0x74] sm:$0xf]
      %v665 = vld [vmem:[%s2 + $0x78] sm:$0xff]
      %v666 = vld [vmem:[%s2 + $0x80] sm:$0xf]
      %v667 = vld [vmem:[%s2 + $0x84] sm:$0xff]
      %v668 = vld [vmem:[%s2 + $0x8c] sm:$0xf]
      %v669 = vld [vmem:[%s2 + $0x90] sm:$0xff]
      %v670 = vld [vmem:[%s2 + $0x98] sm:$0xf]
      %v671 = vld [vmem:[%s2 + $0x9c] sm:$0xff]
      %v672 = vld [vmem:[%s2 + $0xa4] sm:$0xf]
      %v673 = vld [vmem:[%s2 + $0xa8] sm:$0xff]
      %v674 = vld [vmem:[%s2 + $0xb0] sm:$0xf]
      %v675 = vld [vmem:[%s2 + $0xb4] sm:$0xff]
      %v676 = vld [vmem:[%s2 + $0xbc] sm:$0xf]
      %v709 = vunpack.c.l.b16 %v645
      %v710 = vunpack.c.h.b16 %v645
      %v711 = vunpack.c.l.b16 %v646
      %v712 = vunpack.c.l.b16 %v647
      %v713 = vunpack.c.h.b16 %v647
      %v714 = vunpack.c.l.b16 %v648
      %v715 = vunpack.c.l.b16 %v649
      %v716 = vunpack.c.h.b16 %v649
      %v717 = vunpack.c.l.b16 %v650
      %v718 = vunpack.c.l.b16 %v651
      %v719 = vunpack.c.h.b16 %v651
      %v720 = vunpack.c.l.b16 %v652
      %v721 = vunpack.c.l.b16 %v653
      %v722 = vunpack.c.h.b16 %v653
      %v723 = vunpack.c.l.b16 %v654
      %v724 = vunpack.c.l.b16 %v655
      %v725 = vunpack.c.h.b16 %v655
      %v726 = vunpack.c.l.b16 %v656
      %v727 = vunpack.c.l.b16 %v657
      %v728 = vunpack.c.h.b16 %v657
      %v729 = vunpack.c.l.b16 %v658
      %v730 = vunpack.c.l.b16 %v659
      %v731 = vunpack.c.h.b16 %v659
      %v732 = vunpack.c.l.b16 %v660
      %v733 = vunpack.c.l.b16 %v661
      %v734 = vunpack.c.h.b16 %v661
      %v735 = vunpack.c.l.b16 %v662
      %v736 = vunpack.c.l.b16 %v663
      %v737 = vunpack.c.h.b16 %v663
      %v738 = vunpack.c.l.b16 %v664
      %v739 = vunpack.c.l.b16 %v665
      %v740 = vunpack.c.h.b16 %v665
      %v741 = vunpack.c.l.b16 %v666
      %v742 = vunpack.c.l.b16 %v667
      %v743 = vunpack.c.h.b16 %v667
      %v744 = vunpack.c.l.b16 %v668
      %v745 = vunpack.c.l.b16 %v669
      %v746 = vunpack.c.h.b16 %v669
      %v747 = vunpack.c.l.b16 %v670
      %v748 = vunpack.c.l.b16 %v671
      %v749 = vunpack.c.h.b16 %v671
      %v750 = vunpack.c.l.b16 %v672
      %v751 = vunpack.c.l.b16 %v673
      %v752 = vunpack.c.h.b16 %v673
      %v753 = vunpack.c.l.b16 %v674
      %v754 = vunpack.c.l.b16 %v675
      %v755 = vunpack.c.h.b16 %v675
      %v756 = vunpack.c.l.b16 %v676
      %v757 = vpack.c.b16 %v712, %v709
      %v758 = vpack.c.b16 %v713, %v710
      %v759 = vpack.c.b16 %v714, %v711
      %v760 = vpack.c.b16 %v718, %v715
      %v761 = vpack.c.b16 %v719, %v716
      %v762 = vpack.c.b16 %v720, %v717
      %v763 = vpack.c.b16 %v724, %v721
      %v764 = vpack.c.b16 %v725, %v722
      %v765 = vpack.c.b16 %v726, %v723
      %v766 = vpack.c.b16 %v730, %v727
      %v767 = vpack.c.b16 %v731, %v728
      %v768 = vpack.c.b16 %v732, %v729
      %v769 = vpack.c.b16 %v736, %v733
      %v770 = vpack.c.b16 %v737, %v734
      %v771 = vpack.c.b16 %v738, %v735
      %v772 = vpack.c.b16 %v742, %v739
      %v773 = vpack.c.b16 %v743, %v740
      %v774 = vpack.c.b16 %v744, %v741
      %v775 = vpack.c.b16 %v748, %v745
      %v776 = vpack.c.b16 %v749, %v746
      %v777 = vpack.c.b16 %v750, %v747
      %v778 = vpack.c.b16 %v754, %v751
      %v779 = vpack.c.b16 %v755, %v752
      %v780 = vpack.c.b16 %v756, %v753
      %805 = vmatpush.bf16.msra.mxu0 %v778
      %806 = vmatpush.bf16.msra.mxu0 %v775
      %807 = vmatpush.bf16.msra.mxu0 %v772
      %808 = vmatpush.bf16.msra.mxu0 %v769
      %809 = vmatpush.bf16.msra.mxu0 %v766
      %810 = vmatpush.bf16.msra.mxu0 %v763
      %811 = vmatpush.bf16.msra.mxu0 %v760
      %812 = vmatpush.bf16.msra.mxu0 %v757
      %813 = vmatmul.bf16.gmra.mxu0 %v644
      %v814 = vpop.f32.mrf.mxu0
      %v815 = vadd.f32 0.0, %v814
      %v816 = vpop.f32.mrf.mxu0
      %817 = vdwg.mxu0
      %818 = vmatpush.bf16.msra.mxu0 %v779
      %819 = vmatpush.bf16.msra.mxu0 %v776
      %820 = vmatpush.bf16.msra.mxu0 %v773
      %821 = vmatpush.bf16.msra.mxu0 %v770
      %822 = vmatpush.bf16.msra.mxu0 %v767
      %823 = vmatpush.bf16.msra.mxu0 %v764
      %824 = vmatpush.bf16.msra.mxu0 %v761
      %825 = vmatpush.bf16.msra.mxu0 %v758
      %826 = vmatmul.bf16.gmra.mxu0 %v644
      %v827 = vpop.f32.mrf.mxu0
      %v828 = vadd.f32 0.0, %v827
      %v829 = vpop.f32.mrf.mxu0
      %830 = vdwg.mxu0
      %831 = vmatpush.bf16.msra.mxu0 %v780
      %832 = vmatpush.bf16.msra.mxu0 %v777
      %833 = vmatpush.bf16.msra.mxu0 %v774
      %834 = vmatpush.bf16.msra.mxu0 %v771
      %835 = vmatpush.bf16.msra.mxu0 %v768
      %836 = vmatpush.bf16.msra.mxu0 %v765
      %837 = vmatpush.bf16.msra.mxu0 %v762
      %838 = vmatpush.bf16.msra.mxu0 %v759
      %839 = vmatmul.bf16.gmra.mxu0 %v644
      %v840 = vpop.f32.mrf.mxu0
      %v841 = vadd.f32 0.0, %v840
      %v842 = vpop.f32.mrf.mxu0
      %843 = vdwg.mxu0
      %v844 = vadd.f32 %v566, %v815
      %v845 = vxor.u32 %v844, 2147483648
      %v846 = vmul.f32 %v845, 1.442695
      %v847 = vpow.pop %v846
      %v848 = vadd.f32 %v847, 1.0
      %v849 = vrcp.pop %v848
      %v850 = vmul.f32 %v848, %v849
      %v851 = vsub.f32 1.0, %v850
      %v852 = vmul.f32 %v849, %v851
      %v853 = vadd.f32 %v849, %v852
      %vm854 = vweird.f32 %v848
      %vm855 = vweird.f32 %v849
      %vm856 = vmor %vm854, %vm855
      %v857 = vsel %vm856, %v849, %v853
      %v858 = vand.u32 2147483647, %v848
      %vm859 = vcmp.eq.f32.partialorder %v858, 8.507059e+37
      %v860 = vand.u32 %v848, 2147483648
      %v861 = vor.u32 1.1754944e-38, %v860
      %v862 = vsel %vm859, %v861, %v857
      %v863 = vmul.f32 1.0, %v862
      %v864 = vadd.f32 %v595, %v828
      %v865 = vxor.u32 %v864, 2147483648
      %v866 = vmul.f32 %v865, 1.442695
      %v867 = vpow.pop %v866
      %v868 = vadd.f32 %v867, 1.0
      %v869 = vrcp.pop %v868
      %v870 = vmul.f32 %v868, %v869
      %v871 = vsub.f32 1.0, %v870
      %v872 = vmul.f32 %v869, %v871
      %v873 = vadd.f32 %v869, %v872
      %vm874 = vweird.f32 %v868
      %vm875 = vweird.f32 %v869
      %vm876 = vmor %vm874, %vm875
      %v877 = vsel %vm876, %v869, %v873
      %v878 = vand.u32 2147483647, %v868
      %vm879 = vcmp.eq.f32.partialorder %v878, 8.507059e+37
      %v880 = vand.u32 %v868, 2147483648
      %v881 = vor.u32 1.1754944e-38, %v880
      %v882 = vsel %vm879, %v881, %v877
      %v883 = vmul.f32 1.0, %v882
      %v884 = vld [vmem:[%s4] sm:$0x1]
      %v886 = vperm.slane %v884, 0
      %v888 = vadd.f32 %v841, %v886
      %v889 = vmul.f32 %v863, %v888
      %v890 = vadd.f32 %v624, %v889
      %v891 = vtanh.pop %v890
      %v892 = vsub.f32 1.0, %v883
      %v893 = vmul.f32 %v892, %v891
      %v894 = vmul.f32 %v883, %v643
      %v895 = vadd.f32 %v893, %v894
      %s896 = smul.u32 %s21, 8
      %p897 = scmp.lt.s32.totalorder %s896, 16
      %s898 = scalar_select %p897, 1, 0
      %v899 = vstv %s898
      %vm900 = vcmp.eq.s32.totalorder %v899, 1
      %v901 = vsel %vm900, %v895, %v643
      %v902 = vpack.c.bf16 %v901, %v901
      %903 = vst [vmem:[#allocation4] sm:$0xf] %v902
      %v904 = vld [vmem:[%s2] sm:$0xff]
      %v905 = vld [vmem:[%s2 + $0x8] sm:$0xf]
      %v906 = vld [vmem:[%s2 + $0xc] sm:$0xff]
      %v907 = vld [vmem:[%s2 + $0x14] sm:$0xf]
      %v908 = vld [vmem:[%s2 + $0x18] sm:$0xff]
      %v909 = vld [vmem:[%s2 + $0x20] sm:$0xf]
      %v910 = vld [vmem:[%s2 + $0x24] sm:$0xff]
      %v911 = vld [vmem:[%s2 + $0x2c] sm:$0xf]
      %v912 = vld [vmem:[%s2 + $0x30] sm:$0xff]
      %v913 = vld [vmem:[%s2 + $0x38] sm:$0xf]
      %v914 = vld [vmem:[%s2 + $0x3c] sm:$0xff]
      %v915 = vld [vmem:[%s2 + $0x44] sm:$0xf]
      %v916 = vld [vmem:[%s2 + $0x48] sm:$0xff]
      %v917 = vld [vmem:[%s2 + $0x50] sm:$0xf]
      %v918 = vld [vmem:[%s2 + $0x54] sm:$0xff]
      %v919 = vld [vmem:[%s2 + $0x5c] sm:$0xf]
      %v920 = vld [vmem:[%s2 + $0x60] sm:$0xff]
      %v921 = vld [vmem:[%s2 + $0x68] sm:$0xf]
      %v922 = vld [vmem:[%s2 + $0x6c] sm:$0xff]
      %v923 = vld [vmem:[%s2 + $0x74] sm:$0xf]
      %v924 = vld [vmem:[%s2 + $0x78] sm:$0xff]
      %v925 = vld [vmem:[%s2 + $0x80] sm:$0xf]
      %v926 = vld [vmem:[%s2 + $0x84] sm:$0xff]
      %v927 = vld [vmem:[%s2 + $0x8c] sm:$0xf]
      %v928 = vld [vmem:[%s2 + $0x90] sm:$0xff]
      %v929 = vld [vmem:[%s2 + $0x98] sm:$0xf]
      %v930 = vld [vmem:[%s2 + $0x9c] sm:$0xff]
      %v931 = vld [vmem:[%s2 + $0xa4] sm:$0xf]
      %v932 = vld [vmem:[%s2 + $0xa8] sm:$0xff]
      %v933 = vld [vmem:[%s2 + $0xb0] sm:$0xf]
      %v934 = vld [vmem:[%s2 + $0xb4] sm:$0xff]
      %v935 = vld [vmem:[%s2 + $0xbc] sm:$0xf]
      %v968 = vunpack.c.l.b16 %v904
      %v969 = vunpack.c.h.b16 %v904
      %v970 = vunpack.c.l.b16 %v905
      %v971 = vunpack.c.l.b16 %v906
      %v972 = vunpack.c.h.b16 %v906
      %v973 = vunpack.c.l.b16 %v907
      %v974 = vunpack.c.l.b16 %v908
      %v975 = vunpack.c.h.b16 %v908
      %v976 = vunpack.c.l.b16 %v909
      %v977 = vunpack.c.l.b16 %v910
      %v978 = vunpack.c.h.b16 %v910
      %v979 = vunpack.c.l.b16 %v911
      %v980 = vunpack.c.l.b16 %v912
      %v981 = vunpack.c.h.b16 %v912
      %v982 = vunpack.c.l.b16 %v913
      %v983 = vunpack.c.l.b16 %v914
      %v984 = vunpack.c.h.b16 %v914
      %v985 = vunpack.c.l.b16 %v915
      %v986 = vunpack.c.l.b16 %v916
      %v987 = vunpack.c.h.b16 %v916
      %v988 = vunpack.c.l.b16 %v917
      %v989 = vunpack.c.l.b16 %v918
      %v990 = vunpack.c.h.b16 %v918
      %v991 = vunpack.c.l.b16 %v919
      %v992 = vunpack.c.l.b16 %v920
      %v993 = vunpack.c.h.b16 %v920
      %v994 = vunpack.c.l.b16 %v921
      %v995 = vunpack.c.l.b16 %v922
      %v996 = vunpack.c.h.b16 %v922
      %v997 = vunpack.c.l.b16 %v923
      %v998 = vunpack.c.l.b16 %v924
      %v999 = vunpack.c.h.b16 %v924
      %v1000 = vunpack.c.l.b16 %v925
      %v1001 = vunpack.c.l.b16 %v926
      %v1002 = vunpack.c.h.b16 %v926
      %v1003 = vunpack.c.l.b16 %v927
      %v1004 = vunpack.c.l.b16 %v928
      %v1005 = vunpack.c.h.b16 %v928
      %v1006 = vunpack.c.l.b16 %v929
      %v1007 = vunpack.c.l.b16 %v930
      %v1008 = vunpack.c.h.b16 %v930
      %v1009 = vunpack.c.l.b16 %v931
      %v1010 = vunpack.c.l.b16 %v932
      %v1011 = vunpack.c.h.b16 %v932
      %v1012 = vunpack.c.l.b16 %v933
      %v1013 = vunpack.c.l.b16 %v934
      %v1014 = vunpack.c.h.b16 %v934
      %v1015 = vunpack.c.l.b16 %v935
      %v1016 = vpack.c.b16 %v971, %v968
      %v1017 = vpack.c.b16 %v972, %v969
      %v1018 = vpack.c.b16 %v973, %v970
      %v1019 = vpack.c.b16 %v977, %v974
      %v1020 = vpack.c.b16 %v978, %v975
      %v1021 = vpack.c.b16 %v979, %v976
      %v1022 = vpack.c.b16 %v983, %v980
      %v1023 = vpack.c.b16 %v984, %v981
      %v1024 = vpack.c.b16 %v985, %v982
      %v1025 = vpack.c.b16 %v989, %v986
      %v1026 = vpack.c.b16 %v990, %v987
      %v1027 = vpack.c.b16 %v991, %v988
      %v1028 = vpack.c.b16 %v995, %v992
      %v1029 = vpack.c.b16 %v996, %v993
      %v1030 = vpack.c.b16 %v997, %v994
      %v1031 = vpack.c.b16 %v1001, %v998
      %v1032 = vpack.c.b16 %v1002, %v999
      %v1033 = vpack.c.b16 %v1003, %v1000
      %v1034 = vpack.c.b16 %v1007, %v1004
      %v1035 = vpack.c.b16 %v1008, %v1005
      %v1036 = vpack.c.b16 %v1009, %v1006
      %v1037 = vpack.c.b16 %v1013, %v1010
      %v1038 = vpack.c.b16 %v1014, %v1011
      %v1039 = vpack.c.b16 %v1015, %v1012
      %1064 = vmatpush.bf16.msra.mxu0 %v1037
      %1065 = vmatpush.bf16.msra.mxu0 %v1034
      %1066 = vmatpush.bf16.msra.mxu0 %v1031
      %1067 = vmatpush.bf16.msra.mxu0 %v1028
      %1068 = vmatpush.bf16.msra.mxu0 %v1025
      %1069 = vmatpush.bf16.msra.mxu0 %v1022
      %1070 = vmatpush.bf16.msra.mxu0 %v1019
      %1071 = vmatpush.bf16.msra.mxu0 %v1016
      %1072 = vmatmul.bf16.gmra.mxu0 %v902
      %v1073 = vpop.f32.mrf.mxu0
      %v1074 = vadd.f32 0.0, %v1073
      %v1075 = vpop.f32.mrf.mxu0
      %1076 = vdwg.mxu0
      %1077 = vmatpush.bf16.msra.mxu0 %v1038
      %1078 = vmatpush.bf16.msra.mxu0 %v1035
      %1079 = vmatpush.bf16.msra.mxu0 %v1032
      %1080 = vmatpush.bf16.msra.mxu0 %v1029
      %1081 = vmatpush.bf16.msra.mxu0 %v1026
      %1082 = vmatpush.bf16.msra.mxu0 %v1023
      %1083 = vmatpush.bf16.msra.mxu0 %v1020
      %1084 = vmatpush.bf16.msra.mxu0 %v1017
      %1085 = vmatmul.bf16.gmra.mxu0 %v902
      %v1086 = vpop.f32.mrf.mxu0
      %v1087 = vadd.f32 0.0, %v1086
      %v1088 = vpop.f32.mrf.mxu0
      %1089 = vdwg.mxu0
      %1090 = vmatpush.bf16.msra.mxu0 %v1039
      %1091 = vmatpush.bf16.msra.mxu0 %v1036
      %1092 = vmatpush.bf16.msra.mxu0 %v1033
      %1093 = vmatpush.bf16.msra.mxu0 %v1030
      %1094 = vmatpush.bf16.msra.mxu0 %v1027
      %1095 = vmatpush.bf16.msra.mxu0 %v1024
      %1096 = vmatpush.bf16.msra.mxu0 %v1021
      %1097 = vmatpush.bf16.msra.mxu0 %v1018
      %1098 = vmatmul.bf16.gmra.mxu0 %v902
      %v1099 = vpop.f32.mrf.mxu0
      %v1100 = vadd.f32 0.0, %v1099
      %v1101 = vpop.f32.mrf.mxu0
      %1102 = vdwg.mxu0
      %v1103 = vadd.f32 %v568, %v1074
      %v1104 = vxor.u32 %v1103, 2147483648
      %v1105 = vmul.f32 %v1104, 1.442695
      %v1106 = vpow.pop %v1105
      %v1107 = vadd.f32 %v1106, 1.0
      %v1108 = vrcp.pop %v1107
      %v1109 = vmul.f32 %v1107, %v1108
      %v1110 = vsub.f32 1.0, %v1109
      %v1111 = vmul.f32 %v1108, %v1110
      %v1112 = vadd.f32 %v1108, %v1111
      %vm1113 = vweird.f32 %v1107
      %vm1114 = vweird.f32 %v1108
      %vm1115 = vmor %vm1113, %vm1114
      %v1116 = vsel %vm1115, %v1108, %v1112
      %v1117 = vand.u32 2147483647, %v1107
      %vm1118 = vcmp.eq.f32.partialorder %v1117, 8.507059e+37
      %v1119 = vand.u32 %v1107, 2147483648
      %v1120 = vor.u32 1.1754944e-38, %v1119
      %v1121 = vsel %vm1118, %v1120, %v1116
      %v1122 = vmul.f32 1.0, %v1121
      %v1123 = vadd.f32 %v597, %v1087
      %v1124 = vxor.u32 %v1123, 2147483648
      %v1125 = vmul.f32 %v1124, 1.442695
      %v1126 = vpow.pop %v1125
      %v1127 = vadd.f32 %v1126, 1.0
      %v1128 = vrcp.pop %v1127
      %v1129 = vmul.f32 %v1127, %v1128
      %v1130 = vsub.f32 1.0, %v1129
      %v1131 = vmul.f32 %v1128, %v1130
      %v1132 = vadd.f32 %v1128, %v1131
      %vm1133 = vweird.f32 %v1127
      %vm1134 = vweird.f32 %v1128
      %vm1135 = vmor %vm1133, %vm1134
      %v1136 = vsel %vm1135, %v1128, %v1132
      %v1137 = vand.u32 2147483647, %v1127
      %vm1138 = vcmp.eq.f32.partialorder %v1137, 8.507059e+37
      %v1139 = vand.u32 %v1127, 2147483648
      %v1140 = vor.u32 1.1754944e-38, %v1139
      %v1141 = vsel %vm1138, %v1140, %v1136
      %v1142 = vmul.f32 1.0, %v1141
      %v1143 = vld [vmem:[%s4] sm:$0x1]
      %v1145 = vperm.slane %v1143, 0
      %v1147 = vadd.f32 %v1100, %v1145
      %v1148 = vmul.f32 %v1122, %v1147
      %v1149 = vadd.f32 %v626, %v1148
      %v1150 = vtanh.pop %v1149
      %v1151 = vsub.f32 1.0, %v1142
      %v1152 = vmul.f32 %v1151, %v1150
      %v1153 = vmul.f32 %v1142, %v901
      %v1154 = vadd.f32 %v1152, %v1153
      %s1155 = sadd.s32 %s896, 1
      %p1156 = scmp.lt.s32.totalorder %s1155, 16
      %s1157 = scalar_select %p1156, 1, 0
      %v1158 = vstv %s1157
      %vm1159 = vcmp.eq.s32.totalorder %v1158, 1
      %v1160 = vsel %vm1159, %v1154, %v901
      %v1161 = vpack.c.bf16 %v1160, %v1160
      %1162 = vst [vmem:[#allocation4 + $0x4] sm:$0xf] %v1161
      %v1163 = vld [vmem:[%s2] sm:$0xff]
      %v1164 = vld [vmem:[%s2 + $0x8] sm:$0xf]
      %v1165 = vld [vmem:[%s2 + $0xc] sm:$0xff]
      %v1166 = vld [vmem:[%s2 + $0x14] sm:$0xf]
      %v1167 = vld [vmem:[%s2 + $0x18] sm:$0xff]
      %v1168 = vld [vmem:[%s2 + $0x20] sm:$0xf]
      %v1169 = vld [vmem:[%s2 + $0x24] sm:$0xff]
      %v1170 = vld [vmem:[%s2 + $0x2c] sm:$0xf]
      %v1171 = vld [vmem:[%s2 + $0x30] sm:$0xff]
      %v1172 = vld [vmem:[%s2 + $0x38] sm:$0xf]
      %v1173 = vld [vmem:[%s2 + $0x3c] sm:$0xff]
      %v1174 = vld [vmem:[%s2 + $0x44] sm:$0xf]
      %v1175 = vld [vmem:[%s2 + $0x48] sm:$0xff]
      %v1176 = vld [vmem:[%s2 + $0x50] sm:$0xf]
      %v1177 = vld [vmem:[%s2 + $0x54] sm:$0xff]
      %v1178 = vld [vmem:[%s2 + $0x5c] sm:$0xf]
      %v1179 = vld [vmem:[%s2 + $0x60] sm:$0xff]
      %v1180 = vld [vmem:[%s2 + $0x68] sm:$0xf]
      %v1181 = vld [vmem:[%s2 + $0x6c] sm:$0xff]
      %v1182 = vld [vmem:[%s2 + $0x74] sm:$0xf]
      %v1183 = vld [vmem:[%s2 + $0x78] sm:$0xff]
      %v1184 = vld [vmem:[%s2 + $0x80] sm:$0xf]
      %v1185 = vld [vmem:[%s2 + $0x84] sm:$0xff]
      %v1186 = vld [vmem:[%s2 + $0x8c] sm:$0xf]
      %v1187 = vld [vmem:[%s2 + $0x90] sm:$0xff]
      %v1188 = vld [vmem:[%s2 + $0x98] sm:$0xf]
      %v1189 = vld [vmem:[%s2 + $0x9c] sm:$0xff]
      %v1190 = vld [vmem:[%s2 + $0xa4] sm:$0xf]
      %v1191 = vld [vmem:[%s2 + $0xa8] sm:$0xff]
      %v1192 = vld [vmem:[%s2 + $0xb0] sm:$0xf]
      %v1193 = vld [vmem:[%s2 + $0xb4] sm:$0xff]
      %v1194 = vld [vmem:[%s2 + $0xbc] sm:$0xf]
      %v1227 = vunpack.c.l.b16 %v1163
      %v1228 = vunpack.c.h.b16 %v1163
      %v1229 = vunpack.c.l.b16 %v1164
      %v1230 = vunpack.c.l.b16 %v1165
      %v1231 = vunpack.c.h.b16 %v1165
      %v1232 = vunpack.c.l.b16 %v1166
      %v1233 = vunpack.c.l.b16 %v1167
      %v1234 = vunpack.c.h.b16 %v1167
      %v1235 = vunpack.c.l.b16 %v1168
      %v1236 = vunpack.c.l.b16 %v1169
      %v1237 = vunpack.c.h.b16 %v1169
      %v1238 = vunpack.c.l.b16 %v1170
      %v1239 = vunpack.c.l.b16 %v1171
      %v1240 = vunpack.c.h.b16 %v1171
      %v1241 = vunpack.c.l.b16 %v1172
      %v1242 = vunpack.c.l.b16 %v1173
      %v1243 = vunpack.c.h.b16 %v1173
      %v1244 = vunpack.c.l.b16 %v1174
      %v1245 = vunpack.c.l.b16 %v1175
      %v1246 = vunpack.c.h.b16 %v1175
      %v1247 = vunpack.c.l.b16 %v1176
      %v1248 = vunpack.c.l.b16 %v1177
      %v1249 = vunpack.c.h.b16 %v1177
      %v1250 = vunpack.c.l.b16 %v1178
      %v1251 = vunpack.c.l.b16 %v1179
      %v1252 = vunpack.c.h.b16 %v1179
      %v1253 = vunpack.c.l.b16 %v1180
      %v1254 = vunpack.c.l.b16 %v1181
      %v1255 = vunpack.c.h.b16 %v1181
      %v1256 = vunpack.c.l.b16 %v1182
      %v1257 = vunpack.c.l.b16 %v1183
      %v1258 = vunpack.c.h.b16 %v1183
      %v1259 = vunpack.c.l.b16 %v1184
      %v1260 = vunpack.c.l.b16 %v1185
      %v1261 = vunpack.c.h.b16 %v1185
      %v1262 = vunpack.c.l.b16 %v1186
      %v1263 = vunpack.c.l.b16 %v1187
      %v1264 = vunpack.c.h.b16 %v1187
      %v1265 = vunpack.c.l.b16 %v1188
      %v1266 = vunpack.c.l.b16 %v1189
      %v1267 = vunpack.c.h.b16 %v1189
      %v1268 = vunpack.c.l.b16 %v1190
      %v1269 = vunpack.c.l.b16 %v1191
      %v1270 = vunpack.c.h.b16 %v1191
      %v1271 = vunpack.c.l.b16 %v1192
      %v1272 = vunpack.c.l.b16 %v1193
      %v1273 = vunpack.c.h.b16 %v1193
      %v1274 = vunpack.c.l.b16 %v1194
      %v1275 = vpack.c.b16 %v1230, %v1227
      %v1276 = vpack.c.b16 %v1231, %v1228
      %v1277 = vpack.c.b16 %v1232, %v1229
      %v1278 = vpack.c.b16 %v1236, %v1233
      %v1279 = vpack.c.b16 %v1237, %v1234
      %v1280 = vpack.c.b16 %v1238, %v1235
      %v1281 = vpack.c.b16 %v1242, %v1239
      %v1282 = vpack.c.b16 %v1243, %v1240
      %v1283 = vpack.c.b16 %v1244, %v1241
      %v1284 = vpack.c.b16 %v1248, %v1245
      %v1285 = vpack.c.b16 %v1249, %v1246
      %v1286 = vpack.c.b16 %v1250, %v1247
      %v1287 = vpack.c.b16 %v1254, %v1251
      %v1288 = vpack.c.b16 %v1255, %v1252
      %v1289 = vpack.c.b16 %v1256, %v1253
      %v1290 = vpack.c.b16 %v1260, %v1257
      %v1291 = vpack.c.b16 %v1261, %v1258
      %v1292 = vpack.c.b16 %v1262, %v1259
      %v1293 = vpack.c.b16 %v1266, %v1263
      %v1294 = vpack.c.b16 %v1267, %v1264
      %v1295 = vpack.c.b16 %v1268, %v1265
      %v1296 = vpack.c.b16 %v1272, %v1269
      %v1297 = vpack.c.b16 %v1273, %v1270
      %v1298 = vpack.c.b16 %v1274, %v1271
      %1323 = vmatpush.bf16.msra.mxu0 %v1296
      %1324 = vmatpush.bf16.msra.mxu0 %v1293
      %1325 = vmatpush.bf16.msra.mxu0 %v1290
      %1326 = vmatpush.bf16.msra.mxu0 %v1287
      %1327 = vmatpush.bf16.msra.mxu0 %v1284
      %1328 = vmatpush.bf16.msra.mxu0 %v1281
      %1329 = vmatpush.bf16.msra.mxu0 %v1278
      %1330 = vmatpush.bf16.msra.mxu0 %v1275
      %1331 = vmatmul.bf16.gmra.mxu0 %v1161
      %v1332 = vpop.f32.mrf.mxu0
      %v1333 = vadd.f32 0.0, %v1332
      %v1334 = vpop.f32.mrf.mxu0
      %1335 = vdwg.mxu0
      %1336 = vmatpush.bf16.msra.mxu0 %v1297
      %1337 = vmatpush.bf16.msra.mxu0 %v1294
      %1338 = vmatpush.bf16.msra.mxu0 %v1291
      %1339 = vmatpush.bf16.msra.mxu0 %v1288
      %1340 = vmatpush.bf16.msra.mxu0 %v1285
      %1341 = vmatpush.bf16.msra.mxu0 %v1282
      %1342 = vmatpush.bf16.msra.mxu0 %v1279
      %1343 = vmatpush.bf16.msra.mxu0 %v1276
      %1344 = vmatmul.bf16.gmra.mxu0 %v1161
      %v1345 = vpop.f32.mrf.mxu0
      %v1346 = vadd.f32 0.0, %v1345
      %v1347 = vpop.f32.mrf.mxu0
      %1348 = vdwg.mxu0
      %1349 = vmatpush.bf16.msra.mxu0 %v1298
      %1350 = vmatpush.bf16.msra.mxu0 %v1295
      %1351 = vmatpush.bf16.msra.mxu0 %v1292
      %1352 = vmatpush.bf16.msra.mxu0 %v1289
      %1353 = vmatpush.bf16.msra.mxu0 %v1286
      %1354 = vmatpush.bf16.msra.mxu0 %v1283
      %1355 = vmatpush.bf16.msra.mxu0 %v1280
      %1356 = vmatpush.bf16.msra.mxu0 %v1277
      %1357 = vmatmul.bf16.gmra.mxu0 %v1161
      %v1358 = vpop.f32.mrf.mxu0
      %v1359 = vadd.f32 0.0, %v1358
      %v1360 = vpop.f32.mrf.mxu0
      %1361 = vdwg.mxu0
      %v1362 = vadd.f32 %v571, %v1333
      %v1363 = vxor.u32 %v1362, 2147483648
      %v1364 = vmul.f32 %v1363, 1.442695
      %v1365 = vpow.pop %v1364
      %v1366 = vadd.f32 %v1365, 1.0
      %v1367 = vrcp.pop %v1366
      %v1368 = vmul.f32 %v1366, %v1367
      %v1369 = vsub.f32 1.0, %v1368
      %v1370 = vmul.f32 %v1367, %v1369
      %v1371 = vadd.f32 %v1367, %v1370
      %vm1372 = vweird.f32 %v1366
      %vm1373 = vweird.f32 %v1367
      %vm1374 = vmor %vm1372, %vm1373
      %v1375 = vsel %vm1374, %v1367, %v1371
      %v1376 = vand.u32 2147483647, %v1366
      %vm1377 = vcmp.eq.f32.partialorder %v1376, 8.507059e+37
      %v1378 = vand.u32 %v1366, 2147483648
      %v1379 = vor.u32 1.1754944e-38, %v1378
      %v1380 = vsel %vm1377, %v1379, %v1375
      %v1381 = vmul.f32 1.0, %v1380
      %v1382 = vadd.f32 %v600, %v1346
      %v1383 = vxor.u32 %v1382, 2147483648
      %v1384 = vmul.f32 %v1383, 1.442695
      %v1385 = vpow.pop %v1384
      %v1386 = vadd.f32 %v1385, 1.0
      %v1387 = vrcp.pop %v1386
      %v1388 = vmul.f32 %v1386, %v1387
      %v1389 = vsub.f32 1.0, %v1388
      %v1390 = vmul.f32 %v1387, %v1389
      %v1391 = vadd.f32 %v1387, %v1390
      %vm1392 = vweird.f32 %v1386
      %vm1393 = vweird.f32 %v1387
      %vm1394 = vmor %vm1392, %vm1393
      %v1395 = vsel %vm1394, %v1387, %v1391
      %v1396 = vand.u32 2147483647, %v1386
      %vm1397 = vcmp.eq.f32.partialorder %v1396, 8.507059e+37
      %v1398 = vand.u32 %v1386, 2147483648
      %v1399 = vor.u32 1.1754944e-38, %v1398
      %v1400 = vsel %vm1397, %v1399, %v1395
      %v1401 = vmul.f32 1.0, %v1400
      %v1402 = vld [vmem:[%s4] sm:$0x1]
      %v1404 = vperm.slane %v1402, 0
      %v1406 = vadd.f32 %v1359, %v1404
      %v1407 = vmul.f32 %v1381, %v1406
      %v1408 = vadd.f32 %v629, %v1407
      %v1409 = vtanh.pop %v1408
      %v1410 = vsub.f32 1.0, %v1401
      %v1411 = vmul.f32 %v1410, %v1409
      %v1412 = vmul.f32 %v1401, %v1160
      %v1413 = vadd.f32 %v1411, %v1412
      %s1414 = sadd.s32 %s896, 2
      %p1415 = scmp.lt.s32.totalorder %s1414, 16
      %s1416 = scalar_select %p1415, 1, 0
      %v1417 = vstv %s1416
      %vm1418 = vcmp.eq.s32.totalorder %v1417, 1
      %v1419 = vsel %vm1418, %v1413, %v1160
      %v1420 = vpack.c.bf16 %v1419, %v1419
      %1421 = vst [vmem:[#allocation4 + $0x8] sm:$0xf] %v1420
      %v1422 = vld [vmem:[%s2] sm:$0xff]
      %v1423 = vld [vmem:[%s2 + $0x8] sm:$0xf]
      %v1424 = vld [vmem:[%s2 + $0xc] sm:$0xff]
      %v1425 = vld [vmem:[%s2 + $0x14] sm:$0xf]
      %v1426 = vld [vmem:[%s2 + $0x18] sm:$0xff]
      %v1427 = vld [vmem:[%s2 + $0x20] sm:$0xf]
      %v1428 = vld [vmem:[%s2 + $0x24] sm:$0xff]
      %v1429 = vld [vmem:[%s2 + $0x2c] sm:$0xf]
      %v1430 = vld [vmem:[%s2 + $0x30] sm:$0xff]
      %v1431 = vld [vmem:[%s2 + $0x38] sm:$0xf]
      %v1432 = vld [vmem:[%s2 + $0x3c] sm:$0xff]
      %v1433 = vld [vmem:[%s2 + $0x44] sm:$0xf]
      %v1434 = vld [vmem:[%s2 + $0x48] sm:$0xff]
      %v1435 = vld [vmem:[%s2 + $0x50] sm:$0xf]
      %v1436 = vld [vmem:[%s2 + $0x54] sm:$0xff]
      %v1437 = vld [vmem:[%s2 + $0x5c] sm:$0xf]
      %v1438 = vld [vmem:[%s2 + $0x60] sm:$0xff]
      %v1439 = vld [vmem:[%s2 + $0x68] sm:$0xf]
      %v1440 = vld [vmem:[%s2 + $0x6c] sm:$0xff]
      %v1441 = vld [vmem:[%s2 + $0x74] sm:$0xf]
      %v1442 = vld [vmem:[%s2 + $0x78] sm:$0xff]
      %v1443 = vld [vmem:[%s2 + $0x80] sm:$0xf]
      %v1444 = vld [vmem:[%s2 + $0x84] sm:$0xff]
      %v1445 = vld [vmem:[%s2 + $0x8c] sm:$0xf]
      %v1446 = vld [vmem:[%s2 + $0x90] sm:$0xff]
      %v1447 = vld [vmem:[%s2 + $0x98] sm:$0xf]
      %v1448 = vld [vmem:[%s2 + $0x9c] sm:$0xff]
      %v1449 = vld [vmem:[%s2 + $0xa4] sm:$0xf]
      %v1450 = vld [vmem:[%s2 + $0xa8] sm:$0xff]
      %v1451 = vld [vmem:[%s2 + $0xb0] sm:$0xf]
      %v1452 = vld [vmem:[%s2 + $0xb4] sm:$0xff]
      %v1453 = vld [vmem:[%s2 + $0xbc] sm:$0xf]
      %v1486 = vunpack.c.l.b16 %v1422
      %v1487 = vunpack.c.h.b16 %v1422
      %v1488 = vunpack.c.l.b16 %v1423
      %v1489 = vunpack.c.l.b16 %v1424
      %v1490 = vunpack.c.h.b16 %v1424
      %v1491 = vunpack.c.l.b16 %v1425
      %v1492 = vunpack.c.l.b16 %v1426
      %v1493 = vunpack.c.h.b16 %v1426
      %v1494 = vunpack.c.l.b16 %v1427
      %v1495 = vunpack.c.l.b16 %v1428
      %v1496 = vunpack.c.h.b16 %v1428
      %v1497 = vunpack.c.l.b16 %v1429
      %v1498 = vunpack.c.l.b16 %v1430
      %v1499 = vunpack.c.h.b16 %v1430
      %v1500 = vunpack.c.l.b16 %v1431
      %v1501 = vunpack.c.l.b16 %v1432
      %v1502 = vunpack.c.h.b16 %v1432
      %v1503 = vunpack.c.l.b16 %v1433
      %v1504 = vunpack.c.l.b16 %v1434
      %v1505 = vunpack.c.h.b16 %v1434
      %v1506 = vunpack.c.l.b16 %v1435
      %v1507 = vunpack.c.l.b16 %v1436
      %v1508 = vunpack.c.h.b16 %v1436
      %v1509 = vunpack.c.l.b16 %v1437
      %v1510 = vunpack.c.l.b16 %v1438
      %v1511 = vunpack.c.h.b16 %v1438
      %v1512 = vunpack.c.l.b16 %v1439
      %v1513 = vunpack.c.l.b16 %v1440
      %v1514 = vunpack.c.h.b16 %v1440
      %v1515 = vunpack.c.l.b16 %v1441
      %v1516 = vunpack.c.l.b16 %v1442
      %v1517 = vunpack.c.h.b16 %v1442
      %v1518 = vunpack.c.l.b16 %v1443
      %v1519 = vunpack.c.l.b16 %v1444
      %v1520 = vunpack.c.h.b16 %v1444
      %v1521 = vunpack.c.l.b16 %v1445
      %v1522 = vunpack.c.l.b16 %v1446
      %v1523 = vunpack.c.h.b16 %v1446
      %v1524 = vunpack.c.l.b16 %v1447
      %v1525 = vunpack.c.l.b16 %v1448
      %v1526 = vunpack.c.h.b16 %v1448
      %v1527 = vunpack.c.l.b16 %v1449
      %v1528 = vunpack.c.l.b16 %v1450
      %v1529 = vunpack.c.h.b16 %v1450
      %v1530 = vunpack.c.l.b16 %v1451
      %v1531 = vunpack.c.l.b16 %v1452
      %v1532 = vunpack.c.h.b16 %v1452
      %v1533 = vunpack.c.l.b16 %v1453
      %v1534 = vpack.c.b16 %v1489, %v1486
      %v1535 = vpack.c.b16 %v1490, %v1487
      %v1536 = vpack.c.b16 %v1491, %v1488
      %v1537 = vpack.c.b16 %v1495, %v1492
      %v1538 = vpack.c.b16 %v1496, %v1493
      %v1539 = vpack.c.b16 %v1497, %v1494
      %v1540 = vpack.c.b16 %v1501, %v1498
      %v1541 = vpack.c.b16 %v1502, %v1499
      %v1542 = vpack.c.b16 %v1503, %v1500
      %v1543 = vpack.c.b16 %v1507, %v1504
      %v1544 = vpack.c.b16 %v1508, %v1505
      %v1545 = vpack.c.b16 %v1509, %v1506
      %v1546 = vpack.c.b16 %v1513, %v1510
      %v1547 = vpack.c.b16 %v1514, %v1511
      %v1548 = vpack.c.b16 %v1515, %v1512
      %v1549 = vpack.c.b16 %v1519, %v1516
      %v1550 = vpack.c.b16 %v1520, %v1517
      %v1551 = vpack.c.b16 %v1521, %v1518
      %v1552 = vpack.c.b16 %v1525, %v1522
      %v1553 = vpack.c.b16 %v1526, %v1523
      %v1554 = vpack.c.b16 %v1527, %v1524
      %v1555 = vpack.c.b16 %v1531, %v1528
      %v1556 = vpack.c.b16 %v1532, %v1529
      %v1557 = vpack.c.b16 %v1533, %v1530
      %1582 = vmatpush.bf16.msra.mxu0 %v1555
      %1583 = vmatpush.bf16.msra.mxu0 %v1552
      %1584 = vmatpush.bf16.msra.mxu0 %v1549
      %1585 = vmatpush.bf16.msra.mxu0 %v1546
      %1586 = vmatpush.bf16.msra.mxu0 %v1543
      %1587 = vmatpush.bf16.msra.mxu0 %v1540
      %1588 = vmatpush.bf16.msra.mxu0 %v1537
      %1589 = vmatpush.bf16.msra.mxu0 %v1534
      %1590 = vmatmul.bf16.gmra.mxu0 %v1420
      %v1591 = vpop.f32.mrf.mxu0
      %v1592 = vadd.f32 0.0, %v1591
      %v1593 = vpop.f32.mrf.mxu0
      %1594 = vdwg.mxu0
      %1595 = vmatpush.bf16.msra.mxu0 %v1556
      %1596 = vmatpush.bf16.msra.mxu0 %v1553
      %1597 = vmatpush.bf16.msra.mxu0 %v1550
      %1598 = vmatpush.bf16.msra.mxu0 %v1547
      %1599 = vmatpush.bf16.msra.mxu0 %v1544
      %1600 = vmatpush.bf16.msra.mxu0 %v1541
      %1601 = vmatpush.bf16.msra.mxu0 %v1538
      %1602 = vmatpush.bf16.msra.mxu0 %v1535
      %1603 = vmatmul.bf16.gmra.mxu0 %v1420
      %v1604 = vpop.f32.mrf.mxu0
      %v1605 = vadd.f32 0.0, %v1604
      %v1606 = vpop.f32.mrf.mxu0
      %1607 = vdwg.mxu0
      %1608 = vmatpush.bf16.msra.mxu0 %v1557
      %1609 = vmatpush.bf16.msra.mxu0 %v1554
      %1610 = vmatpush.bf16.msra.mxu0 %v1551
      %1611 = vmatpush.bf16.msra.mxu0 %v1548
      %1612 = vmatpush.bf16.msra.mxu0 %v1545
      %1613 = vmatpush.bf16.msra.mxu0 %v1542
      %1614 = vmatpush.bf16.msra.mxu0 %v1539
      %1615 = vmatpush.bf16.msra.mxu0 %v1536
      %1616 = vmatmul.bf16.gmra.mxu0 %v1420
      %v1617 = vpop.f32.mrf.mxu0
      %v1618 = vadd.f32 0.0, %v1617
      %v1619 = vpop.f32.mrf.mxu0
      %1620 = vdwg.mxu0
      %v1621 = vadd.f32 %v573, %v1592
      %v1622 = vxor.u32 %v1621, 2147483648
      %v1623 = vmul.f32 %v1622, 1.442695
      %v1624 = vpow.pop %v1623
      %v1625 = vadd.f32 %v1624, 1.0
      %v1626 = vrcp.pop %v1625
      %v1627 = vmul.f32 %v1625, %v1626
      %v1628 = vsub.f32 1.0, %v1627
      %v1629 = vmul.f32 %v1626, %v1628
      %v1630 = vadd.f32 %v1626, %v1629
      %vm1631 = vweird.f32 %v1625
      %vm1632 = vweird.f32 %v1626
      %vm1633 = vmor %vm1631, %vm1632
      %v1634 = vsel %vm1633, %v1626, %v1630
      %v1635 = vand.u32 2147483647, %v1625
      %vm1636 = vcmp.eq.f32.partialorder %v1635, 8.507059e+37
      %v1637 = vand.u32 %v1625, 2147483648
      %v1638 = vor.u32 1.1754944e-38, %v1637
      %v1639 = vsel %vm1636, %v1638, %v1634
      %v1640 = vmul.f32 1.0, %v1639
      %v1641 = vadd.f32 %v602, %v1605
      %v1642 = vxor.u32 %v1641, 2147483648
      %v1643 = vmul.f32 %v1642, 1.442695
      %v1644 = vpow.pop %v1643
      %v1645 = vadd.f32 %v1644, 1.0
      %v1646 = vrcp.pop %v1645
      %v1647 = vmul.f32 %v1645, %v1646
      %v1648 = vsub.f32 1.0, %v1647
      %v1649 = vmul.f32 %v1646, %v1648
      %v1650 = vadd.f32 %v1646, %v1649
      %vm1651 = vweird.f32 %v1645
      %vm1652 = vweird.f32 %v1646
      %vm1653 = vmor %vm1651, %vm1652
      %v1654 = vsel %vm1653, %v1646, %v1650
      %v1655 = vand.u32 2147483647, %v1645
      %vm1656 = vcmp.eq.f32.partialorder %v1655, 8.507059e+37
      %v1657 = vand.u32 %v1645, 2147483648
      %v1658 = vor.u32 1.1754944e-38, %v1657
      %v1659 = vsel %vm1656, %v1658, %v1654
      %v1660 = vmul.f32 1.0, %v1659
      %v1661 = vld [vmem:[%s4] sm:$0x1]
      %v1663 = vperm.slane %v1661, 0
      %v1665 = vadd.f32 %v1618, %v1663
      %v1666 = vmul.f32 %v1640, %v1665
      %v1667 = vadd.f32 %v631, %v1666
      %v1668 = vtanh.pop %v1667
      %v1669 = vsub.f32 1.0, %v1660
      %v1670 = vmul.f32 %v1669, %v1668
      %v1671 = vmul.f32 %v1660, %v1419
      %v1672 = vadd.f32 %v1670, %v1671
      %s1673 = sadd.s32 %s896, 3
      %p1674 = scmp.lt.s32.totalorder %s1673, 16
      %s1675 = scalar_select %p1674, 1, 0
      %v1676 = vstv %s1675
      %vm1677 = vcmp.eq.s32.totalorder %v1676, 1
      %v1678 = vsel %vm1677, %v1672, %v1419
      %v1679 = vpack.c.bf16 %v1678, %v1678
      %1680 = vst [vmem:[#allocation4 + $0xc] sm:$0xf] %v1679
      %v1681 = vld [vmem:[%s2] sm:$0xff]
      %v1682 = vld [vmem:[%s2 + $0x8] sm:$0xf]
      %v1683 = vld [vmem:[%s2 + $0xc] sm:$0xff]
      %v1684 = vld [vmem:[%s2 + $0x14] sm:$0xf]
      %v1685 = vld [vmem:[%s2 + $0x18] sm:$0xff]
      %v1686 = vld [vmem:[%s2 + $0x20] sm:$0xf]
      %v1687 = vld [vmem:[%s2 + $0x24] sm:$0xff]
      %v1688 = vld [vmem:[%s2 + $0x2c] sm:$0xf]
      %v1689 = vld [vmem:[%s2 + $0x30] sm:$0xff]
      %v1690 = vld [vmem:[%s2 + $0x38] sm:$0xf]
      %v1691 = vld [vmem:[%s2 + $0x3c] sm:$0xff]
      %v1692 = vld [vmem:[%s2 + $0x44] sm:$0xf]
      %v1693 = vld [vmem:[%s2 + $0x48] sm:$0xff]
      %v1694 = vld [vmem:[%s2 + $0x50] sm:$0xf]
      %v1695 = vld [vmem:[%s2 + $0x54] sm:$0xff]
      %v1696 = vld [vmem:[%s2 + $0x5c] sm:$0xf]
      %v1697 = vld [vmem:[%s2 + $0x60] sm:$0xff]
      %v1698 = vld [vmem:[%s2 + $0x68] sm:$0xf]
      %v1699 = vld [vmem:[%s2 + $0x6c] sm:$0xff]
      %v1700 = vld [vmem:[%s2 + $0x74] sm:$0xf]
      %v1701 = vld [vmem:[%s2 + $0x78] sm:$0xff]
      %v1702 = vld [vmem:[%s2 + $0x80] sm:$0xf]
      %v1703 = vld [vmem:[%s2 + $0x84] sm:$0xff]
      %v1704 = vld [vmem:[%s2 + $0x8c] sm:$0xf]
      %v1705 = vld [vmem:[%s2 + $0x90] sm:$0xff]
      %v1706 = vld [vmem:[%s2 + $0x98] sm:$0xf]
      %v1707 = vld [vmem:[%s2 + $0x9c] sm:$0xff]
      %v1708 = vld [vmem:[%s2 + $0xa4] sm:$0xf]
      %v1709 = vld [vmem:[%s2 + $0xa8] sm:$0xff]
      %v1710 = vld [vmem:[%s2 + $0xb0] sm:$0xf]
      %v1711 = vld [vmem:[%s2 + $0xb4] sm:$0xff]
      %v1712 = vld [vmem:[%s2 + $0xbc] sm:$0xf]
      %v1745 = vunpack.c.l.b16 %v1681
      %v1746 = vunpack.c.h.b16 %v1681
      %v1747 = vunpack.c.l.b16 %v1682
      %v1748 = vunpack.c.l.b16 %v1683
      %v1749 = vunpack.c.h.b16 %v1683
      %v1750 = vunpack.c.l.b16 %v1684
      %v1751 = vunpack.c.l.b16 %v1685
      %v1752 = vunpack.c.h.b16 %v1685
      %v1753 = vunpack.c.l.b16 %v1686
      %v1754 = vunpack.c.l.b16 %v1687
      %v1755 = vunpack.c.h.b16 %v1687
      %v1756 = vunpack.c.l.b16 %v1688
      %v1757 = vunpack.c.l.b16 %v1689
      %v1758 = vunpack.c.h.b16 %v1689
      %v1759 = vunpack.c.l.b16 %v1690
      %v1760 = vunpack.c.l.b16 %v1691
      %v1761 = vunpack.c.h.b16 %v1691
      %v1762 = vunpack.c.l.b16 %v1692
      %v1763 = vunpack.c.l.b16 %v1693
      %v1764 = vunpack.c.h.b16 %v1693
      %v1765 = vunpack.c.l.b16 %v1694
      %v1766 = vunpack.c.l.b16 %v1695
      %v1767 = vunpack.c.h.b16 %v1695
      %v1768 = vunpack.c.l.b16 %v1696
      %v1769 = vunpack.c.l.b16 %v1697
      %v1770 = vunpack.c.h.b16 %v1697
      %v1771 = vunpack.c.l.b16 %v1698
      %v1772 = vunpack.c.l.b16 %v1699
      %v1773 = vunpack.c.h.b16 %v1699
      %v1774 = vunpack.c.l.b16 %v1700
      %v1775 = vunpack.c.l.b16 %v1701
      %v1776 = vunpack.c.h.b16 %v1701
      %v1777 = vunpack.c.l.b16 %v1702
      %v1778 = vunpack.c.l.b16 %v1703
      %v1779 = vunpack.c.h.b16 %v1703
      %v1780 = vunpack.c.l.b16 %v1704
      %v1781 = vunpack.c.l.b16 %v1705
      %v1782 = vunpack.c.h.b16 %v1705
      %v1783 = vunpack.c.l.b16 %v1706
      %v1784 = vunpack.c.l.b16 %v1707
      %v1785 = vunpack.c.h.b16 %v1707
      %v1786 = vunpack.c.l.b16 %v1708
      %v1787 = vunpack.c.l.b16 %v1709
      %v1788 = vunpack.c.h.b16 %v1709
      %v1789 = vunpack.c.l.b16 %v1710
      %v1790 = vunpack.c.l.b16 %v1711
      %v1791 = vunpack.c.h.b16 %v1711
      %v1792 = vunpack.c.l.b16 %v1712
      %v1793 = vpack.c.b16 %v1748, %v1745
      %v1794 = vpack.c.b16 %v1749, %v1746
      %v1795 = vpack.c.b16 %v1750, %v1747
      %v1796 = vpack.c.b16 %v1754, %v1751
      %v1797 = vpack.c.b16 %v1755, %v1752
      %v1798 = vpack.c.b16 %v1756, %v1753
      %v1799 = vpack.c.b16 %v1760, %v1757
      %v1800 = vpack.c.b16 %v1761, %v1758
      %v1801 = vpack.c.b16 %v1762, %v1759
      %v1802 = vpack.c.b16 %v1766, %v1763
      %v1803 = vpack.c.b16 %v1767, %v1764
      %v1804 = vpack.c.b16 %v1768, %v1765
      %v1805 = vpack.c.b16 %v1772, %v1769
      %v1806 = vpack.c.b16 %v1773, %v1770
      %v1807 = vpack.c.b16 %v1774, %v1771
      %v1808 = vpack.c.b16 %v1778, %v1775
      %v1809 = vpack.c.b16 %v1779, %v1776
      %v1810 = vpack.c.b16 %v1780, %v1777
      %v1811 = vpack.c.b16 %v1784, %v1781
      %v1812 = vpack.c.b16 %v1785, %v1782
      %v1813 = vpack.c.b16 %v1786, %v1783
      %v1814 = vpack.c.b16 %v1790, %v1787
      %v1815 = vpack.c.b16 %v1791, %v1788
      %v1816 = vpack.c.b16 %v1792, %v1789
      %1841 = vmatpush.bf16.msra.mxu0 %v1814
      %1842 = vmatpush.bf16.msra.mxu0 %v1811
      %1843 = vmatpush.bf16.msra.mxu0 %v1808
      %1844 = vmatpush.bf16.msra.mxu0 %v1805
      %1845 = vmatpush.bf16.msra.mxu0 %v1802
      %1846 = vmatpush.bf16.msra.mxu0 %v1799
      %1847 = vmatpush.bf16.msra.mxu0 %v1796
      %1848 = vmatpush.bf16.msra.mxu0 %v1793
      %1849 = vmatmul.bf16.gmra.mxu0 %v1679
      %v1850 = vpop.f32.mrf.mxu0
      %v1851 = vadd.f32 0.0, %v1850
      %v1852 = vpop.f32.mrf.mxu0
      %1853 = vdwg.mxu0
      %1854 = vmatpush.bf16.msra.mxu0 %v1815
      %1855 = vmatpush.bf16.msra.mxu0 %v1812
      %1856 = vmatpush.bf16.msra.mxu0 %v1809
      %1857 = vmatpush.bf16.msra.mxu0 %v1806
      %1858 = vmatpush.bf16.msra.mxu0 %v1803
      %1859 = vmatpush.bf16.msra.mxu0 %v1800
      %1860 = vmatpush.bf16.msra.mxu0 %v1797
      %1861 = vmatpush.bf16.msra.mxu0 %v1794
      %1862 = vmatmul.bf16.gmra.mxu0 %v1679
      %v1863 = vpop.f32.mrf.mxu0
      %v1864 = vadd.f32 0.0, %v1863
      %v1865 = vpop.f32.mrf.mxu0
      %1866 = vdwg.mxu0
      %1867 = vmatpush.bf16.msra.mxu0 %v1816
      %1868 = vmatpush.bf16.msra.mxu0 %v1813
      %1869 = vmatpush.bf16.msra.mxu0 %v1810
      %1870 = vmatpush.bf16.msra.mxu0 %v1807
      %1871 = vmatpush.bf16.msra.mxu0 %v1804
      %1872 = vmatpush.bf16.msra.mxu0 %v1801
      %1873 = vmatpush.bf16.msra.mxu0 %v1798
      %1874 = vmatpush.bf16.msra.mxu0 %v1795
      %1875 = vmatmul.bf16.gmra.mxu0 %v1679
      %v1876 = vpop.f32.mrf.mxu0
      %v1877 = vadd.f32 0.0, %v1876
      %v1878 = vpop.f32.mrf.mxu0
      %1879 = vdwg.mxu0
      %v1880 = vadd.f32 %v576, %v1851
      %v1881 = vxor.u32 %v1880, 2147483648
      %v1882 = vmul.f32 %v1881, 1.442695
      %v1883 = vpow.pop %v1882
      %v1884 = vadd.f32 %v1883, 1.0
      %v1885 = vrcp.pop %v1884
      %v1886 = vmul.f32 %v1884, %v1885
      %v1887 = vsub.f32 1.0, %v1886
      %v1888 = vmul.f32 %v1885, %v1887
      %v1889 = vadd.f32 %v1885, %v1888
      %vm1890 = vweird.f32 %v1884
      %vm1891 = vweird.f32 %v1885
      %vm1892 = vmor %vm1890, %vm1891
      %v1893 = vsel %vm1892, %v1885, %v1889
      %v1894 = vand.u32 2147483647, %v1884
      %vm1895 = vcmp.eq.f32.partialorder %v1894, 8.507059e+37
      %v1896 = vand.u32 %v1884, 2147483648
      %v1897 = vor.u32 1.1754944e-38, %v1896
      %v1898 = vsel %vm1895, %v1897, %v1893
      %v1899 = vmul.f32 1.0, %v1898
      %v1900 = vadd.f32 %v605, %v1864
      %v1901 = vxor.u32 %v1900, 2147483648
      %v1902 = vmul.f32 %v1901, 1.442695
      %v1903 = vpow.pop %v1902
      %v1904 = vadd.f32 %v1903, 1.0
      %v1905 = vrcp.pop %v1904
      %v1906 = vmul.f32 %v1904, %v1905
      %v1907 = vsub.f32 1.0, %v1906
      %v1908 = vmul.f32 %v1905, %v1907
      %v1909 = vadd.f32 %v1905, %v1908
      %vm1910 = vweird.f32 %v1904
      %vm1911 = vweird.f32 %v1905
      %vm1912 = vmor %vm1910, %vm1911
      %v1913 = vsel %vm1912, %v1905, %v1909
      %v1914 = vand.u32 2147483647, %v1904
      %vm1915 = vcmp.eq.f32.partialorder %v1914, 8.507059e+37
      %v1916 = vand.u32 %v1904, 2147483648
      %v1917 = vor.u32 1.1754944e-38, %v1916
      %v1918 = vsel %vm1915, %v1917, %v1913
      %v1919 = vmul.f32 1.0, %v1918
      %v1920 = vld [vmem:[%s4] sm:$0x1]
      %v1922 = vperm.slane %v1920, 0
      %v1924 = vadd.f32 %v1877, %v1922
      %v1925 = vmul.f32 %v1899, %v1924
      %v1926 = vadd.f32 %v634, %v1925
      %v1927 = vtanh.pop %v1926
      %v1928 = vsub.f32 1.0, %v1919
      %v1929 = vmul.f32 %v1928, %v1927
      %v1930 = vmul.f32 %v1919, %v1678
      %v1931 = vadd.f32 %v1929, %v1930
      %s1932 = sadd.s32 %s896, 4
      %p1933 = scmp.lt.s32.totalorder %s1932, 16
      %s1934 = scalar_select %p1933, 1, 0
      %v1935 = vstv %s1934
      %vm1936 = vcmp.eq.s32.totalorder %v1935, 1
      %v1937 = vsel %vm1936, %v1931, %v1678
      %v1938 = vpack.c.bf16 %v1937, %v1937
      %1939 = vst [vmem:[#allocation4 + $0x10] sm:$0xf] %v1938
      %v1940 = vld [vmem:[%s2] sm:$0xff]
      %v1941 = vld [vmem:[%s2 + $0x8] sm:$0xf]
      %v1942 = vld [vmem:[%s2 + $0xc] sm:$0xff]
      %v1943 = vld [vmem:[%s2 + $0x14] sm:$0xf]
      %v1944 = vld [vmem:[%s2 + $0x18] sm:$0xff]
      %v1945 = vld [vmem:[%s2 + $0x20] sm:$0xf]
      %v1946 = vld [vmem:[%s2 + $0x24] sm:$0xff]
      %v1947 = vld [vmem:[%s2 + $0x2c] sm:$0xf]
      %v1948 = vld [vmem:[%s2 + $0x30] sm:$0xff]
      %v1949 = vld [vmem:[%s2 + $0x38] sm:$0xf]
      %v1950 = vld [vmem:[%s2 + $0x3c] sm:$0xff]
      %v1951 = vld [vmem:[%s2 + $0x44] sm:$0xf]
      %v1952 = vld [vmem:[%s2 + $0x48] sm:$0xff]
      %v1953 = vld [vmem:[%s2 + $0x50] sm:$0xf]
      %v1954 = vld [vmem:[%s2 + $0x54] sm:$0xff]
      %v1955 = vld [vmem:[%s2 + $0x5c] sm:$0xf]
      %v1956 = vld [vmem:[%s2 + $0x60] sm:$0xff]
      %v1957 = vld [vmem:[%s2 + $0x68] sm:$0xf]
      %v1958 = vld [vmem:[%s2 + $0x6c] sm:$0xff]
      %v1959 = vld [vmem:[%s2 + $0x74] sm:$0xf]
      %v1960 = vld [vmem:[%s2 + $0x78] sm:$0xff]
      %v1961 = vld [vmem:[%s2 + $0x80] sm:$0xf]
      %v1962 = vld [vmem:[%s2 + $0x84] sm:$0xff]
      %v1963 = vld [vmem:[%s2 + $0x8c] sm:$0xf]
      %v1964 = vld [vmem:[%s2 + $0x90] sm:$0xff]
      %v1965 = vld [vmem:[%s2 + $0x98] sm:$0xf]
      %v1966 = vld [vmem:[%s2 + $0x9c] sm:$0xff]
      %v1967 = vld [vmem:[%s2 + $0xa4] sm:$0xf]
      %v1968 = vld [vmem:[%s2 + $0xa8] sm:$0xff]
      %v1969 = vld [vmem:[%s2 + $0xb0] sm:$0xf]
      %v1970 = vld [vmem:[%s2 + $0xb4] sm:$0xff]
      %v1971 = vld [vmem:[%s2 + $0xbc] sm:$0xf]
      %v2004 = vunpack.c.l.b16 %v1940
      %v2005 = vunpack.c.h.b16 %v1940
      %v2006 = vunpack.c.l.b16 %v1941
      %v2007 = vunpack.c.l.b16 %v1942
      %v2008 = vunpack.c.h.b16 %v1942
      %v2009 = vunpack.c.l.b16 %v1943
      %v2010 = vunpack.c.l.b16 %v1944
      %v2011 = vunpack.c.h.b16 %v1944
      %v2012 = vunpack.c.l.b16 %v1945
      %v2013 = vunpack.c.l.b16 %v1946
      %v2014 = vunpack.c.h.b16 %v1946
      %v2015 = vunpack.c.l.b16 %v1947
      %v2016 = vunpack.c.l.b16 %v1948
      %v2017 = vunpack.c.h.b16 %v1948
      %v2018 = vunpack.c.l.b16 %v1949
      %v2019 = vunpack.c.l.b16 %v1950
      %v2020 = vunpack.c.h.b16 %v1950
      %v2021 = vunpack.c.l.b16 %v1951
      %v2022 = vunpack.c.l.b16 %v1952
      %v2023 = vunpack.c.h.b16 %v1952
      %v2024 = vunpack.c.l.b16 %v1953
      %v2025 = vunpack.c.l.b16 %v1954
      %v2026 = vunpack.c.h.b16 %v1954
      %v2027 = vunpack.c.l.b16 %v1955
      %v2028 = vunpack.c.l.b16 %v1956
      %v2029 = vunpack.c.h.b16 %v1956
      %v2030 = vunpack.c.l.b16 %v1957
      %v2031 = vunpack.c.l.b16 %v1958
      %v2032 = vunpack.c.h.b16 %v1958
      %v2033 = vunpack.c.l.b16 %v1959
      %v2034 = vunpack.c.l.b16 %v1960
      %v2035 = vunpack.c.h.b16 %v1960
      %v2036 = vunpack.c.l.b16 %v1961
      %v2037 = vunpack.c.l.b16 %v1962
      %v2038 = vunpack.c.h.b16 %v1962
      %v2039 = vunpack.c.l.b16 %v1963
      %v2040 = vunpack.c.l.b16 %v1964
      %v2041 = vunpack.c.h.b16 %v1964
      %v2042 = vunpack.c.l.b16 %v1965
      %v2043 = vunpack.c.l.b16 %v1966
      %v2044 = vunpack.c.h.b16 %v1966
      %v2045 = vunpack.c.l.b16 %v1967
      %v2046 = vunpack.c.l.b16 %v1968
      %v2047 = vunpack.c.h.b16 %v1968
      %v2048 = vunpack.c.l.b16 %v1969
      %v2049 = vunpack.c.l.b16 %v1970
      %v2050 = vunpack.c.h.b16 %v1970
      %v2051 = vunpack.c.l.b16 %v1971
      %v2052 = vpack.c.b16 %v2007, %v2004
      %v2053 = vpack.c.b16 %v2008, %v2005
      %v2054 = vpack.c.b16 %v2009, %v2006
      %v2055 = vpack.c.b16 %v2013, %v2010
      %v2056 = vpack.c.b16 %v2014, %v2011
      %v2057 = vpack.c.b16 %v2015, %v2012
      %v2058 = vpack.c.b16 %v2019, %v2016
      %v2059 = vpack.c.b16 %v2020, %v2017
      %v2060 = vpack.c.b16 %v2021, %v2018
      %v2061 = vpack.c.b16 %v2025, %v2022
      %v2062 = vpack.c.b16 %v2026, %v2023
      %v2063 = vpack.c.b16 %v2027, %v2024
      %v2064 = vpack.c.b16 %v2031, %v2028
      %v2065 = vpack.c.b16 %v2032, %v2029
      %v2066 = vpack.c.b16 %v2033, %v2030
      %v2067 = vpack.c.b16 %v2037, %v2034
      %v2068 = vpack.c.b16 %v2038, %v2035
      %v2069 = vpack.c.b16 %v2039, %v2036
      %v2070 = vpack.c.b16 %v2043, %v2040
      %v2071 = vpack.c.b16 %v2044, %v2041
      %v2072 = vpack.c.b16 %v2045, %v2042
      %v2073 = vpack.c.b16 %v2049, %v2046
      %v2074 = vpack.c.b16 %v2050, %v2047
      %v2075 = vpack.c.b16 %v2051, %v2048
      %2100 = vmatpush.bf16.msra.mxu0 %v2073
      %2101 = vmatpush.bf16.msra.mxu0 %v2070
      %2102 = vmatpush.bf16.msra.mxu0 %v2067
      %2103 = vmatpush.bf16.msra.mxu0 %v2064
      %2104 = vmatpush.bf16.msra.mxu0 %v2061
      %2105 = vmatpush.bf16.msra.mxu0 %v2058
      %2106 = vmatpush.bf16.msra.mxu0 %v2055
      %2107 = vmatpush.bf16.msra.mxu0 %v2052
      %2108 = vmatmul.bf16.gmra.mxu0 %v1938
      %v2109 = vpop.f32.mrf.mxu0
      %v2110 = vadd.f32 0.0, %v2109
      %v2111 = vpop.f32.mrf.mxu0
      %2112 = vdwg.mxu0
      %2113 = vmatpush.bf16.msra.mxu0 %v2074
      %2114 = vmatpush.bf16.msra.mxu0 %v2071
      %2115 = vmatpush.bf16.msra.mxu0 %v2068
      %2116 = vmatpush.bf16.msra.mxu0 %v2065
      %2117 = vmatpush.bf16.msra.mxu0 %v2062
      %2118 = vmatpush.bf16.msra.mxu0 %v2059
      %2119 = vmatpush.bf16.msra.mxu0 %v2056
      %2120 = vmatpush.bf16.msra.mxu0 %v2053
      %2121 = vmatmul.bf16.gmra.mxu0 %v1938
      %v2122 = vpop.f32.mrf.mxu0
      %v2123 = vadd.f32 0.0, %v2122
      %v2124 = vpop.f32.mrf.mxu0
      %2125 = vdwg.mxu0
      %2126 = vmatpush.bf16.msra.mxu0 %v2075
      %2127 = vmatpush.bf16.msra.mxu0 %v2072
      %2128 = vmatpush.bf16.msra.mxu0 %v2069
      %2129 = vmatpush.bf16.msra.mxu0 %v2066
      %2130 = vmatpush.bf16.msra.mxu0 %v2063
      %2131 = vmatpush.bf16.msra.mxu0 %v2060
      %2132 = vmatpush.bf16.msra.mxu0 %v2057
      %2133 = vmatpush.bf16.msra.mxu0 %v2054
      %2134 = vmatmul.bf16.gmra.mxu0 %v1938
      %v2135 = vpop.f32.mrf.mxu0
      %v2136 = vadd.f32 0.0, %v2135
      %v2137 = vpop.f32.mrf.mxu0
      %2138 = vdwg.mxu0
      %v2139 = vadd.f32 %v578, %v2110
      %v2140 = vxor.u32 %v2139, 2147483648
      %v2141 = vmul.f32 %v2140, 1.442695
      %v2142 = vpow.pop %v2141
      %v2143 = vadd.f32 %v2142, 1.0
      %v2144 = vrcp.pop %v2143
      %v2145 = vmul.f32 %v2143, %v2144
      %v2146 = vsub.f32 1.0, %v2145
      %v2147 = vmul.f32 %v2144, %v2146
      %v2148 = vadd.f32 %v2144, %v2147
      %vm2149 = vweird.f32 %v2143
      %vm2150 = vweird.f32 %v2144
      %vm2151 = vmor %vm2149, %vm2150
      %v2152 = vsel %vm2151, %v2144, %v2148
      %v2153 = vand.u32 2147483647, %v2143
      %vm2154 = vcmp.eq.f32.partialorder %v2153, 8.507059e+37
      %v2155 = vand.u32 %v2143, 2147483648
      %v2156 = vor.u32 1.1754944e-38, %v2155
      %v2157 = vsel %vm2154, %v2156, %v2152
      %v2158 = vmul.f32 1.0, %v2157
      %v2159 = vadd.f32 %v607, %v2123
      %v2160 = vxor.u32 %v2159, 2147483648
      %v2161 = vmul.f32 %v2160, 1.442695
      %v2162 = vpow.pop %v2161
      %v2163 = vadd.f32 %v2162, 1.0
      %v2164 = vrcp.pop %v2163
      %v2165 = vmul.f32 %v2163, %v2164
      %v2166 = vsub.f32 1.0, %v2165
      %v2167 = vmul.f32 %v2164, %v2166
      %v2168 = vadd.f32 %v2164, %v2167
      %vm2169 = vweird.f32 %v2163
      %vm2170 = vweird.f32 %v2164
      %vm2171 = vmor %vm2169, %vm2170
      %v2172 = vsel %vm2171, %v2164, %v2168
      %v2173 = vand.u32 2147483647, %v2163
      %vm2174 = vcmp.eq.f32.partialorder %v2173, 8.507059e+37
      %v2175 = vand.u32 %v2163, 2147483648
      %v2176 = vor.u32 1.1754944e-38, %v2175
      %v2177 = vsel %vm2174, %v2176, %v2172
      %v2178 = vmul.f32 1.0, %v2177
      %v2179 = vld [vmem:[%s4] sm:$0x1]
      %v2181 = vperm.slane %v2179, 0
      %v2183 = vadd.f32 %v2136, %v2181
      %v2184 = vmul.f32 %v2158, %v2183
      %v2185 = vadd.f32 %v636, %v2184
      %v2186 = vtanh.pop %v2185
      %v2187 = vsub.f32 1.0, %v2178
      %v2188 = vmul.f32 %v2187, %v2186
      %v2189 = vmul.f32 %v2178, %v1937
      %v2190 = vadd.f32 %v2188, %v2189
      %s2191 = sadd.s32 %s896, 5
      %p2192 = scmp.lt.s32.totalorder %s2191, 16
      %s2193 = scalar_select %p2192, 1, 0
      %v2194 = vstv %s2193
      %vm2195 = vcmp.eq.s32.totalorder %v2194, 1
      %v2196 = vsel %vm2195, %v2190, %v1937
      %v2197 = vpack.c.bf16 %v2196, %v2196
      %2198 = vst [vmem:[#allocation4 + $0x14] sm:$0xf] %v2197
      %v2199 = vld [vmem:[%s2] sm:$0xff]
      %v2200 = vld [vmem:[%s2 + $0x8] sm:$0xf]
      %v2201 = vld [vmem:[%s2 + $0xc] sm:$0xff]
      %v2202 = vld [vmem:[%s2 + $0x14] sm:$0xf]
      %v2203 = vld [vmem:[%s2 + $0x18] sm:$0xff]
      %v2204 = vld [vmem:[%s2 + $0x20] sm:$0xf]
      %v2205 = vld [vmem:[%s2 + $0x24] sm:$0xff]
      %v2206 = vld [vmem:[%s2 + $0x2c] sm:$0xf]
      %v2207 = vld [vmem:[%s2 + $0x30] sm:$0xff]
      %v2208 = vld [vmem:[%s2 + $0x38] sm:$0xf]
      %v2209 = vld [vmem:[%s2 + $0x3c] sm:$0xff]
      %v2210 = vld [vmem:[%s2 + $0x44] sm:$0xf]
      %v2211 = vld [vmem:[%s2 + $0x48] sm:$0xff]
      %v2212 = vld [vmem:[%s2 + $0x50] sm:$0xf]
      %v2213 = vld [vmem:[%s2 + $0x54] sm:$0xff]
      %v2214 = vld [vmem:[%s2 + $0x5c] sm:$0xf]
      %v2215 = vld [vmem:[%s2 + $0x60] sm:$0xff]
      %v2216 = vld [vmem:[%s2 + $0x68] sm:$0xf]
      %v2217 = vld [vmem:[%s2 + $0x6c] sm:$0xff]
      %v2218 = vld [vmem:[%s2 + $0x74] sm:$0xf]
      %v2219 = vld [vmem:[%s2 + $0x78] sm:$0xff]
      %v2220 = vld [vmem:[%s2 + $0x80] sm:$0xf]
      %v2221 = vld [vmem:[%s2 + $0x84] sm:$0xff]
      %v2222 = vld [vmem:[%s2 + $0x8c] sm:$0xf]
      %v2223 = vld [vmem:[%s2 + $0x90] sm:$0xff]
      %v2224 = vld [vmem:[%s2 + $0x98] sm:$0xf]
      %v2225 = vld [vmem:[%s2 + $0x9c] sm:$0xff]
      %v2226 = vld [vmem:[%s2 + $0xa4] sm:$0xf]
      %v2227 = vld [vmem:[%s2 + $0xa8] sm:$0xff]
      %v2228 = vld [vmem:[%s2 + $0xb0] sm:$0xf]
      %v2229 = vld [vmem:[%s2 + $0xb4] sm:$0xff]
      %v2230 = vld [vmem:[%s2 + $0xbc] sm:$0xf]
      %v2263 = vunpack.c.l.b16 %v2199
      %v2264 = vunpack.c.h.b16 %v2199
      %v2265 = vunpack.c.l.b16 %v2200
      %v2266 = vunpack.c.l.b16 %v2201
      %v2267 = vunpack.c.h.b16 %v2201
      %v2268 = vunpack.c.l.b16 %v2202
      %v2269 = vunpack.c.l.b16 %v2203
      %v2270 = vunpack.c.h.b16 %v2203
      %v2271 = vunpack.c.l.b16 %v2204
      %v2272 = vunpack.c.l.b16 %v2205
      %v2273 = vunpack.c.h.b16 %v2205
      %v2274 = vunpack.c.l.b16 %v2206
      %v2275 = vunpack.c.l.b16 %v2207
      %v2276 = vunpack.c.h.b16 %v2207
      %v2277 = vunpack.c.l.b16 %v2208
      %v2278 = vunpack.c.l.b16 %v2209
      %v2279 = vunpack.c.h.b16 %v2209
      %v2280 = vunpack.c.l.b16 %v2210
      %v2281 = vunpack.c.l.b16 %v2211
      %v2282 = vunpack.c.h.b16 %v2211
      %v2283 = vunpack.c.l.b16 %v2212
      %v2284 = vunpack.c.l.b16 %v2213
      %v2285 = vunpack.c.h.b16 %v2213
      %v2286 = vunpack.c.l.b16 %v2214
      %v2287 = vunpack.c.l.b16 %v2215
      %v2288 = vunpack.c.h.b16 %v2215
      %v2289 = vunpack.c.l.b16 %v2216
      %v2290 = vunpack.c.l.b16 %v2217
      %v2291 = vunpack.c.h.b16 %v2217
      %v2292 = vunpack.c.l.b16 %v2218
      %v2293 = vunpack.c.l.b16 %v2219
      %v2294 = vunpack.c.h.b16 %v2219
      %v2295 = vunpack.c.l.b16 %v2220
      %v2296 = vunpack.c.l.b16 %v2221
      %v2297 = vunpack.c.h.b16 %v2221
      %v2298 = vunpack.c.l.b16 %v2222
      %v2299 = vunpack.c.l.b16 %v2223
      %v2300 = vunpack.c.h.b16 %v2223
      %v2301 = vunpack.c.l.b16 %v2224
      %v2302 = vunpack.c.l.b16 %v2225
      %v2303 = vunpack.c.h.b16 %v2225
      %v2304 = vunpack.c.l.b16 %v2226
      %v2305 = vunpack.c.l.b16 %v2227
      %v2306 = vunpack.c.h.b16 %v2227
      %v2307 = vunpack.c.l.b16 %v2228
      %v2308 = vunpack.c.l.b16 %v2229
      %v2309 = vunpack.c.h.b16 %v2229
      %v2310 = vunpack.c.l.b16 %v2230
      %v2311 = vpack.c.b16 %v2266, %v2263
      %v2312 = vpack.c.b16 %v2267, %v2264
      %v2313 = vpack.c.b16 %v2268, %v2265
      %v2314 = vpack.c.b16 %v2272, %v2269
      %v2315 = vpack.c.b16 %v2273, %v2270
      %v2316 = vpack.c.b16 %v2274, %v2271
      %v2317 = vpack.c.b16 %v2278, %v2275
      %v2318 = vpack.c.b16 %v2279, %v2276
      %v2319 = vpack.c.b16 %v2280, %v2277
      %v2320 = vpack.c.b16 %v2284, %v2281
      %v2321 = vpack.c.b16 %v2285, %v2282
      %v2322 = vpack.c.b16 %v2286, %v2283
      %v2323 = vpack.c.b16 %v2290, %v2287
      %v2324 = vpack.c.b16 %v2291, %v2288
      %v2325 = vpack.c.b16 %v2292, %v2289
      %v2326 = vpack.c.b16 %v2296, %v2293
      %v2327 = vpack.c.b16 %v2297, %v2294
      %v2328 = vpack.c.b16 %v2298, %v2295
      %v2329 = vpack.c.b16 %v2302, %v2299
      %v2330 = vpack.c.b16 %v2303, %v2300
      %v2331 = vpack.c.b16 %v2304, %v2301
      %v2332 = vpack.c.b16 %v2308, %v2305
      %v2333 = vpack.c.b16 %v2309, %v2306
      %v2334 = vpack.c.b16 %v2310, %v2307
      %2359 = vmatpush.bf16.msra.mxu0 %v2332
      %2360 = vmatpush.bf16.msra.mxu0 %v2329
      %2361 = vmatpush.bf16.msra.mxu0 %v2326
      %2362 = vmatpush.bf16.msra.mxu0 %v2323
      %2363 = vmatpush.bf16.msra.mxu0 %v2320
      %2364 = vmatpush.bf16.msra.mxu0 %v2317
      %2365 = vmatpush.bf16.msra.mxu0 %v2314
      %2366 = vmatpush.bf16.msra.mxu0 %v2311
      %2367 = vmatmul.bf16.gmra.mxu0 %v2197
      %v2368 = vpop.f32.mrf.mxu0
      %v2369 = vadd.f32 0.0, %v2368
      %v2370 = vpop.f32.mrf.mxu0
      %2371 = vdwg.mxu0
      %2372 = vmatpush.bf16.msra.mxu0 %v2333
      %2373 = vmatpush.bf16.msra.mxu0 %v2330
      %2374 = vmatpush.bf16.msra.mxu0 %v2327
      %2375 = vmatpush.bf16.msra.mxu0 %v2324
      %2376 = vmatpush.bf16.msra.mxu0 %v2321
      %2377 = vmatpush.bf16.msra.mxu0 %v2318
      %2378 = vmatpush.bf16.msra.mxu0 %v2315
      %2379 = vmatpush.bf16.msra.mxu0 %v2312
      %2380 = vmatmul.bf16.gmra.mxu0 %v2197
      %v2381 = vpop.f32.mrf.mxu0
      %v2382 = vadd.f32 0.0, %v2381
      %v2383 = vpop.f32.mrf.mxu0
      %2384 = vdwg.mxu0
      %2385 = vmatpush.bf16.msra.mxu0 %v2334
      %2386 = vmatpush.bf16.msra.mxu0 %v2331
      %2387 = vmatpush.bf16.msra.mxu0 %v2328
      %2388 = vmatpush.bf16.msra.mxu0 %v2325
      %2389 = vmatpush.bf16.msra.mxu0 %v2322
      %2390 = vmatpush.bf16.msra.mxu0 %v2319
      %2391 = vmatpush.bf16.msra.mxu0 %v2316
      %2392 = vmatpush.bf16.msra.mxu0 %v2313
      %2393 = vmatmul.bf16.gmra.mxu0 %v2197
      %v2394 = vpop.f32.mrf.mxu0
      %v2395 = vadd.f32 0.0, %v2394
      %v2396 = vpop.f32.mrf.mxu0
      %2397 = vdwg.mxu0
      %v2398 = vadd.f32 %v581, %v2369
      %v2399 = vxor.u32 %v2398, 2147483648
      %v2400 = vmul.f32 %v2399, 1.442695
      %v2401 = vpow.pop %v2400
      %v2402 = vadd.f32 %v2401, 1.0
      %v2403 = vrcp.pop %v2402
      %v2404 = vmul.f32 %v2402, %v2403
      %v2405 = vsub.f32 1.0, %v2404
      %v2406 = vmul.f32 %v2403, %v2405
      %v2407 = vadd.f32 %v2403, %v2406
      %vm2408 = vweird.f32 %v2402
      %vm2409 = vweird.f32 %v2403
      %vm2410 = vmor %vm2408, %vm2409
      %v2411 = vsel %vm2410, %v2403, %v2407
      %v2412 = vand.u32 2147483647, %v2402
      %vm2413 = vcmp.eq.f32.partialorder %v2412, 8.507059e+37
      %v2414 = vand.u32 %v2402, 2147483648
      %v2415 = vor.u32 1.1754944e-38, %v2414
      %v2416 = vsel %vm2413, %v2415, %v2411
      %v2417 = vmul.f32 1.0, %v2416
      %v2418 = vadd.f32 %v610, %v2382
      %v2419 = vxor.u32 %v2418, 2147483648
      %v2420 = vmul.f32 %v2419, 1.442695
      %v2421 = vpow.pop %v2420
      %v2422 = vadd.f32 %v2421, 1.0
      %v2423 = vrcp.pop %v2422
      %v2424 = vmul.f32 %v2422, %v2423
      %v2425 = vsub.f32 1.0, %v2424
      %v2426 = vmul.f32 %v2423, %v2425
      %v2427 = vadd.f32 %v2423, %v2426
      %vm2428 = vweird.f32 %v2422
      %vm2429 = vweird.f32 %v2423
      %vm2430 = vmor %vm2428, %vm2429
      %v2431 = vsel %vm2430, %v2423, %v2427
      %v2432 = vand.u32 2147483647, %v2422
      %vm2433 = vcmp.eq.f32.partialorder %v2432, 8.507059e+37
      %v2434 = vand.u32 %v2422, 2147483648
      %v2435 = vor.u32 1.1754944e-38, %v2434
      %v2436 = vsel %vm2433, %v2435, %v2431
      %v2437 = vmul.f32 1.0, %v2436
      %v2438 = vld [vmem:[%s4] sm:$0x1]
      %v2440 = vperm.slane %v2438, 0
      %v2442 = vadd.f32 %v2395, %v2440
      %v2443 = vmul.f32 %v2417, %v2442
      %v2444 = vadd.f32 %v639, %v2443
      %v2445 = vtanh.pop %v2444
      %v2446 = vsub.f32 1.0, %v2437
      %v2447 = vmul.f32 %v2446, %v2445
      %v2448 = vmul.f32 %v2437, %v2196
      %v2449 = vadd.f32 %v2447, %v2448
      %s2450 = sadd.s32 %s896, 6
      %p2451 = scmp.lt.s32.totalorder %s2450, 16
      %s2452 = scalar_select %p2451, 1, 0
      %v2453 = vstv %s2452
      %vm2454 = vcmp.eq.s32.totalorder %v2453, 1
      %v2455 = vsel %vm2454, %v2449, %v2196
      %v2456 = vpack.c.bf16 %v2455, %v2455
      %2457 = vst [vmem:[#allocation4 + $0x18] sm:$0xf] %v2456
      %v2458 = vld [vmem:[%s2] sm:$0xff]
      %v2459 = vld [vmem:[%s2 + $0x8] sm:$0xf]
      %v2460 = vld [vmem:[%s2 + $0xc] sm:$0xff]
      %v2461 = vld [vmem:[%s2 + $0x14] sm:$0xf]
      %v2462 = vld [vmem:[%s2 + $0x18] sm:$0xff]
      %v2463 = vld [vmem:[%s2 + $0x20] sm:$0xf]
      %v2464 = vld [vmem:[%s2 + $0x24] sm:$0xff]
      %v2465 = vld [vmem:[%s2 + $0x2c] sm:$0xf]
      %v2466 = vld [vmem:[%s2 + $0x30] sm:$0xff]
      %v2467 = vld [vmem:[%s2 + $0x38] sm:$0xf]
      %v2468 = vld [vmem:[%s2 + $0x3c] sm:$0xff]
      %v2469 = vld [vmem:[%s2 + $0x44] sm:$0xf]
      %v2470 = vld [vmem:[%s2 + $0x48] sm:$0xff]
      %v2471 = vld [vmem:[%s2 + $0x50] sm:$0xf]
      %v2472 = vld [vmem:[%s2 + $0x54] sm:$0xff]
      %v2473 = vld [vmem:[%s2 + $0x5c] sm:$0xf]
      %v2474 = vld [vmem:[%s2 + $0x60] sm:$0xff]
      %v2475 = vld [vmem:[%s2 + $0x68] sm:$0xf]
      %v2476 = vld [vmem:[%s2 + $0x6c] sm:$0xff]
      %v2477 = vld [vmem:[%s2 + $0x74] sm:$0xf]
      %v2478 = vld [vmem:[%s2 + $0x78] sm:$0xff]
      %v2479 = vld [vmem:[%s2 + $0x80] sm:$0xf]
      %v2480 = vld [vmem:[%s2 + $0x84] sm:$0xff]
      %v2481 = vld [vmem:[%s2 + $0x8c] sm:$0xf]
      %v2482 = vld [vmem:[%s2 + $0x90] sm:$0xff]
      %v2483 = vld [vmem:[%s2 + $0x98] sm:$0xf]
      %v2484 = vld [vmem:[%s2 + $0x9c] sm:$0xff]
      %v2485 = vld [vmem:[%s2 + $0xa4] sm:$0xf]
      %v2486 = vld [vmem:[%s2 + $0xa8] sm:$0xff]
      %v2487 = vld [vmem:[%s2 + $0xb0] sm:$0xf]
      %v2488 = vld [vmem:[%s2 + $0xb4] sm:$0xff]
      %v2489 = vld [vmem:[%s2 + $0xbc] sm:$0xf]
      %v2522 = vunpack.c.l.b16 %v2458
      %v2523 = vunpack.c.h.b16 %v2458
      %v2524 = vunpack.c.l.b16 %v2459
      %v2525 = vunpack.c.l.b16 %v2460
      %v2526 = vunpack.c.h.b16 %v2460
      %v2527 = vunpack.c.l.b16 %v2461
      %v2528 = vunpack.c.l.b16 %v2462
      %v2529 = vunpack.c.h.b16 %v2462
      %v2530 = vunpack.c.l.b16 %v2463
      %v2531 = vunpack.c.l.b16 %v2464
      %v2532 = vunpack.c.h.b16 %v2464
      %v2533 = vunpack.c.l.b16 %v2465
      %v2534 = vunpack.c.l.b16 %v2466
      %v2535 = vunpack.c.h.b16 %v2466
      %v2536 = vunpack.c.l.b16 %v2467
      %v2537 = vunpack.c.l.b16 %v2468
      %v2538 = vunpack.c.h.b16 %v2468
      %v2539 = vunpack.c.l.b16 %v2469
      %v2540 = vunpack.c.l.b16 %v2470
      %v2541 = vunpack.c.h.b16 %v2470
      %v2542 = vunpack.c.l.b16 %v2471
      %v2543 = vunpack.c.l.b16 %v2472
      %v2544 = vunpack.c.h.b16 %v2472
      %v2545 = vunpack.c.l.b16 %v2473
      %v2546 = vunpack.c.l.b16 %v2474
      %v2547 = vunpack.c.h.b16 %v2474
      %v2548 = vunpack.c.l.b16 %v2475
      %v2549 = vunpack.c.l.b16 %v2476
      %v2550 = vunpack.c.h.b16 %v2476
      %v2551 = vunpack.c.l.b16 %v2477
      %v2552 = vunpack.c.l.b16 %v2478
      %v2553 = vunpack.c.h.b16 %v2478
      %v2554 = vunpack.c.l.b16 %v2479
      %v2555 = vunpack.c.l.b16 %v2480
      %v2556 = vunpack.c.h.b16 %v2480
      %v2557 = vunpack.c.l.b16 %v2481
      %v2558 = vunpack.c.l.b16 %v2482
      %v2559 = vunpack.c.h.b16 %v2482
      %v2560 = vunpack.c.l.b16 %v2483
      %v2561 = vunpack.c.l.b16 %v2484
      %v2562 = vunpack.c.h.b16 %v2484
      %v2563 = vunpack.c.l.b16 %v2485
      %v2564 = vunpack.c.l.b16 %v2486
      %v2565 = vunpack.c.h.b16 %v2486
      %v2566 = vunpack.c.l.b16 %v2487
      %v2567 = vunpack.c.l.b16 %v2488
      %v2568 = vunpack.c.h.b16 %v2488
      %v2569 = vunpack.c.l.b16 %v2489
      %v2570 = vpack.c.b16 %v2525, %v2522
      %v2571 = vpack.c.b16 %v2526, %v2523
      %v2572 = vpack.c.b16 %v2527, %v2524
      %v2573 = vpack.c.b16 %v2531, %v2528
      %v2574 = vpack.c.b16 %v2532, %v2529
      %v2575 = vpack.c.b16 %v2533, %v2530
      %v2576 = vpack.c.b16 %v2537, %v2534
      %v2577 = vpack.c.b16 %v2538, %v2535
      %v2578 = vpack.c.b16 %v2539, %v2536
      %v2579 = vpack.c.b16 %v2543, %v2540
      %v2580 = vpack.c.b16 %v2544, %v2541
      %v2581 = vpack.c.b16 %v2545, %v2542
      %v2582 = vpack.c.b16 %v2549, %v2546
      %v2583 = vpack.c.b16 %v2550, %v2547
      %v2584 = vpack.c.b16 %v2551, %v2548
      %v2585 = vpack.c.b16 %v2555, %v2552
      %v2586 = vpack.c.b16 %v2556, %v2553
      %v2587 = vpack.c.b16 %v2557, %v2554
      %v2588 = vpack.c.b16 %v2561, %v2558
      %v2589 = vpack.c.b16 %v2562, %v2559
      %v2590 = vpack.c.b16 %v2563, %v2560
      %v2591 = vpack.c.b16 %v2567, %v2564
      %v2592 = vpack.c.b16 %v2568, %v2565
      %v2593 = vpack.c.b16 %v2569, %v2566
      %2618 = vmatpush.bf16.msra.mxu0 %v2591
      %2619 = vmatpush.bf16.msra.mxu0 %v2588
      %2620 = vmatpush.bf16.msra.mxu0 %v2585
      %2621 = vmatpush.bf16.msra.mxu0 %v2582
      %2622 = vmatpush.bf16.msra.mxu0 %v2579
      %2623 = vmatpush.bf16.msra.mxu0 %v2576
      %2624 = vmatpush.bf16.msra.mxu0 %v2573
      %2625 = vmatpush.bf16.msra.mxu0 %v2570
      %2626 = vmatmul.bf16.gmra.mxu0 %v2456
      %v2627 = vpop.f32.mrf.mxu0
      %v2628 = vadd.f32 0.0, %v2627
      %v2629 = vpop.f32.mrf.mxu0
      %2630 = vdwg.mxu0
      %2631 = vmatpush.bf16.msra.mxu0 %v2592
      %2632 = vmatpush.bf16.msra.mxu0 %v2589
      %2633 = vmatpush.bf16.msra.mxu0 %v2586
      %2634 = vmatpush.bf16.msra.mxu0 %v2583
      %2635 = vmatpush.bf16.msra.mxu0 %v2580
      %2636 = vmatpush.bf16.msra.mxu0 %v2577
      %2637 = vmatpush.bf16.msra.mxu0 %v2574
      %2638 = vmatpush.bf16.msra.mxu0 %v2571
      %2639 = vmatmul.bf16.gmra.mxu0 %v2456
      %v2640 = vpop.f32.mrf.mxu0
      %v2641 = vadd.f32 0.0, %v2640
      %v2642 = vpop.f32.mrf.mxu0
      %2643 = vdwg.mxu0
      %2644 = vmatpush.bf16.msra.mxu0 %v2593
      %2645 = vmatpush.bf16.msra.mxu0 %v2590
      %2646 = vmatpush.bf16.msra.mxu0 %v2587
      %2647 = vmatpush.bf16.msra.mxu0 %v2584
      %2648 = vmatpush.bf16.msra.mxu0 %v2581
      %2649 = vmatpush.bf16.msra.mxu0 %v2578
      %2650 = vmatpush.bf16.msra.mxu0 %v2575
      %2651 = vmatpush.bf16.msra.mxu0 %v2572
      %2652 = vmatmul.bf16.gmra.mxu0 %v2456
      %v2653 = vpop.f32.mrf.mxu0
      %v2654 = vadd.f32 0.0, %v2653
      %v2655 = vpop.f32.mrf.mxu0
      %2656 = vdwg.mxu0
      %v2657 = vadd.f32 %v583, %v2628
      %v2658 = vxor.u32 %v2657, 2147483648
      %v2659 = vmul.f32 %v2658, 1.442695
      %v2660 = vpow.pop %v2659
      %v2661 = vadd.f32 %v2660, 1.0
      %v2662 = vrcp.pop %v2661
      %v2663 = vmul.f32 %v2661, %v2662
      %v2664 = vsub.f32 1.0, %v2663
      %v2665 = vmul.f32 %v2662, %v2664
      %v2666 = vadd.f32 %v2662, %v2665
      %vm2667 = vweird.f32 %v2661
      %vm2668 = vweird.f32 %v2662
      %vm2669 = vmor %vm2667, %vm2668
      %v2670 = vsel %vm2669, %v2662, %v2666
      %v2671 = vand.u32 2147483647, %v2661
      %vm2672 = vcmp.eq.f32.partialorder %v2671, 8.507059e+37
      %v2673 = vand.u32 %v2661, 2147483648
      %v2674 = vor.u32 1.1754944e-38, %v2673
      %v2675 = vsel %vm2672, %v2674, %v2670
      %v2676 = vmul.f32 1.0, %v2675
      %v2677 = vadd.f32 %v612, %v2641
      %v2678 = vxor.u32 %v2677, 2147483648
      %v2679 = vmul.f32 %v2678, 1.442695
      %v2680 = vpow.pop %v2679
      %v2681 = vadd.f32 %v2680, 1.0
      %v2682 = vrcp.pop %v2681
      %v2683 = vmul.f32 %v2681, %v2682
      %v2684 = vsub.f32 1.0, %v2683
      %v2685 = vmul.f32 %v2682, %v2684
      %v2686 = vadd.f32 %v2682, %v2685
      %vm2687 = vweird.f32 %v2681
      %vm2688 = vweird.f32 %v2682
      %vm2689 = vmor %vm2687, %vm2688
      %v2690 = vsel %vm2689, %v2682, %v2686
      %v2691 = vand.u32 2147483647, %v2681
      %vm2692 = vcmp.eq.f32.partialorder %v2691, 8.507059e+37
      %v2693 = vand.u32 %v2681, 2147483648
      %v2694 = vor.u32 1.1754944e-38, %v2693
      %v2695 = vsel %vm2692, %v2694, %v2690
      %v2696 = vmul.f32 1.0, %v2695
      %v2697 = vld [vmem:[%s4] sm:$0x1]
      %v2699 = vperm.slane %v2697, 0
      %v2701 = vadd.f32 %v2654, %v2699
      %v2702 = vmul.f32 %v2676, %v2701
      %v2703 = vadd.f32 %v641, %v2702
      %v2704 = vtanh.pop %v2703
      %v2705 = vsub.f32 1.0, %v2696
      %v2706 = vmul.f32 %v2705, %v2704
      %v2707 = vmul.f32 %v2696, %v2455
      %v2708 = vadd.f32 %v2706, %v2707
      %s2709 = sadd.s32 %s896, 7
      %p2710 = scmp.lt.s32.totalorder %s2709, 16
      %s2711 = scalar_select %p2710, 1, 0
      %v2712 = vstv %s2711
      %vm2713 = vcmp.eq.s32.totalorder %v2712, 1
      %v2714 = vsel %vm2713, %v2708, %v2455
      %v2715 = vpack.c.bf16 %v2714, %v2714
      %2716 = vst [vmem:[#allocation4 + $0x1c] sm:$0xf] %v2715
      %2717 = vst [vmem:[#allocation2] sm:$0xff] %v2714
      %v2718 = vld [vmem:[#allocation4] sm:$0xf]
      %v2719 = vld [vmem:[#allocation4 + $0x4] sm:$0xf]
      %v2720 = vld [vmem:[#allocation4 + $0x8] sm:$0xf]
      %v2721 = vld [vmem:[#allocation4 + $0xc] sm:$0xf]
      %v2722 = vld [vmem:[#allocation4 + $0x10] sm:$0xf]
      %v2723 = vld [vmem:[#allocation4 + $0x14] sm:$0xf]
      %v2724 = vld [vmem:[#allocation4 + $0x18] sm:$0xf]
      %v2725 = vld [vmem:[#allocation4 + $0x1c] sm:$0xf]
      %v2726 = vld [vmem:[%s5] sm:$0xff]
      %v2727 = vld [vmem:[%s5 + $0x8] sm:$0xf]
      %v2728 = vld [vmem:[%s5 + $0xc] sm:$0xff]
      %v2729 = vld [vmem:[%s5 + $0x14] sm:$0xf]
      %v2730 = vld [vmem:[%s5 + $0x18] sm:$0xff]
      %v2731 = vld [vmem:[%s5 + $0x20] sm:$0xf]
      %v2732 = vld [vmem:[%s5 + $0x24] sm:$0xff]
      %v2733 = vld [vmem:[%s5 + $0x2c] sm:$0xf]
      %v2734 = vld [vmem:[%s5 + $0x30] sm:$0xff]
      %v2735 = vld [vmem:[%s5 + $0x38] sm:$0xf]
      %v2736 = vld [vmem:[%s5 + $0x3c] sm:$0xff]
      %v2737 = vld [vmem:[%s5 + $0x44] sm:$0xf]
      %v2738 = vld [vmem:[%s5 + $0x48] sm:$0xff]
      %v2739 = vld [vmem:[%s5 + $0x50] sm:$0xf]
      %v2740 = vld [vmem:[%s5 + $0x54] sm:$0xff]
      %v2741 = vld [vmem:[%s5 + $0x5c] sm:$0xf]
      %v2742 = vld [vmem:[%s5 + $0x60] sm:$0xff]
      %v2743 = vld [vmem:[%s5 + $0x68] sm:$0xf]
      %v2744 = vld [vmem:[%s5 + $0x6c] sm:$0xff]
      %v2745 = vld [vmem:[%s5 + $0x74] sm:$0xf]
      %v2746 = vld [vmem:[%s5 + $0x78] sm:$0xff]
      %v2747 = vld [vmem:[%s5 + $0x80] sm:$0xf]
      %v2748 = vld [vmem:[%s5 + $0x84] sm:$0xff]
      %v2749 = vld [vmem:[%s5 + $0x8c] sm:$0xf]
      %v2750 = vld [vmem:[%s5 + $0x90] sm:$0xff]
      %v2751 = vld [vmem:[%s5 + $0x98] sm:$0xf]
      %v2752 = vld [vmem:[%s5 + $0x9c] sm:$0xff]
      %v2753 = vld [vmem:[%s5 + $0xa4] sm:$0xf]
      %v2754 = vld [vmem:[%s5 + $0xa8] sm:$0xff]
      %v2755 = vld [vmem:[%s5 + $0xb0] sm:$0xf]
      %v2756 = vld [vmem:[%s5 + $0xb4] sm:$0xff]
      %v2757 = vld [vmem:[%s5 + $0xbc] sm:$0xf]
      %v2758 = vld [vmem:[%s7] sm:$0x7]
      %v2760 = vperm.slane %v2758, 0
      %v2761 = vperm.slane %v2758, 1
      %v2762 = vperm.slane %v2758, 2
      %v2774 = vunpack.c.l.b16 %v2718
      %v2775 = vunpack.c.l.b16 %v2719
      %v2776 = vunpack.c.l.b16 %v2720
      %v2777 = vunpack.c.l.b16 %v2721
      %v2778 = vunpack.c.l.b16 %v2722
      %v2779 = vunpack.c.l.b16 %v2723
      %v2780 = vunpack.c.l.b16 %v2724
      %v2781 = vunpack.c.l.b16 %v2725
      %v2782 = vpack.c.b16 %v2775, %v2774
      %v2783 = vpack.c.b16 %v2777, %v2776
      %v2784 = vpack.c.b16 %v2779, %v2778
      %v2785 = vpack.c.b16 %v2781, %v2780
      %v2822 = vunpack.c.l.b16 %v2726
      %v2823 = vunpack.c.h.b16 %v2726
      %v2824 = vunpack.c.l.b16 %v2727
      %v2825 = vunpack.c.l.b16 %v2728
      %v2826 = vunpack.c.h.b16 %v2728
      %v2827 = vunpack.c.l.b16 %v2729
      %v2828 = vunpack.c.l.b16 %v2730
      %v2829 = vunpack.c.h.b16 %v2730
      %v2830 = vunpack.c.l.b16 %v2731
      %v2831 = vunpack.c.l.b16 %v2732
      %v2832 = vunpack.c.h.b16 %v2732
      %v2833 = vunpack.c.l.b16 %v2733
      %v2834 = vunpack.c.l.b16 %v2734
      %v2835 = vunpack.c.h.b16 %v2734
      %v2836 = vunpack.c.l.b16 %v2735
      %v2837 = vunpack.c.l.b16 %v2736
      %v2838 = vunpack.c.h.b16 %v2736
      %v2839 = vunpack.c.l.b16 %v2737
      %v2840 = vunpack.c.l.b16 %v2738
      %v2841 = vunpack.c.h.b16 %v2738
      %v2842 = vunpack.c.l.b16 %v2739
      %v2843 = vunpack.c.l.b16 %v2740
      %v2844 = vunpack.c.h.b16 %v2740
      %v2845 = vunpack.c.l.b16 %v2741
      %v2846 = vunpack.c.l.b16 %v2742
      %v2847 = vunpack.c.h.b16 %v2742
      %v2848 = vunpack.c.l.b16 %v2743
      %v2849 = vunpack.c.l.b16 %v2744
      %v2850 = vunpack.c.h.b16 %v2744
      %v2851 = vunpack.c.l.b16 %v2745
      %v2852 = vunpack.c.l.b16 %v2746
      %v2853 = vunpack.c.h.b16 %v2746
      %v2854 = vunpack.c.l.b16 %v2747
      %v2855 = vunpack.c.l.b16 %v2748
      %v2856 = vunpack.c.h.b16 %v2748
      %v2857 = vunpack.c.l.b16 %v2749
      %v2858 = vunpack.c.l.b16 %v2750
      %v2859 = vunpack.c.h.b16 %v2750
      %v2860 = vunpack.c.l.b16 %v2751
      %v2861 = vunpack.c.l.b16 %v2752
      %v2862 = vunpack.c.h.b16 %v2752
      %v2863 = vunpack.c.l.b16 %v2753
      %v2864 = vunpack.c.l.b16 %v2754
      %v2865 = vunpack.c.h.b16 %v2754
      %v2866 = vunpack.c.l.b16 %v2755
      %v2867 = vunpack.c.l.b16 %v2756
      %v2868 = vunpack.c.h.b16 %v2756
      %v2869 = vunpack.c.l.b16 %v2757
      %v2870 = vpack.c.b16 %v2825, %v2822
      %v2871 = vpack.c.b16 %v2826, %v2823
      %v2872 = vpack.c.b16 %v2827, %v2824
      %v2873 = vpack.c.b16 %v2831, %v2828
      %v2874 = vpack.c.b16 %v2832, %v2829
      %v2875 = vpack.c.b16 %v2833, %v2830
      %v2876 = vpack.c.b16 %v2837, %v2834
      %v2877 = vpack.c.b16 %v2838, %v2835
      %v2878 = vpack.c.b16 %v2839, %v2836
      %v2879 = vpack.c.b16 %v2843, %v2840
      %v2880 = vpack.c.b16 %v2844, %v2841
      %v2881 = vpack.c.b16 %v2845, %v2842
      %v2882 = vpack.c.b16 %v2849, %v2846
      %v2883 = vpack.c.b16 %v2850, %v2847
      %v2884 = vpack.c.b16 %v2851, %v2848
      %v2885 = vpack.c.b16 %v2855, %v2852
      %v2886 = vpack.c.b16 %v2856, %v2853
      %v2887 = vpack.c.b16 %v2857, %v2854
      %v2888 = vpack.c.b16 %v2861, %v2858
      %v2889 = vpack.c.b16 %v2862, %v2859
      %v2890 = vpack.c.b16 %v2863, %v2860
      %v2891 = vpack.c.b16 %v2867, %v2864
      %v2892 = vpack.c.b16 %v2868, %v2865
      %v2893 = vpack.c.b16 %v2869, %v2866
      %2918 = vmatpush.bf16.msra.mxu0 %v2891
      %2919 = vmatpush.bf16.msra.mxu0 %v2888
      %2920 = vmatpush.bf16.msra.mxu0 %v2885
      %2921 = vmatpush.bf16.msra.mxu0 %v2882
      %2922 = vmatpush.bf16.msra.mxu0 %v2879
      %2923 = vmatpush.bf16.msra.mxu0 %v2876
      %2924 = vmatpush.bf16.msra.mxu0 %v2873
      %2925 = vmatpush.bf16.msra.mxu0 %v2870
      %2926 = vmatmul.bf16.gmra.mxu0 %v2782
      %v2927 = vpop.f32.mrf.mxu0
      %v2928 = vadd.f32 %v2760, %v2927
      %v2929 = vpop.f32.mrf.mxu0
      %v2930 = vadd.f32 %v2760, %v2929
      %2931 = vmatmul.bf16.gmra.mxu0 %v2783
      %v2932 = vpop.f32.mrf.mxu0
      %v2933 = vadd.f32 %v2760, %v2932
      %v2934 = vpop.f32.mrf.mxu0
      %v2935 = vadd.f32 %v2760, %v2934
      %2936 = vmatmul.bf16.gmra.mxu0 %v2784
      %v2937 = vpop.f32.mrf.mxu0
      %v2938 = vadd.f32 %v2760, %v2937
      %v2939 = vpop.f32.mrf.mxu0
      %v2940 = vadd.f32 %v2760, %v2939
      %2941 = vmatmul.bf16.gmra.mxu0 %v2785
      %v2942 = vpop.f32.mrf.mxu0
      %v2943 = vadd.f32 %v2760, %v2942
      %v2944 = vpop.f32.mrf.mxu0
      %v2945 = vadd.f32 %v2760, %v2944
      %2946 = vdwg.mxu0
      %2947 = vmatpush.bf16.msra.mxu0 %v2892
      %2948 = vmatpush.bf16.msra.mxu0 %v2889
      %2949 = vmatpush.bf16.msra.mxu0 %v2886
      %2950 = vmatpush.bf16.msra.mxu0 %v2883
      %2951 = vmatpush.bf16.msra.mxu0 %v2880
      %2952 = vmatpush.bf16.msra.mxu0 %v2877
      %2953 = vmatpush.bf16.msra.mxu0 %v2874
      %2954 = vmatpush.bf16.msra.mxu0 %v2871
      %2955 = vmatmul.bf16.gmra.mxu0 %v2782
      %v2956 = vpop.f32.mrf.mxu0
      %v2957 = vadd.f32 %v2761, %v2956
      %v2958 = vpop.f32.mrf.mxu0
      %v2959 = vadd.f32 %v2761, %v2958
      %2960 = vmatmul.bf16.gmra.mxu0 %v2783
      %v2961 = vpop.f32.mrf.mxu0
      %v2962 = vadd.f32 %v2761, %v2961
      %v2963 = vpop.f32.mrf.mxu0
      %v2964 = vadd.f32 %v2761, %v2963
      %2965 = vmatmul.bf16.gmra.mxu0 %v2784
      %v2966 = vpop.f32.mrf.mxu0
      %v2967 = vadd.f32 %v2761, %v2966
      %v2968 = vpop.f32.mrf.mxu0
      %v2969 = vadd.f32 %v2761, %v2968
      %2970 = vmatmul.bf16.gmra.mxu0 %v2785
      %v2971 = vpop.f32.mrf.mxu0
      %v2972 = vadd.f32 %v2761, %v2971
      %v2973 = vpop.f32.mrf.mxu0
      %v2974 = vadd.f32 %v2761, %v2973
      %2975 = vdwg.mxu0
      %2976 = vmatpush.bf16.msra.mxu0 %v2893
      %2977 = vmatpush.bf16.msra.mxu0 %v2890
      %2978 = vmatpush.bf16.msra.mxu0 %v2887
      %2979 = vmatpush.bf16.msra.mxu0 %v2884
      %2980 = vmatpush.bf16.msra.mxu0 %v2881
      %2981 = vmatpush.bf16.msra.mxu0 %v2878
      %2982 = vmatpush.bf16.msra.mxu0 %v2875
      %2983 = vmatpush.bf16.msra.mxu0 %v2872
      %2984 = vmatmul.bf16.gmra.mxu0 %v2782
      %v2985 = vpop.f32.mrf.mxu0
      %v2986 = vadd.f32 %v2762, %v2985
      %v2987 = vpop.f32.mrf.mxu0
      %v2988 = vadd.f32 %v2762, %v2987
      %2989 = vmatmul.bf16.gmra.mxu0 %v2783
      %v2990 = vpop.f32.mrf.mxu0
      %v2991 = vadd.f32 %v2762, %v2990
      %v2992 = vpop.f32.mrf.mxu0
      %v2993 = vadd.f32 %v2762, %v2992
      %2994 = vmatmul.bf16.gmra.mxu0 %v2784
      %v2995 = vpop.f32.mrf.mxu0
      %v2996 = vadd.f32 %v2762, %v2995
      %v2997 = vpop.f32.mrf.mxu0
      %v2998 = vadd.f32 %v2762, %v2997
      %2999 = vmatmul.bf16.gmra.mxu0 %v2785
      %v3000 = vpop.f32.mrf.mxu0
      %v3001 = vadd.f32 %v2762, %v3000
      %v3002 = vpop.f32.mrf.mxu0
      %v3003 = vadd.f32 %v2762, %v3002
      %3004 = vdwg.mxu0
      %v3005 = vld [vmem:[#allocation3] sm:$0xff]
      %v3006 = vpack.c.bf16 %v3005, %v3005
      %v3007 = vld [vmem:[%s6] sm:$0xff]
      %v3008 = vld [vmem:[%s6 + $0x8] sm:$0xf]
      %v3009 = vld [vmem:[%s6 + $0xc] sm:$0xff]
      %v3010 = vld [vmem:[%s6 + $0x14] sm:$0xf]
      %v3011 = vld [vmem:[%s6 + $0x18] sm:$0xff]
      %v3012 = vld [vmem:[%s6 + $0x20] sm:$0xf]
      %v3013 = vld [vmem:[%s6 + $0x24] sm:$0xff]
      %v3014 = vld [vmem:[%s6 + $0x2c] sm:$0xf]
      %v3015 = vld [vmem:[%s6 + $0x30] sm:$0xff]
      %v3016 = vld [vmem:[%s6 + $0x38] sm:$0xf]
      %v3017 = vld [vmem:[%s6 + $0x3c] sm:$0xff]
      %v3018 = vld [vmem:[%s6 + $0x44] sm:$0xf]
      %v3019 = vld [vmem:[%s6 + $0x48] sm:$0xff]
      %v3020 = vld [vmem:[%s6 + $0x50] sm:$0xf]
      %v3021 = vld [vmem:[%s6 + $0x54] sm:$0xff]
      %v3022 = vld [vmem:[%s6 + $0x5c] sm:$0xf]
      %v3023 = vld [vmem:[%s6 + $0x60] sm:$0xff]
      %v3024 = vld [vmem:[%s6 + $0x68] sm:$0xf]
      %v3025 = vld [vmem:[%s6 + $0x6c] sm:$0xff]
      %v3026 = vld [vmem:[%s6 + $0x74] sm:$0xf]
      %v3027 = vld [vmem:[%s6 + $0x78] sm:$0xff]
      %v3028 = vld [vmem:[%s6 + $0x80] sm:$0xf]
      %v3029 = vld [vmem:[%s6 + $0x84] sm:$0xff]
      %v3030 = vld [vmem:[%s6 + $0x8c] sm:$0xf]
      %v3031 = vld [vmem:[%s6 + $0x90] sm:$0xff]
      %v3032 = vld [vmem:[%s6 + $0x98] sm:$0xf]
      %v3033 = vld [vmem:[%s6 + $0x9c] sm:$0xff]
      %v3034 = vld [vmem:[%s6 + $0xa4] sm:$0xf]
      %v3035 = vld [vmem:[%s6 + $0xa8] sm:$0xff]
      %v3036 = vld [vmem:[%s6 + $0xb0] sm:$0xf]
      %v3037 = vld [vmem:[%s6 + $0xb4] sm:$0xff]
      %v3038 = vld [vmem:[%s6 + $0xbc] sm:$0xf]
      %v3071 = vunpack.c.l.b16 %v3007
      %v3072 = vunpack.c.h.b16 %v3007
      %v3073 = vunpack.c.l.b16 %v3008
      %v3074 = vunpack.c.l.b16 %v3009
      %v3075 = vunpack.c.h.b16 %v3009
      %v3076 = vunpack.c.l.b16 %v3010
      %v3077 = vunpack.c.l.b16 %v3011
      %v3078 = vunpack.c.h.b16 %v3011
      %v3079 = vunpack.c.l.b16 %v3012
      %v3080 = vunpack.c.l.b16 %v3013
      %v3081 = vunpack.c.h.b16 %v3013
      %v3082 = vunpack.c.l.b16 %v3014
      %v3083 = vunpack.c.l.b16 %v3015
      %v3084 = vunpack.c.h.b16 %v3015
      %v3085 = vunpack.c.l.b16 %v3016
      %v3086 = vunpack.c.l.b16 %v3017
      %v3087 = vunpack.c.h.b16 %v3017
      %v3088 = vunpack.c.l.b16 %v3018
      %v3089 = vunpack.c.l.b16 %v3019
      %v3090 = vunpack.c.h.b16 %v3019
      %v3091 = vunpack.c.l.b16 %v3020
      %v3092 = vunpack.c.l.b16 %v3021
      %v3093 = vunpack.c.h.b16 %v3021
      %v3094 = vunpack.c.l.b16 %v3022
      %v3095 = vunpack.c.l.b16 %v3023
      %v3096 = vunpack.c.h.b16 %v3023
      %v3097 = vunpack.c.l.b16 %v3024
      %v3098 = vunpack.c.l.b16 %v3025
      %v3099 = vunpack.c.h.b16 %v3025
      %v3100 = vunpack.c.l.b16 %v3026
      %v3101 = vunpack.c.l.b16 %v3027
      %v3102 = vunpack.c.h.b16 %v3027
      %v3103 = vunpack.c.l.b16 %v3028
      %v3104 = vunpack.c.l.b16 %v3029
      %v3105 = vunpack.c.h.b16 %v3029
      %v3106 = vunpack.c.l.b16 %v3030
      %v3107 = vunpack.c.l.b16 %v3031
      %v3108 = vunpack.c.h.b16 %v3031
      %v3109 = vunpack.c.l.b16 %v3032
      %v3110 = vunpack.c.l.b16 %v3033
      %v3111 = vunpack.c.h.b16 %v3033
      %v3112 = vunpack.c.l.b16 %v3034
      %v3113 = vunpack.c.l.b16 %v3035
      %v3114 = vunpack.c.h.b16 %v3035
      %v3115 = vunpack.c.l.b16 %v3036
      %v3116 = vunpack.c.l.b16 %v3037
      %v3117 = vunpack.c.h.b16 %v3037
      %v3118 = vunpack.c.l.b16 %v3038
      %v3119 = vpack.c.b16 %v3074, %v3071
      %v3120 = vpack.c.b16 %v3075, %v3072
      %v3121 = vpack.c.b16 %v3076, %v3073
      %v3122 = vpack.c.b16 %v3080, %v3077
      %v3123 = vpack.c.b16 %v3081, %v3078
      %v3124 = vpack.c.b16 %v3082, %v3079
      %v3125 = vpack.c.b16 %v3086, %v3083
      %v3126 = vpack.c.b16 %v3087, %v3084
      %v3127 = vpack.c.b16 %v3088, %v3085
      %v3128 = vpack.c.b16 %v3092, %v3089
      %v3129 = vpack.c.b16 %v3093, %v3090
      %v3130 = vpack.c.b16 %v3094, %v3091
      %v3131 = vpack.c.b16 %v3098, %v3095
      %v3132 = vpack.c.b16 %v3099, %v3096
      %v3133 = vpack.c.b16 %v3100, %v3097
      %v3134 = vpack.c.b16 %v3104, %v3101
      %v3135 = vpack.c.b16 %v3105, %v3102
      %v3136 = vpack.c.b16 %v3106, %v3103
      %v3137 = vpack.c.b16 %v3110, %v3107
      %v3138 = vpack.c.b16 %v3111, %v3108
      %v3139 = vpack.c.b16 %v3112, %v3109
      %v3140 = vpack.c.b16 %v3116, %v3113
      %v3141 = vpack.c.b16 %v3117, %v3114
      %v3142 = vpack.c.b16 %v3118, %v3115
      %3167 = vmatpush.bf16.msra.mxu0 %v3140
      %3168 = vmatpush.bf16.msra.mxu0 %v3137
      %3169 = vmatpush.bf16.msra.mxu0 %v3134
      %3170 = vmatpush.bf16.msra.mxu0 %v3131
      %3171 = vmatpush.bf16.msra.mxu0 %v3128
      %3172 = vmatpush.bf16.msra.mxu0 %v3125
      %3173 = vmatpush.bf16.msra.mxu0 %v3122
      %3174 = vmatpush.bf16.msra.mxu0 %v3119
      %3175 = vmatmul.bf16.gmra.mxu0 %v3006
      %v3176 = vpop.f32.mrf.mxu0
      %v3177 = vadd.f32 0.0, %v3176
      %v3178 = vpop.f32.mrf.mxu0
      %3179 = vdwg.mxu0
      %3180 = vmatpush.bf16.msra.mxu0 %v3141
      %3181 = vmatpush.bf16.msra.mxu0 %v3138
      %3182 = vmatpush.bf16.msra.mxu0 %v3135
      %3183 = vmatpush.bf16.msra.mxu0 %v3132
      %3184 = vmatpush.bf16.msra.mxu0 %v3129
      %3185 = vmatpush.bf16.msra.mxu0 %v3126
      %3186 = vmatpush.bf16.msra.mxu0 %v3123
      %3187 = vmatpush.bf16.msra.mxu0 %v3120
      %3188 = vmatmul.bf16.gmra.mxu0 %v3006
      %v3189 = vpop.f32.mrf.mxu0
      %v3190 = vadd.f32 0.0, %v3189
      %v3191 = vpop.f32.mrf.mxu0
      %3192 = vdwg.mxu0
      %3193 = vmatpush.bf16.msra.mxu0 %v3142
      %3194 = vmatpush.bf16.msra.mxu0 %v3139
      %3195 = vmatpush.bf16.msra.mxu0 %v3136
      %3196 = vmatpush.bf16.msra.mxu0 %v3133
      %3197 = vmatpush.bf16.msra.mxu0 %v3130
      %3198 = vmatpush.bf16.msra.mxu0 %v3127
      %3199 = vmatpush.bf16.msra.mxu0 %v3124
      %3200 = vmatpush.bf16.msra.mxu0 %v3121
      %3201 = vmatmul.bf16.gmra.mxu0 %v3006
      %v3202 = vpop.f32.mrf.mxu0
      %v3203 = vadd.f32 0.0, %v3202
      %v3204 = vpop.f32.mrf.mxu0
      %3205 = vdwg.mxu0
      %v3206 = vadd.f32 %v2928, %v3177
      %v3207 = vxor.u32 %v3206, 2147483648
      %v3208 = vmul.f32 %v3207, 1.442695
      %v3209 = vpow.pop %v3208
      %v3210 = vadd.f32 %v3209, 1.0
      %v3211 = vrcp.pop %v3210
      %v3212 = vmul.f32 %v3210, %v3211
      %v3213 = vsub.f32 1.0, %v3212
      %v3214 = vmul.f32 %v3211, %v3213
      %v3215 = vadd.f32 %v3211, %v3214
      %vm3216 = vweird.f32 %v3210
      %vm3217 = vweird.f32 %v3211
      %vm3218 = vmor %vm3216, %vm3217
      %v3219 = vsel %vm3218, %v3211, %v3215
      %v3220 = vand.u32 2147483647, %v3210
      %vm3221 = vcmp.eq.f32.partialorder %v3220, 8.507059e+37
      %v3222 = vand.u32 %v3210, 2147483648
      %v3223 = vor.u32 1.1754944e-38, %v3222
      %v3224 = vsel %vm3221, %v3223, %v3219
      %v3225 = vmul.f32 1.0, %v3224
      %v3226 = vadd.f32 %v2957, %v3190
      %v3227 = vxor.u32 %v3226, 2147483648
      %v3228 = vmul.f32 %v3227, 1.442695
      %v3229 = vpow.pop %v3228
      %v3230 = vadd.f32 %v3229, 1.0
      %v3231 = vrcp.pop %v3230
      %v3232 = vmul.f32 %v3230, %v3231
      %v3233 = vsub.f32 1.0, %v3232
      %v3234 = vmul.f32 %v3231, %v3233
      %v3235 = vadd.f32 %v3231, %v3234
      %vm3236 = vweird.f32 %v3230
      %vm3237 = vweird.f32 %v3231
      %vm3238 = vmor %vm3236, %vm3237
      %v3239 = vsel %vm3238, %v3231, %v3235
      %v3240 = vand.u32 2147483647, %v3230
      %vm3241 = vcmp.eq.f32.partialorder %v3240, 8.507059e+37
      %v3242 = vand.u32 %v3230, 2147483648
      %v3243 = vor.u32 1.1754944e-38, %v3242
      %v3244 = vsel %vm3241, %v3243, %v3239
      %v3245 = vmul.f32 1.0, %v3244
      %v3246 = vld [vmem:[%s8] sm:$0x1]
      %v3248 = vperm.slane %v3246, 0
      %v3250 = vadd.f32 %v3203, %v3248
      %v3251 = vmul.f32 %v3225, %v3250
      %v3252 = vadd.f32 %v2986, %v3251
      %v3253 = vtanh.pop %v3252
      %v3254 = vsub.f32 1.0, %v3245
      %v3255 = vmul.f32 %v3254, %v3253
      %v3256 = vmul.f32 %v3245, %v3005
      %v3257 = vadd.f32 %v3255, %v3256
      %v3258 = vsel %vm900, %v3257, %v3005
      %v3259 = vpack.c.bf16 %v3258, %v3258
      %3260 = vmatpush.bf16.msra.mxu0 %v3140
      %3261 = vmatpush.bf16.msra.mxu0 %v3137
      %3262 = vmatpush.bf16.msra.mxu0 %v3134
      %3263 = vmatpush.bf16.msra.mxu0 %v3131
      %3264 = vmatpush.bf16.msra.mxu0 %v3128
      %3265 = vmatpush.bf16.msra.mxu0 %v3125
      %3266 = vmatpush.bf16.msra.mxu0 %v3122
      %3267 = vmatpush.bf16.msra.mxu0 %v3119
      %3268 = vmatmul.bf16.gmra.mxu0 %v3259
      %v3269 = vpop.f32.mrf.mxu0
      %v3270 = vadd.f32 0.0, %v3269
      %v3271 = vpop.f32.mrf.mxu0
      %3272 = vdwg.mxu0
      %3273 = vmatpush.bf16.msra.mxu0 %v3141
      %3274 = vmatpush.bf16.msra.mxu0 %v3138
      %3275 = vmatpush.bf16.msra.mxu0 %v3135
      %3276 = vmatpush.bf16.msra.mxu0 %v3132
      %3277 = vmatpush.bf16.msra.mxu0 %v3129
      %3278 = vmatpush.bf16.msra.mxu0 %v3126
      %3279 = vmatpush.bf16.msra.mxu0 %v3123
      %3280 = vmatpush.bf16.msra.mxu0 %v3120
      %3281 = vmatmul.bf16.gmra.mxu0 %v3259
      %v3282 = vpop.f32.mrf.mxu0
      %v3283 = vadd.f32 0.0, %v3282
      %v3284 = vpop.f32.mrf.mxu0
      %3285 = vdwg.mxu0
      %3286 = vmatpush.bf16.msra.mxu0 %v3142
      %3287 = vmatpush.bf16.msra.mxu0 %v3139
      %3288 = vmatpush.bf16.msra.mxu0 %v3136
      %3289 = vmatpush.bf16.msra.mxu0 %v3133
      %3290 = vmatpush.bf16.msra.mxu0 %v3130
      %3291 = vmatpush.bf16.msra.mxu0 %v3127
      %3292 = vmatpush.bf16.msra.mxu0 %v3124
      %3293 = vmatpush.bf16.msra.mxu0 %v3121
      %3294 = vmatmul.bf16.gmra.mxu0 %v3259
      %v3295 = vpop.f32.mrf.mxu0
      %v3296 = vadd.f32 0.0, %v3295
      %v3297 = vpop.f32.mrf.mxu0
      %3298 = vdwg.mxu0
      %v3299 = vadd.f32 %v2930, %v3270
      %v3300 = vxor.u32 %v3299, 2147483648
      %v3301 = vmul.f32 %v3300, 1.442695
      %v3302 = vpow.pop %v3301
      %v3303 = vadd.f32 %v3302, 1.0
      %v3304 = vrcp.pop %v3303
      %v3305 = vmul.f32 %v3303, %v3304
      %v3306 = vsub.f32 1.0, %v3305
      %v3307 = vmul.f32 %v3304, %v3306
      %v3308 = vadd.f32 %v3304, %v3307
      %vm3309 = vweird.f32 %v3303
      %vm3310 = vweird.f32 %v3304
      %vm3311 = vmor %vm3309, %vm3310
      %v3312 = vsel %vm3311, %v3304, %v3308
      %v3313 = vand.u32 2147483647, %v3303
      %vm3314 = vcmp.eq.f32.partialorder %v3313, 8.507059e+37
      %v3315 = vand.u32 %v3303, 2147483648
      %v3316 = vor.u32 1.1754944e-38, %v3315
      %v3317 = vsel %vm3314, %v3316, %v3312
      %v3318 = vmul.f32 1.0, %v3317
      %v3319 = vadd.f32 %v2959, %v3283
      %v3320 = vxor.u32 %v3319, 2147483648
      %v3321 = vmul.f32 %v3320, 1.442695
      %v3322 = vpow.pop %v3321
      %v3323 = vadd.f32 %v3322, 1.0
      %v3324 = vrcp.pop %v3323
      %v3325 = vmul.f32 %v3323, %v3324
      %v3326 = vsub.f32 1.0, %v3325
      %v3327 = vmul.f32 %v3324, %v3326
      %v3328 = vadd.f32 %v3324, %v3327
      %vm3329 = vweird.f32 %v3323
      %vm3330 = vweird.f32 %v3324
      %vm3331 = vmor %vm3329, %vm3330
      %v3332 = vsel %vm3331, %v3324, %v3328
      %v3333 = vand.u32 2147483647, %v3323
      %vm3334 = vcmp.eq.f32.partialorder %v3333, 8.507059e+37
      %v3335 = vand.u32 %v3323, 2147483648
      %v3336 = vor.u32 1.1754944e-38, %v3335
      %v3337 = vsel %vm3334, %v3336, %v3332
      %v3338 = vmul.f32 1.0, %v3337
      %v3339 = vadd.f32 %v3296, %v3248
      %v3340 = vmul.f32 %v3318, %v3339
      %v3341 = vadd.f32 %v2988, %v3340
      %v3342 = vtanh.pop %v3341
      %v3343 = vsub.f32 1.0, %v3338
      %v3344 = vmul.f32 %v3343, %v3342
      %v3345 = vmul.f32 %v3338, %v3258
      %v3346 = vadd.f32 %v3344, %v3345
      %v3347 = vsel %vm1159, %v3346, %v3258
      %v3348 = vpack.c.bf16 %v3347, %v3347
      %3349 = vmatpush.bf16.msra.mxu0 %v3140
      %3350 = vmatpush.bf16.msra.mxu0 %v3137
      %3351 = vmatpush.bf16.msra.mxu0 %v3134
      %3352 = vmatpush.bf16.msra.mxu0 %v3131
      %3353 = vmatpush.bf16.msra.mxu0 %v3128
      %3354 = vmatpush.bf16.msra.mxu0 %v3125
      %3355 = vmatpush.bf16.msra.mxu0 %v3122
      %3356 = vmatpush.bf16.msra.mxu0 %v3119
      %3357 = vmatmul.bf16.gmra.mxu0 %v3348
      %v3358 = vpop.f32.mrf.mxu0
      %v3359 = vadd.f32 0.0, %v3358
      %v3360 = vpop.f32.mrf.mxu0
      %3361 = vdwg.mxu0
      %3362 = vmatpush.bf16.msra.mxu0 %v3141
      %3363 = vmatpush.bf16.msra.mxu0 %v3138
      %3364 = vmatpush.bf16.msra.mxu0 %v3135
      %3365 = vmatpush.bf16.msra.mxu0 %v3132
      %3366 = vmatpush.bf16.msra.mxu0 %v3129
      %3367 = vmatpush.bf16.msra.mxu0 %v3126
      %3368 = vmatpush.bf16.msra.mxu0 %v3123
      %3369 = vmatpush.bf16.msra.mxu0 %v3120
      %3370 = vmatmul.bf16.gmra.mxu0 %v3348
      %v3371 = vpop.f32.mrf.mxu0
      %v3372 = vadd.f32 0.0, %v3371
      %v3373 = vpop.f32.mrf.mxu0
      %3374 = vdwg.mxu0
      %3375 = vmatpush.bf16.msra.mxu0 %v3142
      %3376 = vmatpush.bf16.msra.mxu0 %v3139
      %3377 = vmatpush.bf16.msra.mxu0 %v3136
      %3378 = vmatpush.bf16.msra.mxu0 %v3133
      %3379 = vmatpush.bf16.msra.mxu0 %v3130
      %3380 = vmatpush.bf16.msra.mxu0 %v3127
      %3381 = vmatpush.bf16.msra.mxu0 %v3124
      %3382 = vmatpush.bf16.msra.mxu0 %v3121
      %3383 = vmatmul.bf16.gmra.mxu0 %v3348
      %v3384 = vpop.f32.mrf.mxu0
      %v3385 = vadd.f32 0.0, %v3384
      %v3386 = vpop.f32.mrf.mxu0
      %3387 = vdwg.mxu0
      %v3388 = vadd.f32 %v2933, %v3359
      %v3389 = vxor.u32 %v3388, 2147483648
      %v3390 = vmul.f32 %v3389, 1.442695
      %v3391 = vpow.pop %v3390
      %v3392 = vadd.f32 %v3391, 1.0
      %v3393 = vrcp.pop %v3392
      %v3394 = vmul.f32 %v3392, %v3393
      %v3395 = vsub.f32 1.0, %v3394
      %v3396 = vmul.f32 %v3393, %v3395
      %v3397 = vadd.f32 %v3393, %v3396
      %vm3398 = vweird.f32 %v3392
      %vm3399 = vweird.f32 %v3393
      %vm3400 = vmor %vm3398, %vm3399
      %v3401 = vsel %vm3400, %v3393, %v3397
      %v3402 = vand.u32 2147483647, %v3392
      %vm3403 = vcmp.eq.f32.partialorder %v3402, 8.507059e+37
      %v3404 = vand.u32 %v3392, 2147483648
      %v3405 = vor.u32 1.1754944e-38, %v3404
      %v3406 = vsel %vm3403, %v3405, %v3401
      %v3407 = vmul.f32 1.0, %v3406
      %v3408 = vadd.f32 %v2962, %v3372
      %v3409 = vxor.u32 %v3408, 2147483648
      %v3410 = vmul.f32 %v3409, 1.442695
      %v3411 = vpow.pop %v3410
      %v3412 = vadd.f32 %v3411, 1.0
      %v3413 = vrcp.pop %v3412
      %v3414 = vmul.f32 %v3412, %v3413
      %v3415 = vsub.f32 1.0, %v3414
      %v3416 = vmul.f32 %v3413, %v3415
      %v3417 = vadd.f32 %v3413, %v3416
      %vm3418 = vweird.f32 %v3412
      %vm3419 = vweird.f32 %v3413
      %vm3420 = vmor %vm3418, %vm3419
      %v3421 = vsel %vm3420, %v3413, %v3417
      %v3422 = vand.u32 2147483647, %v3412
      %vm3423 = vcmp.eq.f32.partialorder %v3422, 8.507059e+37
      %v3424 = vand.u32 %v3412, 2147483648
      %v3425 = vor.u32 1.1754944e-38, %v3424
      %v3426 = vsel %vm3423, %v3425, %v3421
      %v3427 = vmul.f32 1.0, %v3426
      %v3428 = vadd.f32 %v3385, %v3248
      %v3429 = vmul.f32 %v3407, %v3428
      %v3430 = vadd.f32 %v2991, %v3429
      %v3431 = vtanh.pop %v3430
      %v3432 = vsub.f32 1.0, %v3427
      %v3433 = vmul.f32 %v3432, %v3431
      %v3434 = vmul.f32 %v3427, %v3347
      %v3435 = vadd.f32 %v3433, %v3434
      %v3436 = vsel %vm1418, %v3435, %v3347
      %v3437 = vpack.c.bf16 %v3436, %v3436
      %3438 = vmatpush.bf16.msra.mxu0 %v3140
      %3439 = vmatpush.bf16.msra.mxu0 %v3137
      %3440 = vmatpush.bf16.msra.mxu0 %v3134
      %3441 = vmatpush.bf16.msra.mxu0 %v3131
      %3442 = vmatpush.bf16.msra.mxu0 %v3128
      %3443 = vmatpush.bf16.msra.mxu0 %v3125
      %3444 = vmatpush.bf16.msra.mxu0 %v3122
      %3445 = vmatpush.bf16.msra.mxu0 %v3119
      %3446 = vmatmul.bf16.gmra.mxu0 %v3437
      %v3447 = vpop.f32.mrf.mxu0
      %v3448 = vadd.f32 0.0, %v3447
      %v3449 = vpop.f32.mrf.mxu0
      %3450 = vdwg.mxu0
      %3451 = vmatpush.bf16.msra.mxu0 %v3141
      %3452 = vmatpush.bf16.msra.mxu0 %v3138
      %3453 = vmatpush.bf16.msra.mxu0 %v3135
      %3454 = vmatpush.bf16.msra.mxu0 %v3132
      %3455 = vmatpush.bf16.msra.mxu0 %v3129
      %3456 = vmatpush.bf16.msra.mxu0 %v3126
      %3457 = vmatpush.bf16.msra.mxu0 %v3123
      %3458 = vmatpush.bf16.msra.mxu0 %v3120
      %3459 = vmatmul.bf16.gmra.mxu0 %v3437
      %v3460 = vpop.f32.mrf.mxu0
      %v3461 = vadd.f32 0.0, %v3460
      %v3462 = vpop.f32.mrf.mxu0
      %3463 = vdwg.mxu0
      %3464 = vmatpush.bf16.msra.mxu0 %v3142
      %3465 = vmatpush.bf16.msra.mxu0 %v3139
      %3466 = vmatpush.bf16.msra.mxu0 %v3136
      %3467 = vmatpush.bf16.msra.mxu0 %v3133
      %3468 = vmatpush.bf16.msra.mxu0 %v3130
      %3469 = vmatpush.bf16.msra.mxu0 %v3127
      %3470 = vmatpush.bf16.msra.mxu0 %v3124
      %3471 = vmatpush.bf16.msra.mxu0 %v3121
      %3472 = vmatmul.bf16.gmra.mxu0 %v3437
      %v3473 = vpop.f32.mrf.mxu0
      %v3474 = vadd.f32 0.0, %v3473
      %v3475 = vpop.f32.mrf.mxu0
      %3476 = vdwg.mxu0
      %v3477 = vadd.f32 %v2935, %v3448
      %v3478 = vxor.u32 %v3477, 2147483648
      %v3479 = vmul.f32 %v3478, 1.442695
      %v3480 = vpow.pop %v3479
      %v3481 = vadd.f32 %v3480, 1.0
      %v3482 = vrcp.pop %v3481
      %v3483 = vmul.f32 %v3481, %v3482
      %v3484 = vsub.f32 1.0, %v3483
      %v3485 = vmul.f32 %v3482, %v3484
      %v3486 = vadd.f32 %v3482, %v3485
      %vm3487 = vweird.f32 %v3481
      %vm3488 = vweird.f32 %v3482
      %vm3489 = vmor %vm3487, %vm3488
      %v3490 = vsel %vm3489, %v3482, %v3486
      %v3491 = vand.u32 2147483647, %v3481
      %vm3492 = vcmp.eq.f32.partialorder %v3491, 8.507059e+37
      %v3493 = vand.u32 %v3481, 2147483648
      %v3494 = vor.u32 1.1754944e-38, %v3493
      %v3495 = vsel %vm3492, %v3494, %v3490
      %v3496 = vmul.f32 1.0, %v3495
      %v3497 = vadd.f32 %v2964, %v3461
      %v3498 = vxor.u32 %v3497, 2147483648
      %v3499 = vmul.f32 %v3498, 1.442695
      %v3500 = vpow.pop %v3499
      %v3501 = vadd.f32 %v3500, 1.0
      %v3502 = vrcp.pop %v3501
      %v3503 = vmul.f32 %v3501, %v3502
      %v3504 = vsub.f32 1.0, %v3503
      %v3505 = vmul.f32 %v3502, %v3504
      %v3506 = vadd.f32 %v3502, %v3505
      %vm3507 = vweird.f32 %v3501
      %vm3508 = vweird.f32 %v3502
      %vm3509 = vmor %vm3507, %vm3508
      %v3510 = vsel %vm3509, %v3502, %v3506
      %v3511 = vand.u32 2147483647, %v3501
      %vm3512 = vcmp.eq.f32.partialorder %v3511, 8.507059e+37
      %v3513 = vand.u32 %v3501, 2147483648
      %v3514 = vor.u32 1.1754944e-38, %v3513
      %v3515 = vsel %vm3512, %v3514, %v3510
      %v3516 = vmul.f32 1.0, %v3515
      %v3517 = vadd.f32 %v3474, %v3248
      %v3518 = vmul.f32 %v3496, %v3517
      %v3519 = vadd.f32 %v2993, %v3518
      %v3520 = vtanh.pop %v3519
      %v3521 = vsub.f32 1.0, %v3516
      %v3522 = vmul.f32 %v3521, %v3520
      %v3523 = vmul.f32 %v3516, %v3436
      %v3524 = vadd.f32 %v3522, %v3523
      %v3525 = vsel %vm1677, %v3524, %v3436
      %v3526 = vpack.c.bf16 %v3525, %v3525
      %3527 = vmatpush.bf16.msra.mxu0 %v3140
      %3528 = vmatpush.bf16.msra.mxu0 %v3137
      %3529 = vmatpush.bf16.msra.mxu0 %v3134
      %3530 = vmatpush.bf16.msra.mxu0 %v3131
      %3531 = vmatpush.bf16.msra.mxu0 %v3128
      %3532 = vmatpush.bf16.msra.mxu0 %v3125
      %3533 = vmatpush.bf16.msra.mxu0 %v3122
      %3534 = vmatpush.bf16.msra.mxu0 %v3119
      %3535 = vmatmul.bf16.gmra.mxu0 %v3526
      %v3536 = vpop.f32.mrf.mxu0
      %v3537 = vadd.f32 0.0, %v3536
      %v3538 = vpop.f32.mrf.mxu0
      %3539 = vdwg.mxu0
      %3540 = vmatpush.bf16.msra.mxu0 %v3141
      %3541 = vmatpush.bf16.msra.mxu0 %v3138
      %3542 = vmatpush.bf16.msra.mxu0 %v3135
      %3543 = vmatpush.bf16.msra.mxu0 %v3132
      %3544 = vmatpush.bf16.msra.mxu0 %v3129
      %3545 = vmatpush.bf16.msra.mxu0 %v3126
      %3546 = vmatpush.bf16.msra.mxu0 %v3123
      %3547 = vmatpush.bf16.msra.mxu0 %v3120
      %3548 = vmatmul.bf16.gmra.mxu0 %v3526
      %v3549 = vpop.f32.mrf.mxu0
      %v3550 = vadd.f32 0.0, %v3549
      %v3551 = vpop.f32.mrf.mxu0
      %3552 = vdwg.mxu0
      %3553 = vmatpush.bf16.msra.mxu0 %v3142
      %3554 = vmatpush.bf16.msra.mxu0 %v3139
      %3555 = vmatpush.bf16.msra.mxu0 %v3136
      %3556 = vmatpush.bf16.msra.mxu0 %v3133
      %3557 = vmatpush.bf16.msra.mxu0 %v3130
      %3558 = vmatpush.bf16.msra.mxu0 %v3127
      %3559 = vmatpush.bf16.msra.mxu0 %v3124
      %3560 = vmatpush.bf16.msra.mxu0 %v3121
      %3561 = vmatmul.bf16.gmra.mxu0 %v3526
      %v3562 = vpop.f32.mrf.mxu0
      %v3563 = vadd.f32 0.0, %v3562
      %v3564 = vpop.f32.mrf.mxu0
      %3565 = vdwg.mxu0
      %v3566 = vadd.f32 %v2938, %v3537
      %v3567 = vxor.u32 %v3566, 2147483648
      %v3568 = vmul.f32 %v3567, 1.442695
      %v3569 = vpow.pop %v3568
      %v3570 = vadd.f32 %v3569, 1.0
      %v3571 = vrcp.pop %v3570
      %v3572 = vmul.f32 %v3570, %v3571
      %v3573 = vsub.f32 1.0, %v3572
      %v3574 = vmul.f32 %v3571, %v3573
      %v3575 = vadd.f32 %v3571, %v3574
      %vm3576 = vweird.f32 %v3570
      %vm3577 = vweird.f32 %v3571
      %vm3578 = vmor %vm3576, %vm3577
      %v3579 = vsel %vm3578, %v3571, %v3575
      %v3580 = vand.u32 2147483647, %v3570
      %vm3581 = vcmp.eq.f32.partialorder %v3580, 8.507059e+37
      %v3582 = vand.u32 %v3570, 2147483648
      %v3583 = vor.u32 1.1754944e-38, %v3582
      %v3584 = vsel %vm3581, %v3583, %v3579
      %v3585 = vmul.f32 1.0, %v3584
      %v3586 = vadd.f32 %v2967, %v3550
      %v3587 = vxor.u32 %v3586, 2147483648
      %v3588 = vmul.f32 %v3587, 1.442695
      %v3589 = vpow.pop %v3588
      %v3590 = vadd.f32 %v3589, 1.0
      %v3591 = vrcp.pop %v3590
      %v3592 = vmul.f32 %v3590, %v3591
      %v3593 = vsub.f32 1.0, %v3592
      %v3594 = vmul.f32 %v3591, %v3593
      %v3595 = vadd.f32 %v3591, %v3594
      %vm3596 = vweird.f32 %v3590
      %vm3597 = vweird.f32 %v3591
      %vm3598 = vmor %vm3596, %vm3597
      %v3599 = vsel %vm3598, %v3591, %v3595
      %v3600 = vand.u32 2147483647, %v3590
      %vm3601 = vcmp.eq.f32.partialorder %v3600, 8.507059e+37
      %v3602 = vand.u32 %v3590, 2147483648
      %v3603 = vor.u32 1.1754944e-38, %v3602
      %v3604 = vsel %vm3601, %v3603, %v3599
      %v3605 = vmul.f32 1.0, %v3604
      %v3606 = vadd.f32 %v3563, %v3248
      %v3607 = vmul.f32 %v3585, %v3606
      %v3608 = vadd.f32 %v2996, %v3607
      %v3609 = vtanh.pop %v3608
      %v3610 = vsub.f32 1.0, %v3605
      %v3611 = vmul.f32 %v3610, %v3609
      %v3612 = vmul.f32 %v3605, %v3525
      %v3613 = vadd.f32 %v3611, %v3612
      %v3614 = vsel %vm1936, %v3613, %v3525
      %v3615 = vpack.c.bf16 %v3614, %v3614
      %3616 = vmatpush.bf16.msra.mxu0 %v3140
      %3617 = vmatpush.bf16.msra.mxu0 %v3137
      %3618 = vmatpush.bf16.msra.mxu0 %v3134
      %3619 = vmatpush.bf16.msra.mxu0 %v3131
      %3620 = vmatpush.bf16.msra.mxu0 %v3128
      %3621 = vmatpush.bf16.msra.mxu0 %v3125
      %3622 = vmatpush.bf16.msra.mxu0 %v3122
      %3623 = vmatpush.bf16.msra.mxu0 %v3119
      %3624 = vmatmul.bf16.gmra.mxu0 %v3615
      %v3625 = vpop.f32.mrf.mxu0
      %v3626 = vadd.f32 0.0, %v3625
      %v3627 = vpop.f32.mrf.mxu0
      %3628 = vdwg.mxu0
      %3629 = vmatpush.bf16.msra.mxu0 %v3141
      %3630 = vmatpush.bf16.msra.mxu0 %v3138
      %3631 = vmatpush.bf16.msra.mxu0 %v3135
      %3632 = vmatpush.bf16.msra.mxu0 %v3132
      %3633 = vmatpush.bf16.msra.mxu0 %v3129
      %3634 = vmatpush.bf16.msra.mxu0 %v3126
      %3635 = vmatpush.bf16.msra.mxu0 %v3123
      %3636 = vmatpush.bf16.msra.mxu0 %v3120
      %3637 = vmatmul.bf16.gmra.mxu0 %v3615
      %v3638 = vpop.f32.mrf.mxu0
      %v3639 = vadd.f32 0.0, %v3638
      %v3640 = vpop.f32.mrf.mxu0
      %3641 = vdwg.mxu0
      %3642 = vmatpush.bf16.msra.mxu0 %v3142
      %3643 = vmatpush.bf16.msra.mxu0 %v3139
      %3644 = vmatpush.bf16.msra.mxu0 %v3136
      %3645 = vmatpush.bf16.msra.mxu0 %v3133
      %3646 = vmatpush.bf16.msra.mxu0 %v3130
      %3647 = vmatpush.bf16.msra.mxu0 %v3127
      %3648 = vmatpush.bf16.msra.mxu0 %v3124
      %3649 = vmatpush.bf16.msra.mxu0 %v3121
      %3650 = vmatmul.bf16.gmra.mxu0 %v3615
      %v3651 = vpop.f32.mrf.mxu0
      %v3652 = vadd.f32 0.0, %v3651
      %v3653 = vpop.f32.mrf.mxu0
      %3654 = vdwg.mxu0
      %v3655 = vadd.f32 %v2940, %v3626
      %v3656 = vxor.u32 %v3655, 2147483648
      %v3657 = vmul.f32 %v3656, 1.442695
      %v3658 = vpow.pop %v3657
      %v3659 = vadd.f32 %v3658, 1.0
      %v3660 = vrcp.pop %v3659
      %v3661 = vmul.f32 %v3659, %v3660
      %v3662 = vsub.f32 1.0, %v3661
      %v3663 = vmul.f32 %v3660, %v3662
      %v3664 = vadd.f32 %v3660, %v3663
      %vm3665 = vweird.f32 %v3659
      %vm3666 = vweird.f32 %v3660
      %vm3667 = vmor %vm3665, %vm3666
      %v3668 = vsel %vm3667, %v3660, %v3664
      %v3669 = vand.u32 2147483647, %v3659
      %vm3670 = vcmp.eq.f32.partialorder %v3669, 8.507059e+37
      %v3671 = vand.u32 %v3659, 2147483648
      %v3672 = vor.u32 1.1754944e-38, %v3671
      %v3673 = vsel %vm3670, %v3672, %v3668
      %v3674 = vmul.f32 1.0, %v3673
      %v3675 = vadd.f32 %v2969, %v3639
      %v3676 = vxor.u32 %v3675, 2147483648
      %v3677 = vmul.f32 %v3676, 1.442695
      %v3678 = vpow.pop %v3677
      %v3679 = vadd.f32 %v3678, 1.0
      %v3680 = vrcp.pop %v3679
      %v3681 = vmul.f32 %v3679, %v3680
      %v3682 = vsub.f32 1.0, %v3681
      %v3683 = vmul.f32 %v3680, %v3682
      %v3684 = vadd.f32 %v3680, %v3683
      %vm3685 = vweird.f32 %v3679
      %vm3686 = vweird.f32 %v3680
      %vm3687 = vmor %vm3685, %vm3686
      %v3688 = vsel %vm3687, %v3680, %v3684
      %v3689 = vand.u32 2147483647, %v3679
      %vm3690 = vcmp.eq.f32.partialorder %v3689, 8.507059e+37
      %v3691 = vand.u32 %v3679, 2147483648
      %v3692 = vor.u32 1.1754944e-38, %v3691
      %v3693 = vsel %vm3690, %v3692, %v3688
      %v3694 = vmul.f32 1.0, %v3693
      %v3695 = vadd.f32 %v3652, %v3248
      %v3696 = vmul.f32 %v3674, %v3695
      %v3697 = vadd.f32 %v2998, %v3696
      %v3698 = vtanh.pop %v3697
      %v3699 = vsub.f32 1.0, %v3694
      %v3700 = vmul.f32 %v3699, %v3698
      %v3701 = vmul.f32 %v3694, %v3614
      %v3702 = vadd.f32 %v3700, %v3701
      %v3703 = vsel %vm2195, %v3702, %v3614
      %v3704 = vpack.c.bf16 %v3703, %v3703
      %3705 = vmatpush.bf16.msra.mxu0 %v3140
      %3706 = vmatpush.bf16.msra.mxu0 %v3137
      %3707 = vmatpush.bf16.msra.mxu0 %v3134
      %3708 = vmatpush.bf16.msra.mxu0 %v3131
      %3709 = vmatpush.bf16.msra.mxu0 %v3128
      %3710 = vmatpush.bf16.msra.mxu0 %v3125
      %3711 = vmatpush.bf16.msra.mxu0 %v3122
      %3712 = vmatpush.bf16.msra.mxu0 %v3119
      %3713 = vmatmul.bf16.gmra.mxu0 %v3704
      %v3714 = vpop.f32.mrf.mxu0
      %v3715 = vadd.f32 0.0, %v3714
      %v3716 = vpop.f32.mrf.mxu0
      %3717 = vdwg.mxu0
      %3718 = vmatpush.bf16.msra.mxu0 %v3141
      %3719 = vmatpush.bf16.msra.mxu0 %v3138
      %3720 = vmatpush.bf16.msra.mxu0 %v3135
      %3721 = vmatpush.bf16.msra.mxu0 %v3132
      %3722 = vmatpush.bf16.msra.mxu0 %v3129
      %3723 = vmatpush.bf16.msra.mxu0 %v3126
      %3724 = vmatpush.bf16.msra.mxu0 %v3123
      %3725 = vmatpush.bf16.msra.mxu0 %v3120
      %3726 = vmatmul.bf16.gmra.mxu0 %v3704
      %v3727 = vpop.f32.mrf.mxu0
      %v3728 = vadd.f32 0.0, %v3727
      %v3729 = vpop.f32.mrf.mxu0
      %3730 = vdwg.mxu0
      %3731 = vmatpush.bf16.msra.mxu0 %v3142
      %3732 = vmatpush.bf16.msra.mxu0 %v3139
      %3733 = vmatpush.bf16.msra.mxu0 %v3136
      %3734 = vmatpush.bf16.msra.mxu0 %v3133
      %3735 = vmatpush.bf16.msra.mxu0 %v3130
      %3736 = vmatpush.bf16.msra.mxu0 %v3127
      %3737 = vmatpush.bf16.msra.mxu0 %v3124
      %3738 = vmatpush.bf16.msra.mxu0 %v3121
      %3739 = vmatmul.bf16.gmra.mxu0 %v3704
      %v3740 = vpop.f32.mrf.mxu0
      %v3741 = vadd.f32 0.0, %v3740
      %v3742 = vpop.f32.mrf.mxu0
      %3743 = vdwg.mxu0
      %v3744 = vadd.f32 %v2943, %v3715
      %v3745 = vxor.u32 %v3744, 2147483648
      %v3746 = vmul.f32 %v3745, 1.442695
      %v3747 = vpow.pop %v3746
      %v3748 = vadd.f32 %v3747, 1.0
      %v3749 = vrcp.pop %v3748
      %v3750 = vmul.f32 %v3748, %v3749
      %v3751 = vsub.f32 1.0, %v3750
      %v3752 = vmul.f32 %v3749, %v3751
      %v3753 = vadd.f32 %v3749, %v3752
      %vm3754 = vweird.f32 %v3748
      %vm3755 = vweird.f32 %v3749
      %vm3756 = vmor %vm3754, %vm3755
      %v3757 = vsel %vm3756, %v3749, %v3753
      %v3758 = vand.u32 2147483647, %v3748
      %vm3759 = vcmp.eq.f32.partialorder %v3758, 8.507059e+37
      %v3760 = vand.u32 %v3748, 2147483648
      %v3761 = vor.u32 1.1754944e-38, %v3760
      %v3762 = vsel %vm3759, %v3761, %v3757
      %v3763 = vmul.f32 1.0, %v3762
      %v3764 = vadd.f32 %v2972, %v3728
      %v3765 = vxor.u32 %v3764, 2147483648
      %v3766 = vmul.f32 %v3765, 1.442695
      %v3767 = vpow.pop %v3766
      %v3768 = vadd.f32 %v3767, 1.0
      %v3769 = vrcp.pop %v3768
      %v3770 = vmul.f32 %v3768, %v3769
      %v3771 = vsub.f32 1.0, %v3770
      %v3772 = vmul.f32 %v3769, %v3771
      %v3773 = vadd.f32 %v3769, %v3772
      %vm3774 = vweird.f32 %v3768
      %vm3775 = vweird.f32 %v3769
      %vm3776 = vmor %vm3774, %vm3775
      %v3777 = vsel %vm3776, %v3769, %v3773
      %v3778 = vand.u32 2147483647, %v3768
      %vm3779 = vcmp.eq.f32.partialorder %v3778, 8.507059e+37
      %v3780 = vand.u32 %v3768, 2147483648
      %v3781 = vor.u32 1.1754944e-38, %v3780
      %v3782 = vsel %vm3779, %v3781, %v3777
      %v3783 = vmul.f32 1.0, %v3782
      %v3784 = vadd.f32 %v3741, %v3248
      %v3785 = vmul.f32 %v3763, %v3784
      %v3786 = vadd.f32 %v3001, %v3785
      %v3787 = vtanh.pop %v3786
      %v3788 = vsub.f32 1.0, %v3783
      %v3789 = vmul.f32 %v3788, %v3787
      %v3790 = vmul.f32 %v3783, %v3703
      %v3791 = vadd.f32 %v3789, %v3790
      %v3792 = vsel %vm2454, %v3791, %v3703
      %v3793 = vpack.c.bf16 %v3792, %v3792
      %3794 = vmatpush.bf16.msra.mxu0 %v3140
      %3795 = vmatpush.bf16.msra.mxu0 %v3137
      %3796 = vmatpush.bf16.msra.mxu0 %v3134
      %3797 = vmatpush.bf16.msra.mxu0 %v3131
      %3798 = vmatpush.bf16.msra.mxu0 %v3128
      %3799 = vmatpush.bf16.msra.mxu0 %v3125
      %3800 = vmatpush.bf16.msra.mxu0 %v3122
      %3801 = vmatpush.bf16.msra.mxu0 %v3119
      %3802 = vmatmul.bf16.gmra.mxu0 %v3793
      %v3803 = vpop.f32.mrf.mxu0
      %v3804 = vadd.f32 0.0, %v3803
      %v3805 = vpop.f32.mrf.mxu0
      %3806 = vdwg.mxu0
      %3807 = vmatpush.bf16.msra.mxu0 %v3141
      %3808 = vmatpush.bf16.msra.mxu0 %v3138
      %3809 = vmatpush.bf16.msra.mxu0 %v3135
      %3810 = vmatpush.bf16.msra.mxu0 %v3132
      %3811 = vmatpush.bf16.msra.mxu0 %v3129
      %3812 = vmatpush.bf16.msra.mxu0 %v3126
      %3813 = vmatpush.bf16.msra.mxu0 %v3123
      %3814 = vmatpush.bf16.msra.mxu0 %v3120
      %3815 = vmatmul.bf16.gmra.mxu0 %v3793
      %v3816 = vpop.f32.mrf.mxu0
      %v3817 = vadd.f32 0.0, %v3816
      %v3818 = vpop.f32.mrf.mxu0
      %3819 = vdwg.mxu0
      %3820 = vmatpush.bf16.msra.mxu0 %v3142
      %3821 = vmatpush.bf16.msra.mxu0 %v3139
      %3822 = vmatpush.bf16.msra.mxu0 %v3136
      %3823 = vmatpush.bf16.msra.mxu0 %v3133
      %3824 = vmatpush.bf16.msra.mxu0 %v3130
      %3825 = vmatpush.bf16.msra.mxu0 %v3127
      %3826 = vmatpush.bf16.msra.mxu0 %v3124
      %3827 = vmatpush.bf16.msra.mxu0 %v3121
      %3828 = vmatmul.bf16.gmra.mxu0 %v3793
      %v3829 = vpop.f32.mrf.mxu0
      %v3830 = vadd.f32 0.0, %v3829
      %v3831 = vpop.f32.mrf.mxu0
      %3832 = vdwg.mxu0
      %v3833 = vadd.f32 %v2945, %v3804
      %v3834 = vxor.u32 %v3833, 2147483648
      %v3835 = vmul.f32 %v3834, 1.442695
      %v3836 = vpow.pop %v3835
      %v3837 = vadd.f32 %v3836, 1.0
      %v3838 = vrcp.pop %v3837
      %v3839 = vmul.f32 %v3837, %v3838
      %v3840 = vsub.f32 1.0, %v3839
      %v3841 = vmul.f32 %v3838, %v3840
      %v3842 = vadd.f32 %v3838, %v3841
      %vm3843 = vweird.f32 %v3837
      %vm3844 = vweird.f32 %v3838
      %vm3845 = vmor %vm3843, %vm3844
      %v3846 = vsel %vm3845, %v3838, %v3842
      %v3847 = vand.u32 2147483647, %v3837
      %vm3848 = vcmp.eq.f32.partialorder %v3847, 8.507059e+37
      %v3849 = vand.u32 %v3837, 2147483648
      %v3850 = vor.u32 1.1754944e-38, %v3849
      %v3851 = vsel %vm3848, %v3850, %v3846
      %v3852 = vmul.f32 1.0, %v3851
      %v3853 = vadd.f32 %v2974, %v3817
      %v3854 = vxor.u32 %v3853, 2147483648
      %v3855 = vmul.f32 %v3854, 1.442695
      %v3856 = vpow.pop %v3855
      %v3857 = vadd.f32 %v3856, 1.0
      %v3858 = vrcp.pop %v3857
      %v3859 = vmul.f32 %v3857, %v3858
      %v3860 = vsub.f32 1.0, %v3859
      %v3861 = vmul.f32 %v3858, %v3860
      %v3862 = vadd.f32 %v3858, %v3861
      %vm3863 = vweird.f32 %v3857
      %vm3864 = vweird.f32 %v3858
      %vm3865 = vmor %vm3863, %vm3864
      %v3866 = vsel %vm3865, %v3858, %v3862
      %v3867 = vand.u32 2147483647, %v3857
      %vm3868 = vcmp.eq.f32.partialorder %v3867, 8.507059e+37
      %v3869 = vand.u32 %v3857, 2147483648
      %v3870 = vor.u32 1.1754944e-38, %v3869
      %v3871 = vsel %vm3868, %v3870, %v3866
      %v3872 = vmul.f32 1.0, %v3871
      %v3873 = vadd.f32 %v3830, %v3248
      %v3874 = vmul.f32 %v3852, %v3873
      %v3875 = vadd.f32 %v3003, %v3874
      %v3876 = vtanh.pop %v3875
      %v3877 = vsub.f32 1.0, %v3872
      %v3878 = vmul.f32 %v3877, %v3876
      %v3879 = vmul.f32 %v3872, %v3792
      %v3880 = vadd.f32 %v3878, %v3879
      %v3881 = vsel %vm2713, %v3880, %v3792
      %3882 = vst [vmem:[#allocation3] sm:$0xff] %v3881
      %p3883 = scmp.eq.s32.totalorder %s21, 1
      // Predicated region
      $region65: #{deep_gru_forward.2} parent=59 // pred_check
        %p3884 = pneg %p3883
      $region66: #{deep_gru_forward.2} parent=59 // pred_check_branch
        %3886 = sbr.rel (%p3884) target = $region68
      $region67: #{deep_gru_forward.2} parent=59 // pred_region
        %v3887 = vld [vmem:[#allocation2] sm:$0xff]
        %3888 = vst [vmem:[%s10] sm:$0xff] %v3887
        %v3889 = vld [vmem:[#allocation3] sm:$0xff]
        %s3890 = scalar_lea.vmem %s10, 8
        %3891 = vst [vmem:[%s3890] sm:$0xff] %v3889
      $region68: #{deep_gru_forward.2} parent=59 // pred_fallthru
        _
      // Predicated region
      $region69: #{deep_gru_forward.2} parent=59 // pred_check
        %p3892 = pneg %p249
      $region70: #{deep_gru_forward.2} parent=59 // pred_check_branch
        %3894 = sbr.rel (%p3892) target = $region72
      $region71: #{deep_gru_forward.2} parent=59 // pred_region
        _
      $region72: #{deep_gru_forward.2} parent=59 // pred_fallthru
        _
      // Predicated region
      $region73: #{deep_gru_forward.2} parent=59 // pred_check
        %p3895 = pneg %p249
      $region74: #{deep_gru_forward.2} parent=59 // pred_check_branch
        %3897 = sbr.rel (%p3895) target = $region76
      $region75: #{deep_gru_forward.2} parent=59 // pred_region
        _
      $region76: #{deep_gru_forward.2} parent=59 // pred_fallthru
        _
    $region60: #{deep_gru_forward.2} parent=5 // pred_fallthru
      _
    %p3898 = scmp.le.s32.totalorder 2, %s16
    // Predicated region
    $region77: #{deep_gru_forward.2} parent=5 // pred_check
      %p3899 = pneg %p3898
    $region78: #{deep_gru_forward.2} parent=5 // pred_check_branch
      %3901 = sbr.rel (%p3899) target = $region80
    $region79: #{deep_gru_forward.2} parent=5 // pred_region
      %s3902 = ssub.s32 %s16, 2
    $region80: #{deep_gru_forward.2} parent=5 // pred_fallthru
      _
  $region6: #{deep_gru_forward.2} parent=0 // loop_footer
    %s20 = sadd.s32 1, %s16
  $region7: #{deep_gru_forward.2} parent=0 // loop_footer_branch
    %15 = sbr.rel target = $region3
  $region8: #{deep_gru_forward.2} parent=0 // loop_exit
    _

</llo_original>
